<compile_context>
chip_gen: v6e
topology: v6e:2x2x1
jax: 0.10.0
libtpu: 0.0.40
codegen_flags: <defaults>
</compile_context>

<pallas_src>
import functools
import math

import jax
import jax.numpy as jnp
from jax.experimental import pallas as pl
from jax.experimental.pallas import tpu as pltpu


# ----------------------------------------------------------------------------
# Kernel
# ----------------------------------------------------------------------------
def _aitm_kernel(feat_ref,
                 w1, b1, w2, b2, w3, b3,   # fused towers (d3 lane-padded)
                 iw, ib,                    # info layer (padded to d3p x d3p)
                 wqkv,                      # fused Q/K/V (d3p x 3*d3p, no bias)
                 wh, bh,                    # fused heads (2*d3p x 128)
                 out_ref,                   # (2, TB) f32: row0=click, row1=conv
                 *, inv_sqrt_d, approx_recip):
    def mm(h, w_ref):
        # MXU matmul in the weight dtype (bf16 or f32), f32 accumulation.
        return jnp.dot(h.astype(w_ref.dtype), w_ref[...],
                       preferred_element_type=jnp.float32)

    x = feat_ref[...]

    # Fused towers: columns are [click | conversion]; ReLU in f32 on the VPU.
    h = jnp.maximum(mm(x, w1) + b1[...], 0.0)          # [TB, 2*d1]
    h = jnp.maximum(mm(h, w2) + b2[...], 0.0)          # [TB, 2*d2]
    h = jnp.maximum(mm(h, w3) + b3[...], 0.0)          # [TB, 2*d3p]

    d3p = iw.shape[0]                                   # lane-padded d3 (=128)
    t_click = h[:, :d3p]                                # vreg-aligned slices
    t_conv = h[:, d3p:]

    # info = ReLU(Linear(tower_click))
    info = jnp.maximum(mm(t_click, iw) + ib[...], 0.0)  # [TB, d3p]

    # Q/K/V: two matmuls against the same fused [d3p, 3*d3p] weight (no
    # sublane concat / sublane slicing); all slices fall on 128-lane bounds.
    qkv_c = mm(t_conv, wqkv)                            # [TB, 3*d3p]
    qkv_i = mm(info, wqkv)                              # [TB, 3*d3p]
    q0, k0, v0 = qkv_c[:, :d3p], qkv_c[:, d3p:2 * d3p], qkv_c[:, 2 * d3p:]
    q1, k1, v1 = qkv_i[:, :d3p], qkv_i[:, d3p:2 * d3p], qkv_i[:, 2 * d3p:]

    # Scaled dot-product scores over the 2-element "sequence" axis (padded
    # lanes are zero, so the lane reduction equals the true d3-dim dot).
    a0 = jnp.sum(q0 * k0, axis=-1, keepdims=True) * inv_sqrt_d   # [TB, 1]
    a1 = jnp.sum(q1 * k1, axis=-1, keepdims=True) * inv_sqrt_d   # [TB, 1]
    m = jnp.maximum(a0, a1)
    e0 = jnp.exp(a0 - m)
    e1 = jnp.exp(a1 - m)
    den = e0 + e1
    if approx_recip:
        inv_den = pl.reciprocal(den, approx=True)       # EUP, frees the VALU
    else:
        inv_den = 1.0 / den
    ait = (e0 * inv_den) * v0 + (e1 * inv_den) * v1     # [TB, d3p]

    # Fused heads, widened to 128 output lanes (col 0 = click, col 1 = conv,
    # rest zero) so the transpose below is a native (8,128) XLU tile transpose
    # and the (2, TB) store is lane-dense.
    head_in = jnp.concatenate([t_click, ait], axis=1)   # [TB, 2*d3p]
    logits_wide = mm(head_in, wh) + bh[...]             # [TB, 128]
    logits_t = jnp.transpose(logits_wide)               # [128, TB]  (XLU)
    out_ref[...] = 1.0 / (1.0 + jnp.exp(-logits_t[:2, :]))   # (2, TB)


# ----------------------------------------------------------------------------
# Host-side helpers
# ----------------------------------------------------------------------------
def _round_up(n, m):
    return ((n + m - 1) // m) * m


def _block_diag(a, b):
    out = jnp.zeros((a.shape[0] + b.shape[0], a.shape[1] + b.shape[1]), a.dtype)
    out = out.at[:a.shape[0], :a.shape[1]].set(a)
    out = out.at[a.shape[0]:, a.shape[1]:].set(b)
    return out


def _vmem_capacity_bytes(default=64 * 1024 * 1024):
    """Physical VMEM of the local chip; conservative 64 MiB (v7x) fallback."""
    try:
        info = pltpu.get_tpu_info()
        cap = getattr(info, "vmem_capacity_bytes", None)
        if cap:
            return int(cap)
    except Exception:
        pass
    return default


def _prepare_fused_params(params, compute_dtype):
    """Fuse + lane-pad the per-layer weights so the kernel issues wide,
    vreg-aligned MXU matmuls and every in-kernel slice lands on a 128-lane
    boundary.  All padding is zeros, so the forward math is unchanged."""
    cdt = compute_dtype
    f32 = jnp.float32

    feat_dim, _ = params["cw1"].shape
    d2 = params["cw2"].shape[1]
    d3 = params["cw3"].shape[1]
    info_out = params["iw"].shape[1]
    fp = _round_up(feat_dim, 128)                 # lane-padded feature width
    d3p = _round_up(max(d3, info_out), 128)       # lane-padded tower-top width

    fused = {}
    # Layer 1: both towers read the same input -> concat along output columns;
    # zero rows for the lane-padded feature columns.
    w1 = jnp.concatenate([params["cw1"], params["vw1"]], axis=1)
    fused["w1"] = jnp.pad(w1, ((0, fp - feat_dim), (0, 0))).astype(cdt)
    fused["b1"] = jnp.concatenate([params["cb1"], params["vb1"]], 1).astype(f32)
    # Layer 2: block-diagonal keeps [click | conv] fused through ReLU.
    fused["w2"] = _block_diag(params["cw2"], params["vw2"]).astype(cdt)
    fused["b2"] = jnp.concatenate([params["cb2"], params["vb2"]], 1).astype(f32)
    # Layer 3: block-diagonal; each tower's d3 outputs padded to a full
    # 128-lane slot: columns [0:d3p) = click, [d3p:2*d3p) = conversion.
    w3 = jnp.zeros((2 * d2, 2 * d3p), f32)
    w3 = w3.at[:d2, :d3].set(params["cw3"])
    w3 = w3.at[d2:, d3p:d3p + d3].set(params["vw3"])
    fused["w3"] = w3.astype(cdt)
    b3 = jnp.zeros((1, 2 * d3p), f32)
    b3 = b3.at[:, :d3].set(params["cb3"])
    b3 = b3.at[:, d3p:d3p + d3].set(params["vb3"])
    fused["b3"] = b3
    # Info layer, padded to d3p x d3p.
    iw = jnp.zeros((d3p, d3p), f32).at[:d3, :info_out].set(params["iw"])
    fused["iw"] = iw.astype(cdt)
    fused["ib"] = jnp.zeros((1, d3p), f32).at[:, :info_out].set(params["ib"])
    # Fused Q/K/V (no bias); each of the three d3p-wide slots zero-padded.
    wqkv = jnp.zeros((d3p, 3 * d3p), f32)
    wqkv = wqkv.at[:d3, 0 * d3p:0 * d3p + d3].set(params["wq"])
    wqkv = wqkv.at[:d3, 1 * d3p:1 * d3p + d3].set(params["wk"])
    wqkv = wqkv.at[:d3, 2 * d3p:2 * d3p + d3].set(params["wv"])
    fused["wqkv"] = wqkv.astype(cdt)
    # Fused heads, widened to 128 output lanes (col 0 = click applied to the
    # t_click half, col 1 = conversion applied to the ait half, rest zero).
    wh = jnp.zeros((2 * d3p, 128), f32)
    wh = wh.at[:d3, 0].set(params["hcw"][:, 0])
    wh = wh.at[d3p:d3p + d3, 1].set(params["hvw"][:, 0])
    fused["wh"] = wh.astype(cdt)
    bh = jnp.zeros((1, 128), f32)
    bh = bh.at[0, 0].set(params["hcb"][0, 0])
    bh = bh.at[0, 1].set(params["hvb"][0, 0])
    fused["bh"] = bh
    return fused


def _choose_block_b(batch, feat_dim_pad, d3p, act_bytes, weight_bytes,
                    vmem_limit_bytes):
    """Batch-tile heuristic:
      * >= 256 rows (amortizes ~0.35us/step overhead; keeps v5e's MXU fed),
      * multiple of 128 (bf16 (16,128) sublane rule; 128-lane (2,tb) out block),
      * fits the generation-aware VMEM limit together with the double-buffered
        weights, feature/out tiles and the f32 intermediates,
      * capped near b_pad/4 so large batches keep a multi-step grid
        (pipelining + v7x megacore sharding)."""
    headroom = 4 * 1024 * 1024
    budget = max(vmem_limit_bytes - 2 * weight_bytes - headroom, 1 << 20)
    # Per-row bytes: double-buffered feature tile + double-buffered f32 out
    # columns + a generous estimate of the f32 intermediates (towers, 2x qkv,
    # q/k/v slices, attention, head input, wide + transposed logits).
    per_row = 2 * feat_dim_pad * act_bytes + 2 * 2 * 4
    per_row += 4 * (18 * d3p + 1024)
    tb = (budget // per_row) // 128 * 128
    tb = int(max(256, min(tb, 2048)))
    # Keep >= ~4 grid steps once the batch is large enough.
    b_ceil = _round_up(max(batch, 1), 128)
    tb_cap = max(256, (b_ceil // 4) // 128 * 128)
    return int(min(tb, tb_cap))


# ----------------------------------------------------------------------------
# Forward pass
# ----------------------------------------------------------------------------
def aitm_forward(x_dict, params, feature_names, *,
                 compute_dtype=jnp.bfloat16,
                 block_b=None,
                 approx_softmax_recip=True,
                 vmem_limit_bytes=None):
    # --- glue: embedding lookup + concat (gather, kept in plain JAX) ---
    feats = [params["emb"][name][x_dict[name]] for name in feature_names]
    feat = jnp.concatenate(feats, axis=1)                 # [B, F*E]
    B, feat_dim = feat.shape
    d3 = params["cw3"].shape[1]

    fused = _prepare_fused_params(params, compute_dtype)
    feat_dim_pad = fused["w1"].shape[0]
    d3p = fused["iw"].shape[0]

    weights = (
        fused["w1"], fused["b1"], fused["w2"], fused["b2"],
        fused["w3"], fused["b3"], fused["iw"], fused["ib"],
        fused["wqkv"], fused["wh"], fused["bh"],
    )

    # Generation-aware VMEM budget: <= 3/4 of physical (48 MiB on 64-MiB v7x),
    # capped at 96 MiB on the 128-MiB v5e/v6e parts.
    if vmem_limit_bytes is None:
        vmem_limit_bytes = min((_vmem_capacity_bytes() * 3) // 4,
                               96 * 1024 * 1024)

    act_bytes = jnp.dtype(compute_dtype).itemsize
    weight_bytes = sum(int(w.size) * w.dtype.itemsize for w in weights)
    if block_b is None:
        tb = _choose_block_b(B, feat_dim_pad, d3p, act_bytes, weight_bytes,
                             vmem_limit_bytes)
    else:
        # Validate/round a caller-provided tile: a multiple of 128 keeps the
        # bf16 (16,128) sublane rule and the 128-lane rule of the out block.
        tb = max(128, _round_up(int(block_b), 128))
    b_pad = _round_up(max(B, 1), tb)

    # Cast the feature stream (dominant HBM byte stream) to the compute dtype,
    # zero-pad the batch to the tile and the feature width to 128 lanes.
    feat = feat.astype(compute_dtype)
    if b_pad != B or feat_dim_pad != feat_dim:
        feat = jnp.pad(feat, ((0, b_pad - B), (0, feat_dim_pad - feat_dim)))

    grid = (b_pad // tb,)
    feat_spec = pl.BlockSpec((tb, feat_dim_pad), lambda b: (b, 0))
    # Weights: full-shape blocks + constant index_map -> fetched once and kept
    # VMEM-resident (the pipeline skips re-DMA when block indices don't move).
    weight_specs = [pl.BlockSpec(w.shape, lambda b: (0, 0)) for w in weights]
    # Lane-dense output: (2, tb) block of a (2, b_pad) array.
    out_spec = pl.BlockSpec((2, tb), lambda b: (0, b))

    kernel = functools.partial(
        _aitm_kernel,
        inv_sqrt_d=1.0 / math.sqrt(d3),
        approx_recip=approx_softmax_recip)

    out = pl.pallas_call(
        kernel,
        out_shape=jax.ShapeDtypeStruct((2, b_pad), jnp.float32),
        grid=grid,
        in_specs=[feat_spec] + weight_specs,
        out_specs=out_spec,
        compiler_params=pltpu.CompilerParams(
            dimension_semantics=("parallel",),
            vmem_limit_bytes=int(vmem_limit_bytes),
        ),
    )(feat, *weights)

    out = out[:, :B]
    return out[0], out[1]


# ----------------------------------------------------------------------------
# Parameter init + pure-JAX reference
# ----------------------------------------------------------------------------
def init_params(key, feature_vocabulary, embedding_size,
                tower_dims=(128, 64, 32)):
    feature_names = sorted(feature_vocabulary.keys())
    n_feat = len(feature_names)
    tower_in = n_feat * embedding_size
    d1, d2, d3 = tower_dims

    keys = iter(jax.random.split(key, 64))
    params = {"emb": {}}
    for name in feature_names:
        vocab = feature_vocabulary[name]
        params["emb"][name] = 0.01 * jax.random.normal(
            next(keys), (vocab, embedding_size), jnp.float32)

    def lin(kin, kout):
        # weight stored pre-transposed as [in, out]
        w = 0.05 * jax.random.normal(next(keys), (kin, kout), jnp.float32)
        b = 0.05 * jax.random.normal(next(keys), (1, kout), jnp.float32)
        return w, b

    # click tower
    params["cw1"], params["cb1"] = lin(tower_in, d1)
    params["cw2"], params["cb2"] = lin(d1, d2)
    params["cw3"], params["cb3"] = lin(d2, d3)
    # conversion tower
    params["vw1"], params["vb1"] = lin(tower_in, d1)
    params["vw2"], params["vb2"] = lin(d1, d2)
    params["vw3"], params["vb3"] = lin(d2, d3)
    # info layer (d3 -> 32)
    params["iw"], params["ib"] = lin(d3, 32)
    # attention q/k/v (no bias)
    params["wq"] = 0.05 * jax.random.normal(next(keys), (d3, d3), jnp.float32)
    params["wk"] = 0.05 * jax.random.normal(next(keys), (d3, d3), jnp.float32)
    params["wv"] = 0.05 * jax.random.normal(next(keys), (d3, d3), jnp.float32)
    # heads (d3 -> 1)
    params["hcw"], params["hcb"] = lin(d3, 1)
    params["hvw"], params["hvb"] = lin(d3, 1)

    return params, feature_names


def reference_forward(x_dict, params, feature_names):
    """Pure-JAX reference mirroring the PyTorch forward (eval mode)."""
    feat = jnp.concatenate(
        [params["emb"][n][x_dict[n]] for n in feature_names], axis=1)

    def tower(x, pfx):
        h = jax.nn.relu(x @ params[pfx + "w1"] + params[pfx + "b1"])
        h = jax.nn.relu(h @ params[pfx + "w2"] + params[pfx + "b2"])
        h = jax.nn.relu(h @ params[pfx + "w3"] + params[pfx + "b3"])
        return h

    t_click = tower(feat, "c")
    t_conv = tower(feat, "v")
    info = jax.nn.relu(t_click @ params["iw"] + params["ib"])
    stacked = jnp.stack([t_conv, info], axis=1)                # [B, 2, D]
    q = stacked @ params["wq"]
    k = stacked @ params["wk"]
    v = stacked @ params["wv"]
    dim = params["wq"].shape[0]
    atten = jnp.sum(q * k, -1) / jnp.sqrt(jnp.float32(dim))
    atten = jax.nn.softmax(atten, axis=1)
    ait = jnp.sum(atten[..., None] * v, axis=1)
    click = jax.nn.sigmoid(t_click @ params["hcw"] + params["hcb"])[:, 0]
    conv = jax.nn.sigmoid(ait @ params["hvw"] + params["hvb"])[:, 0]
    return click, conv


if __name__ == "__main__":
    # Small, deterministic configuration.
    feature_vocabulary = {"user_id": 20, "item_id": 30, "cate_id": 10, "city": 15}
    embedding_size = 8
    batch = 8

    key = jax.random.PRNGKey(0)
    pkey, dkey = jax.random.split(key)
    params, feature_names = init_params(pkey, feature_vocabulary, embedding_size)

    x_dict = {}
    for name in feature_names:
        dkey, sub = jax.random.split(dkey)
        x_dict[name] = jax.random.randint(
            sub, (batch,), 0, feature_vocabulary[name], dtype=jnp.int32)

    ref_click, ref_conv = reference_forward(x_dict, params, feature_names)

    # f32 mode with the exact softmax denominator (tight tolerance) and bf16
    # mode with the approximate EUP reciprocal (looser tolerance; bf16 MXU
    # inputs with f32 accumulation).
    for cdt, approx, atol in ((jnp.float32, False, 1e-3),
                              (jnp.bfloat16, True, 2e-2)):
        click, conversion = aitm_forward(
            x_dict, params, feature_names,
            compute_dtype=cdt, approx_softmax_recip=approx)
        jax.block_until_ready((click, conversion))
        assert click.shape == (batch,) and conversion.shape == (batch,)
        assert jnp.allclose(click, ref_click, atol=atol, rtol=1e-2)
        assert jnp.allclose(conversion, ref_conv, atol=atol, rtol=1e-2)

    print("KERNEL_OK")
</pallas_src>

<mosaic_0001>
module attributes {stable_mosaic.version = 11 : i64} {
  func.func @_aitm_kernel(%arg0: i32, %arg1: memref<256x128xf32, #tpu.memory_space<vmem>>, %arg2: memref<128x256xf32, #tpu.memory_space<vmem>>, %arg3: memref<1x256xf32, #tpu.memory_space<vmem>>, %arg4: memref<256x128xf32, #tpu.memory_space<vmem>>, %arg5: memref<1x128xf32, #tpu.memory_space<vmem>>, %arg6: memref<128x256xf32, #tpu.memory_space<vmem>>, %arg7: memref<1x256xf32, #tpu.memory_space<vmem>>, %arg8: memref<128x128xf32, #tpu.memory_space<vmem>>, %arg9: memref<1x128xf32, #tpu.memory_space<vmem>>, %arg10: memref<128x384xf32, #tpu.memory_space<vmem>>, %arg11: memref<256x128xf32, #tpu.memory_space<vmem>>, %arg12: memref<1x128xf32, #tpu.memory_space<vmem>>, %arg13: memref<2x256xf32, #tpu.memory_space<vmem>>) attributes {dimension_semantics = [#tpu.dimension_semantics<parallel>], iteration_bounds = array<i64: 1>, scalar_prefetch = 0 : i64, scratch_operands = 0 : i64, tpu.core_type = #tpu.core_type<tc>, window_params = [{transform_indices = @transform_0, window_bounds = array<i64: 256, 128>}, {pipeline_mode = #tpu.pipeline_mode<synchronous>, transform_indices = @transform_1, window_bounds = array<i64: 128, 256>}, {pipeline_mode = #tpu.pipeline_mode<synchronous>, transform_indices = @transform_2, window_bounds = array<i64: 1, 256>}, {pipeline_mode = #tpu.pipeline_mode<synchronous>, transform_indices = @transform_3, window_bounds = array<i64: 256, 128>}, {pipeline_mode = #tpu.pipeline_mode<synchronous>, transform_indices = @transform_4, window_bounds = array<i64: 1, 128>}, {pipeline_mode = #tpu.pipeline_mode<synchronous>, transform_indices = @transform_5, window_bounds = array<i64: 128, 256>}, {pipeline_mode = #tpu.pipeline_mode<synchronous>, transform_indices = @transform_6, window_bounds = array<i64: 1, 256>}, {pipeline_mode = #tpu.pipeline_mode<synchronous>, transform_indices = @transform_7, window_bounds = array<i64: 128, 128>}, {pipeline_mode = #tpu.pipeline_mode<synchronous>, transform_indices = @transform_8, window_bounds = array<i64: 1, 128>}, {pipeline_mode = #tpu.pipeline_mode<synchronous>, transform_indices = @transform_9, window_bounds = array<i64: 128, 384>}, {pipeline_mode = #tpu.pipeline_mode<synchronous>, transform_indices = @transform_10, window_bounds = array<i64: 256, 128>}, {pipeline_mode = #tpu.pipeline_mode<synchronous>, transform_indices = @transform_11, window_bounds = array<i64: 1, 128>}, {transform_indices = @transform_12, window_bounds = array<i64: 2, 256>}]} {
    %c0 = arith.constant 0 : index
    %c0_0 = arith.constant 0 : index
    %0 = vector.load %arg1[%c0, %c0_0] : memref<256x128xf32, #tpu.memory_space<vmem>>, vector<256x128xf32>
    %c0_1 = arith.constant 0 : index
    %c0_2 = arith.constant 0 : index
    %1 = vector.load %arg2[%c0_1, %c0_2] : memref<128x256xf32, #tpu.memory_space<vmem>>, vector<128x256xf32>
    %cst = arith.constant dense<0.000000e+00> : vector<256x256xf32>
    %2 = tpu.matmul %0, %1, %cst {dimension_numbers = #tpu.dot_dimension_numbers<[1], [0], [0], [1], [0, 0, 1, 1], [], []>} : vector<256x128xf32>, vector<128x256xf32>, vector<256x256xf32> -> vector<256x256xf32>
    %c0_3 = arith.constant 0 : index
    %c0_4 = arith.constant 0 : index
    %3 = vector.load %arg3[%c0_3, %c0_4] : memref<1x256xf32, #tpu.memory_space<vmem>>, vector<1x256xf32>
    %4 = vector.broadcast %3 : vector<1x256xf32> to vector<256x256xf32>
    %5 = arith.addf %2, %4 : vector<256x256xf32>
    %cst_5 = arith.constant 0.000000e+00 : f32
    %6 = vector.broadcast %cst_5 : f32 to vector<256x256xf32>
    %7 = arith.maximumf %5, %6 : vector<256x256xf32>
    %c0_6 = arith.constant 0 : index
    %c0_7 = arith.constant 0 : index
    %8 = vector.load %arg4[%c0_6, %c0_7] : memref<256x128xf32, #tpu.memory_space<vmem>>, vector<256x128xf32>
    %cst_8 = arith.constant dense<0.000000e+00> : vector<256x128xf32>
    %9 = tpu.matmul %7, %8, %cst_8 {dimension_numbers = #tpu.dot_dimension_numbers<[1], [0], [0], [1], [0, 0, 1, 1], [], []>} : vector<256x256xf32>, vector<256x128xf32>, vector<256x128xf32> -> vector<256x128xf32>
    %c0_9 = arith.constant 0 : index
    %c0_10 = arith.constant 0 : index
    %10 = vector.load %arg5[%c0_9, %c0_10] : memref<1x128xf32, #tpu.memory_space<vmem>>, vector<1x128xf32>
    %11 = vector.broadcast %10 : vector<1x128xf32> to vector<256x128xf32>
    %12 = arith.addf %9, %11 : vector<256x128xf32>
    %cst_11 = arith.constant 0.000000e+00 : f32
    %13 = vector.broadcast %cst_11 : f32 to vector<256x128xf32>
    %14 = arith.maximumf %12, %13 : vector<256x128xf32>
    %c0_12 = arith.constant 0 : index
    %c0_13 = arith.constant 0 : index
    %15 = vector.load %arg6[%c0_12, %c0_13] : memref<128x256xf32, #tpu.memory_space<vmem>>, vector<128x256xf32>
    %cst_14 = arith.constant dense<0.000000e+00> : vector<256x256xf32>
    %16 = tpu.matmul %14, %15, %cst_14 {dimension_numbers = #tpu.dot_dimension_numbers<[1], [0], [0], [1], [0, 0, 1, 1], [], []>} : vector<256x128xf32>, vector<128x256xf32>, vector<256x256xf32> -> vector<256x256xf32>
    %c0_15 = arith.constant 0 : index
    %c0_16 = arith.constant 0 : index
    %17 = vector.load %arg7[%c0_15, %c0_16] : memref<1x256xf32, #tpu.memory_space<vmem>>, vector<1x256xf32>
    %18 = vector.broadcast %17 : vector<1x256xf32> to vector<256x256xf32>
    %19 = arith.addf %16, %18 : vector<256x256xf32>
    %cst_17 = arith.constant 0.000000e+00 : f32
    %20 = vector.broadcast %cst_17 : f32 to vector<256x256xf32>
    %21 = arith.maximumf %19, %20 : vector<256x256xf32>
    %22 = vector.extract_strided_slice %21 {offsets = [0, 0], sizes = [256, 128], strides = [1, 1]} : vector<256x256xf32> to vector<256x128xf32>
    %23 = vector.extract_strided_slice %21 {offsets = [0, 128], sizes = [256, 128], strides = [1, 1]} : vector<256x256xf32> to vector<256x128xf32>
    %c0_18 = arith.constant 0 : index
    %c0_19 = arith.constant 0 : index
    %24 = vector.load %arg8[%c0_18, %c0_19] : memref<128x128xf32, #tpu.memory_space<vmem>>, vector<128x128xf32>
    %cst_20 = arith.constant dense<0.000000e+00> : vector<256x128xf32>
    %25 = tpu.matmul %22, %24, %cst_20 {dimension_numbers = #tpu.dot_dimension_numbers<[1], [0], [0], [1], [0, 0, 1, 1], [], []>} : vector<256x128xf32>, vector<128x128xf32>, vector<256x128xf32> -> vector<256x128xf32>
    %c0_21 = arith.constant 0 : index
    %c0_22 = arith.constant 0 : index
    %26 = vector.load %arg9[%c0_21, %c0_22] : memref<1x128xf32, #tpu.memory_space<vmem>>, vector<1x128xf32>
    %27 = vector.broadcast %26 : vector<1x128xf32> to vector<256x128xf32>
    %28 = arith.addf %25, %27 : vector<256x128xf32>
    %cst_23 = arith.constant 0.000000e+00 : f32
    %29 = vector.broadcast %cst_23 : f32 to vector<256x128xf32>
    %30 = arith.maximumf %28, %29 : vector<256x128xf32>
    %c0_24 = arith.constant 0 : index
    %c0_25 = arith.constant 0 : index
    %31 = vector.load %arg10[%c0_24, %c0_25] : memref<128x384xf32, #tpu.memory_space<vmem>>, vector<128x384xf32>
    %cst_26 = arith.constant dense<0.000000e+00> : vector<256x384xf32>
    %32 = tpu.matmul %23, %31, %cst_26 {dimension_numbers = #tpu.dot_dimension_numbers<[1], [0], [0], [1], [0, 0, 1, 1], [], []>} : vector<256x128xf32>, vector<128x384xf32>, vector<256x384xf32> -> vector<256x384xf32>
    %c0_27 = arith.constant 0 : index
    %c0_28 = arith.constant 0 : index
    %33 = vector.load %arg10[%c0_27, %c0_28] : memref<128x384xf32, #tpu.memory_space<vmem>>, vector<128x384xf32>
    %cst_29 = arith.constant dense<0.000000e+00> : vector<256x384xf32>
    %34 = tpu.matmul %30, %33, %cst_29 {dimension_numbers = #tpu.dot_dimension_numbers<[1], [0], [0], [1], [0, 0, 1, 1], [], []>} : vector<256x128xf32>, vector<128x384xf32>, vector<256x384xf32> -> vector<256x384xf32>
    %35 = vector.extract_strided_slice %32 {offsets = [0, 0], sizes = [256, 128], strides = [1, 1]} : vector<256x384xf32> to vector<256x128xf32>
    %36 = vector.extract_strided_slice %32 {offsets = [0, 128], sizes = [256, 128], strides = [1, 1]} : vector<256x384xf32> to vector<256x128xf32>
    %37 = vector.extract_strided_slice %32 {offsets = [0, 256], sizes = [256, 128], strides = [1, 1]} : vector<256x384xf32> to vector<256x128xf32>
    %38 = vector.extract_strided_slice %34 {offsets = [0, 0], sizes = [256, 128], strides = [1, 1]} : vector<256x384xf32> to vector<256x128xf32>
    %39 = vector.extract_strided_slice %34 {offsets = [0, 128], sizes = [256, 128], strides = [1, 1]} : vector<256x384xf32> to vector<256x128xf32>
    %40 = vector.extract_strided_slice %34 {offsets = [0, 256], sizes = [256, 128], strides = [1, 1]} : vector<256x384xf32> to vector<256x128xf32>
    %41 = arith.mulf %35, %36 : vector<256x128xf32>
    %cst_30 = arith.constant dense<0.000000e+00> : vector<256xf32>
    %42 = vector.multi_reduction <add>, %41, %cst_30 [1] : vector<256x128xf32> to vector<256xf32>
    %43 = vector.shape_cast %42 : vector<256xf32> to vector<256x1xf32>
    %cst_31 = arith.constant 0.176776692 : f32
    %44 = vector.broadcast %cst_31 : f32 to vector<256x1xf32>
    %45 = arith.mulf %43, %44 : vector<256x1xf32>
    %46 = arith.mulf %38, %39 : vector<256x128xf32>
    %cst_32 = arith.constant dense<0.000000e+00> : vector<256xf32>
    %47 = vector.multi_reduction <add>, %46, %cst_32 [1] : vector<256x128xf32> to vector<256xf32>
    %48 = vector.shape_cast %47 : vector<256xf32> to vector<256x1xf32>
    %cst_33 = arith.constant 0.176776692 : f32
    %49 = vector.broadcast %cst_33 : f32 to vector<256x1xf32>
    %50 = arith.mulf %48, %49 : vector<256x1xf32>
    %51 = arith.maximumf %45, %50 : vector<256x1xf32>
    %52 = arith.subf %45, %51 : vector<256x1xf32>
    %53 = math.exp %52 : vector<256x1xf32>
    %54 = arith.subf %50, %51 : vector<256x1xf32>
    %55 = math.exp %54 : vector<256x1xf32>
    %56 = arith.addf %53, %55 : vector<256x1xf32>
    %cst_34 = arith.constant 1.000000e+00 : f32
    %57 = vector.broadcast %cst_34 : f32 to vector<256x1xf32>
    %58 = arith.divf %57, %56 : vector<256x1xf32>
    %59 = arith.mulf %53, %58 : vector<256x1xf32>
    %60 = vector.broadcast %59 : vector<256x1xf32> to vector<256x128xf32>
    %61 = arith.mulf %60, %37 : vector<256x128xf32>
    %62 = arith.mulf %55, %58 : vector<256x1xf32>
    %63 = vector.broadcast %62 : vector<256x1xf32> to vector<256x128xf32>
    %64 = arith.mulf %63, %40 : vector<256x128xf32>
    %65 = arith.addf %61, %64 : vector<256x128xf32>
    %66 = tpu.concatenate %22, %65 in 1 : vector<256x128xf32>, vector<256x128xf32> -> vector<256x256xf32>
    %c0_35 = arith.constant 0 : index
    %c0_36 = arith.constant 0 : index
    %67 = vector.load %arg11[%c0_35, %c0_36] : memref<256x128xf32, #tpu.memory_space<vmem>>, vector<256x128xf32>
    %cst_37 = arith.constant dense<0.000000e+00> : vector<256x128xf32>
    %68 = tpu.matmul %66, %67, %cst_37 {dimension_numbers = #tpu.dot_dimension_numbers<[1], [0], [0], [1], [0, 0, 1, 1], [], []>} : vector<256x256xf32>, vector<256x128xf32>, vector<256x128xf32> -> vector<256x128xf32>
    %c0_38 = arith.constant 0 : index
    %c0_39 = arith.constant 0 : index
    %69 = vector.load %arg12[%c0_38, %c0_39] : memref<1x128xf32, #tpu.memory_space<vmem>>, vector<1x128xf32>
    %70 = vector.broadcast %69 : vector<1x128xf32> to vector<256x128xf32>
    %71 = arith.addf %68, %70 : vector<256x128xf32>
    %72 = tpu.transpose %71, [1, 0] : vector<256x128xf32> -> vector<128x256xf32>
    %73 = vector.extract_strided_slice %72 {offsets = [0, 0], sizes = [2, 256], strides = [1, 1]} : vector<128x256xf32> to vector<2x256xf32>
    %cst_40 = arith.constant 0.000000e+00 : f32
    %74 = vector.broadcast %cst_40 : f32 to vector<2x256xf32>
    %75 = arith.subf %74, %73 : vector<2x256xf32>
    %76 = math.exp %75 : vector<2x256xf32>
    %cst_41 = arith.constant 1.000000e+00 : f32
    %77 = vector.broadcast %cst_41 : f32 to vector<2x256xf32>
    %78 = arith.addf %77, %76 : vector<2x256xf32>
    %cst_42 = arith.constant 1.000000e+00 : f32
    %79 = vector.broadcast %cst_42 : f32 to vector<2x256xf32>
    %80 = arith.divf %79, %78 : vector<2x256xf32>
    %c0_43 = arith.constant 0 : index
    %c0_44 = arith.constant 0 : index
    %81 = vector.load %arg13[%c0_43, %c0_44] : memref<2x256xf32, #tpu.memory_space<vmem>>, vector<2x256xf32>
    tpu.vector_store %arg13[%c0_43, %c0_44], %80 {strides = array<i32>} : memref<2x256xf32, #tpu.memory_space<vmem>>, vector<2x256xf32>,
    return
  }
  func.func @transform_0(%arg0: i32) -> (i32, i32) {
    %c0_i32 = arith.constant 0 : i32
    %c0_i32_0 = arith.constant 0 : i32
    return %arg0, %c0_i32 : i32, i32
  }
  func.func @transform_1(%arg0: i32) -> (i32, i32) {
    %c0_i32 = arith.constant 0 : i32
    %c0_i32_0 = arith.constant 0 : i32
    %c0_i32_1 = arith.constant 0 : i32
    return %c0_i32, %c0_i32_0 : i32, i32
  }
  func.func @transform_2(%arg0: i32) -> (i32, i32) {
    %c0_i32 = arith.constant 0 : i32
    %c0_i32_0 = arith.constant 0 : i32
    %c0_i32_1 = arith.constant 0 : i32
    return %c0_i32, %c0_i32_0 : i32, i32
  }
  func.func @transform_3(%arg0: i32) -> (i32, i32) {
    %c0_i32 = arith.constant 0 : i32
    %c0_i32_0 = arith.constant 0 : i32
    %c0_i32_1 = arith.constant 0 : i32
    return %c0_i32, %c0_i32_0 : i32, i32
  }
  func.func @transform_4(%arg0: i32) -> (i32, i32) {
    %c0_i32 = arith.constant 0 : i32
    %c0_i32_0 = arith.constant 0 : i32
    %c0_i32_1 = arith.constant 0 : i32
    return %c0_i32, %c0_i32_0 : i32, i32
  }
  func.func @transform_5(%arg0: i32) -> (i32, i32) {
    %c0_i32 = arith.constant 0 : i32
    %c0_i32_0 = arith.constant 0 : i32
    %c0_i32_1 = arith.constant 0 : i32
    return %c0_i32, %c0_i32_0 : i32, i32
  }
  func.func @transform_6(%arg0: i32) -> (i32, i32) {
    %c0_i32 = arith.constant 0 : i32
    %c0_i32_0 = arith.constant 0 : i32
    %c0_i32_1 = arith.constant 0 : i32
    return %c0_i32, %c0_i32_0 : i32, i32
  }
  func.func @transform_7(%arg0: i32) -> (i32, i32) {
    %c0_i32 = arith.constant 0 : i32
    %c0_i32_0 = arith.constant 0 : i32
    %c0_i32_1 = arith.constant 0 : i32
    return %c0_i32, %c0_i32_0 : i32, i32
  }
  func.func @transform_8(%arg0: i32) -> (i32, i32) {
    %c0_i32 = arith.constant 0 : i32
    %c0_i32_0 = arith.constant 0 : i32
    %c0_i32_1 = arith.constant 0 : i32
    return %c0_i32, %c0_i32_0 : i32, i32
  }
  func.func @transform_9(%arg0: i32) -> (i32, i32) {
    %c0_i32 = arith.constant 0 : i32
    %c0_i32_0 = arith.constant 0 : i32
    %c0_i32_1 = arith.constant 0 : i32
    return %c0_i32, %c0_i32_0 : i32, i32
  }
  func.func @transform_10(%arg0: i32) -> (i32, i32) {
    %c0_i32 = arith.constant 0 : i32
    %c0_i32_0 = arith.constant 0 : i32
    %c0_i32_1 = arith.constant 0 : i32
    return %c0_i32, %c0_i32_0 : i32, i32
  }
  func.func @transform_11(%arg0: i32) -> (i32, i32) {
    %c0_i32 = arith.constant 0 : i32
    %c0_i32_0 = arith.constant 0 : i32
    %c0_i32_1 = arith.constant 0 : i32
    return %c0_i32, %c0_i32_0 : i32, i32
  }
  func.func @transform_12(%arg0: i32) -> (i32, i32) {
    %c0_i32 = arith.constant 0 : i32
    %c0_i32_0 = arith.constant 0 : i32
    return %c0_i32, %arg0 : i32, i32
  }
}

</mosaic_0001>

<llo_original>
// kernel: tpu_custom_call.1
$region0: #{tpu_custom_call.1}
  #allocation0 [shape = 'u32[]', space=smem, size = 0x4, offset = 0x4, fixed_abs, tag = 'smem constant byte address 0x4 - core index']
  #allocation1 [shape = 'u32[144,128]{1,0:T(1,128)}', space=vmem, size = 0x12000, scoped, tag = 'internal scratch']
  %s0 = inlined_call_operand.hbm [shape: f32[256,128], index: 0, kind: input, shape index: {}]
  %s1 = inlined_call_operand.hbm [shape: f32[128,256], index: 1, kind: input, shape index: {}]
  %s2 = inlined_call_operand.vmem [shape: f32[1,256], index: 2, kind: input, shape index: {}]
  %s3 = inlined_call_operand.hbm [shape: f32[256,128], index: 3, kind: input, shape index: {}]
  %s4 = inlined_call_operand.vmem [shape: f32[1,128], index: 4, kind: input, shape index: {}]
  %s5 = inlined_call_operand.hbm [shape: f32[128,256], index: 5, kind: input, shape index: {}]
  %s6 = inlined_call_operand.vmem [shape: f32[1,256], index: 6, kind: input, shape index: {}]
  %s7 = inlined_call_operand.hbm [shape: f32[128,128], index: 7, kind: input, shape index: {}]
  %s8 = inlined_call_operand.vmem [shape: f32[1,128], index: 8, kind: input, shape index: {}]
  %s9 = inlined_call_operand.hbm [shape: f32[128,384], index: 9, kind: input, shape index: {}]
  %s10 = inlined_call_operand.hbm [shape: f32[256,128], index: 10, kind: input, shape index: {}]
  %s11 = inlined_call_operand.vmem [shape: f32[1,128], index: 11, kind: input, shape index: {}]
  %s12 = inlined_call_operand.hbm [shape: f32[2,256], index: 12, kind: output, shape index: {}]
  %s13 = sld [smem:[#allocation0]]
  $region86: #{tpu_custom_call.1} parent=0
    _
  %s15 = ssub.s32 1, %s13
  %s16 = scalar_select 0, %s15, %s13
  $region1: #{tpu_custom_call.1} parent=0
    #allocation2 [shape = 'u8[131072]{0}', space=vmem, size = 0x20000, scoped, tag = 'input window, operand 0, single buffered']
    #allocation3 [shape = 's32[1]{0}', space=sflag, size = 0x4, scoped, tag = 'scoped memory for tpu_custom_call.1']
    #allocation4 [shape = 's32[1]{0}', space=sflag, size = 0x4, scoped, tag = 'scoped memory for tpu_custom_call.1']
    #allocation5 [shape = 'u8[131072]{0}', space=vmem, size = 0x20000, scoped, tag = 'input window, operand 1, single buffered']
    #allocation6 [shape = 's32[1]{0}', space=sflag, size = 0x4, scoped, tag = 'scoped memory for tpu_custom_call.1']
    #allocation7 [shape = 'u8[131072]{0}', space=vmem, size = 0x20000, scoped, tag = 'input window, operand 3, single buffered']
    #allocation8 [shape = 'u8[131072]{0}', space=vmem, size = 0x20000, scoped, tag = 'input window, operand 5, single buffered']
    #allocation9 [shape = 's32[1]{0}', space=sflag, size = 0x4, scoped, tag = 'scoped memory for tpu_custom_call.1']
    #allocation10 [shape = 'u8[65536]{0}', space=vmem, size = 0x10000, scoped, tag = 'input window, operand 7, single buffered']
    #allocation11 [shape = 'u8[196608]{0}', space=vmem, size = 0x30000, scoped, tag = 'input window, operand 9, single buffered']
    #allocation12 [shape = 's32[1]{0}', space=sflag, size = 0x4, scoped, tag = 'scoped memory for tpu_custom_call.1']
    #allocation13 [shape = 'u8[131072]{0}', space=vmem, size = 0x20000, scoped, tag = 'input window, operand 10, single buffered']
    #allocation14 [shape = 'u8[2048]{0}', space=vmem, size = 0x800, scoped, tag = 'output window, operand 0, single buffered']
    %17 = vsyncpa [#allocation3], 0
    %18 = vsyncpa [#allocation6], 0
    %19 = vsyncpa [#allocation9], 0
    %20 = vsyncpa [#allocation12], 0
    %21 = vsyncpa [#allocation4], 0
    // Predicated region
    $region2: #{tpu_custom_call.1} parent=1 // pred_check
      _
    $region3: #{tpu_custom_call.1} parent=1 // pred_check_branch
      %23 = sbr.rel (0) target = $region5
    $region4: #{tpu_custom_call.1} parent=1 // pred_region
      %s25 = ssub.s32 4096, 4096
      %26 = vsyncadd [#allocation3], %s25
      %s27 = sshll.u32 [#allocation2], 4
      %s28 = int_to_ptr.vmem [resolvable:$true] %s27
      %33 = dma.hbm_to_vmem [thread:$0]  %s0, 4096, %s28, [#allocation3], 128, 128, 8
    $region5: #{tpu_custom_call.1} parent=1 // pred_fallthru
      _
    // Predicated region
    $region6: #{tpu_custom_call.1} parent=1 // pred_check
      _
    $region7: #{tpu_custom_call.1} parent=1 // pred_check_branch
      %35 = sbr.rel (0) target = $region9
    $region8: #{tpu_custom_call.1} parent=1 // pred_region
      %s37 = ssub.s32 4096, 4096
      %38 = vsyncadd [#allocation6], %s37
      %s39 = sshll.u32 [#allocation5], 4
      %s40 = int_to_ptr.vmem [resolvable:$true] %s39
      %45 = dma.hbm_to_vmem [thread:$0]  %s1, 4096, %s40, [#allocation6], 256, 256, 16
    $region9: #{tpu_custom_call.1} parent=1 // pred_fallthru
      _
    // Predicated region
    $region10: #{tpu_custom_call.1} parent=1 // pred_check
      _
    $region11: #{tpu_custom_call.1} parent=1 // pred_check_branch
      %47 = sbr.rel (0) target = $region13
    $region12: #{tpu_custom_call.1} parent=1 // pred_region
      _
    $region13: #{tpu_custom_call.1} parent=1 // pred_fallthru
      _
    // Predicated region
    $region14: #{tpu_custom_call.1} parent=1 // pred_check
      _
    $region15: #{tpu_custom_call.1} parent=1 // pred_check_branch
      %49 = sbr.rel (0) target = $region17
    $region16: #{tpu_custom_call.1} parent=1 // pred_region
      %s51 = ssub.s32 4096, 4096
      %52 = vsyncadd [#allocation6], %s51
      %s53 = sshll.u32 [#allocation7], 4
      %s54 = int_to_ptr.vmem [resolvable:$true] %s53
      %59 = dma.hbm_to_vmem [thread:$0]  %s3, 4096, %s54, [#allocation6], 128, 128, 8
    $region17: #{tpu_custom_call.1} parent=1 // pred_fallthru
      _
    // Predicated region
    $region18: #{tpu_custom_call.1} parent=1 // pred_check
      _
    $region19: #{tpu_custom_call.1} parent=1 // pred_check_branch
      %61 = sbr.rel (0) target = $region21
    $region20: #{tpu_custom_call.1} parent=1 // pred_region
      _
    $region21: #{tpu_custom_call.1} parent=1 // pred_fallthru
      _
    // Predicated region
    $region22: #{tpu_custom_call.1} parent=1 // pred_check
      _
    $region23: #{tpu_custom_call.1} parent=1 // pred_check_branch
      %63 = sbr.rel (0) target = $region25
    $region24: #{tpu_custom_call.1} parent=1 // pred_region
      %s65 = ssub.s32 4096, 4096
      %66 = vsyncadd [#allocation9], %s65
      %s67 = sshll.u32 [#allocation8], 4
      %s68 = int_to_ptr.vmem [resolvable:$true] %s67
      %73 = dma.hbm_to_vmem [thread:$0]  %s5, 4096, %s68, [#allocation9], 256, 256, 16
    $region25: #{tpu_custom_call.1} parent=1 // pred_fallthru
      _
    // Predicated region
    $region26: #{tpu_custom_call.1} parent=1 // pred_check
      _
    $region27: #{tpu_custom_call.1} parent=1 // pred_check_branch
      %75 = sbr.rel (0) target = $region29
    $region28: #{tpu_custom_call.1} parent=1 // pred_region
      _
    $region29: #{tpu_custom_call.1} parent=1 // pred_fallthru
      _
    // Predicated region
    $region30: #{tpu_custom_call.1} parent=1 // pred_check
      _
    $region31: #{tpu_custom_call.1} parent=1 // pred_check_branch
      %77 = sbr.rel (0) target = $region33
    $region32: #{tpu_custom_call.1} parent=1 // pred_region
      %s79 = ssub.s32 2048, 2048
      %80 = vsyncadd [#allocation9], %s79
      %s81 = sshll.u32 [#allocation10], 4
      %s82 = int_to_ptr.vmem [resolvable:$true] %s81
      %87 = dma.hbm_to_vmem [thread:$0]  %s7, 2048, %s82, [#allocation9], 128, 128, 8
    $region33: #{tpu_custom_call.1} parent=1 // pred_fallthru
      _
    // Predicated region
    $region34: #{tpu_custom_call.1} parent=1 // pred_check
      _
    $region35: #{tpu_custom_call.1} parent=1 // pred_check_branch
      %89 = sbr.rel (0) target = $region37
    $region36: #{tpu_custom_call.1} parent=1 // pred_region
      _
    $region37: #{tpu_custom_call.1} parent=1 // pred_fallthru
      _
    // Predicated region
    $region38: #{tpu_custom_call.1} parent=1 // pred_check
      _
    $region39: #{tpu_custom_call.1} parent=1 // pred_check_branch
      %91 = sbr.rel (0) target = $region41
    $region40: #{tpu_custom_call.1} parent=1 // pred_region
      %s93 = ssub.s32 6144, 6144
      %94 = vsyncadd [#allocation12], %s93
      %s95 = sshll.u32 [#allocation11], 4
      %s96 = int_to_ptr.vmem [resolvable:$true] %s95
      %101 = dma.hbm_to_vmem [thread:$0]  %s9, 6144, %s96, [#allocation12], 384, 384, 24
    $region41: #{tpu_custom_call.1} parent=1 // pred_fallthru
      _
    // Predicated region
    $region42: #{tpu_custom_call.1} parent=1 // pred_check
      _
    $region43: #{tpu_custom_call.1} parent=1 // pred_check_branch
      %103 = sbr.rel (0) target = $region45
    $region44: #{tpu_custom_call.1} parent=1 // pred_region
      %s105 = ssub.s32 4096, 4096
      %106 = vsyncadd [#allocation12], %s105
      %s107 = sshll.u32 [#allocation13], 4
      %s108 = int_to_ptr.vmem [resolvable:$true] %s107
      %113 = dma.hbm_to_vmem [thread:$0]  %s10, 4096, %s108, [#allocation12], 128, 128, 8
    $region45: #{tpu_custom_call.1} parent=1 // pred_fallthru
      _
    // Predicated region
    $region46: #{tpu_custom_call.1} parent=1 // pred_check
      _
    $region47: #{tpu_custom_call.1} parent=1 // pred_check_branch
      %115 = sbr.rel (0) target = $region49
    $region48: #{tpu_custom_call.1} parent=1 // pred_region
      _
    $region49: #{tpu_custom_call.1} parent=1 // pred_fallthru
      _
    // Predicated region
    $region50: #{tpu_custom_call.1} parent=1 // pred_check
      _
    $region51: #{tpu_custom_call.1} parent=1 // pred_check_branch
      %117 = sbr.rel (0) target = $region53
    $region52: #{tpu_custom_call.1} parent=1 // pred_region
      %118 = dma.done [#allocation3], 4096
    $region53: #{tpu_custom_call.1} parent=1 // pred_fallthru
      _
    // Predicated region
    $region54: #{tpu_custom_call.1} parent=1 // pred_check
      _
    $region55: #{tpu_custom_call.1} parent=1 // pred_check_branch
      %120 = sbr.rel (0) target = $region57
    $region56: #{tpu_custom_call.1} parent=1 // pred_region
      %121 = dma.done [#allocation6], 4096
    $region57: #{tpu_custom_call.1} parent=1 // pred_fallthru
      _
    // Predicated region
    $region58: #{tpu_custom_call.1} parent=1 // pred_check
      _
    $region59: #{tpu_custom_call.1} parent=1 // pred_check_branch
      %123 = sbr.rel (0) target = $region61
    $region60: #{tpu_custom_call.1} parent=1 // pred_region
      %124 = dma.done [#allocation6], 4096
    $region61: #{tpu_custom_call.1} parent=1 // pred_fallthru
      _
    // Predicated region
    $region62: #{tpu_custom_call.1} parent=1 // pred_check
      _
    $region63: #{tpu_custom_call.1} parent=1 // pred_check_branch
      %126 = sbr.rel (0) target = $region65
    $region64: #{tpu_custom_call.1} parent=1 // pred_region
      %127 = dma.done [#allocation9], 4096
    $region65: #{tpu_custom_call.1} parent=1 // pred_fallthru
      _
    // Predicated region
    $region66: #{tpu_custom_call.1} parent=1 // pred_check
      _
    $region67: #{tpu_custom_call.1} parent=1 // pred_check_branch
      %129 = sbr.rel (0) target = $region69
    $region68: #{tpu_custom_call.1} parent=1 // pred_region
      %130 = dma.done [#allocation9], 2048
    $region69: #{tpu_custom_call.1} parent=1 // pred_fallthru
      _
    // Predicated region
    $region70: #{tpu_custom_call.1} parent=1 // pred_check
      _
    $region71: #{tpu_custom_call.1} parent=1 // pred_check_branch
      %132 = sbr.rel (0) target = $region73
    $region72: #{tpu_custom_call.1} parent=1 // pred_region
      %133 = dma.done [#allocation12], 6144
    $region73: #{tpu_custom_call.1} parent=1 // pred_fallthru
      _
    // Predicated region
    $region74: #{tpu_custom_call.1} parent=1 // pred_check
      _
    $region75: #{tpu_custom_call.1} parent=1 // pred_check_branch
      %135 = sbr.rel (0) target = $region77
    $region76: #{tpu_custom_call.1} parent=1 // pred_region
      %136 = dma.done [#allocation12], 4096
    $region77: #{tpu_custom_call.1} parent=1 // pred_fallthru
      _
    %v137 = vld [vmem:[#allocation2] sm:$0xff]
    %v138 = vld [vmem:[#allocation2 + $0x8] sm:$0xff]
    %v139 = vld [vmem:[#allocation2 + $0x10] sm:$0xff]
    %v140 = vld [vmem:[#allocation2 + $0x18] sm:$0xff]
    %v141 = vld [vmem:[#allocation2 + $0x20] sm:$0xff]
    %v142 = vld [vmem:[#allocation2 + $0x28] sm:$0xff]
    %v143 = vld [vmem:[#allocation2 + $0x30] sm:$0xff]
    %v144 = vld [vmem:[#allocation2 + $0x38] sm:$0xff]
    %v145 = vld [vmem:[#allocation2 + $0x40] sm:$0xff]
    %v146 = vld [vmem:[#allocation2 + $0x48] sm:$0xff]
    %v147 = vld [vmem:[#allocation2 + $0x50] sm:$0xff]
    %v148 = vld [vmem:[#allocation2 + $0x58] sm:$0xff]
    %v149 = vld [vmem:[#allocation2 + $0x60] sm:$0xff]
    %v150 = vld [vmem:[#allocation2 + $0x68] sm:$0xff]
    %v151 = vld [vmem:[#allocation2 + $0x70] sm:$0xff]
    %v152 = vld [vmem:[#allocation2 + $0x78] sm:$0xff]
    %v153 = vld [vmem:[#allocation2 + $0x80] sm:$0xff]
    %v154 = vld [vmem:[#allocation2 + $0x88] sm:$0xff]
    %v155 = vld [vmem:[#allocation2 + $0x90] sm:$0xff]
    %v156 = vld [vmem:[#allocation2 + $0x98] sm:$0xff]
    %v157 = vld [vmem:[#allocation2 + $0xa0] sm:$0xff]
    %v158 = vld [vmem:[#allocation2 + $0xa8] sm:$0xff]
    %v159 = vld [vmem:[#allocation2 + $0xb0] sm:$0xff]
    %v160 = vld [vmem:[#allocation2 + $0xb8] sm:$0xff]
    %v161 = vld [vmem:[#allocation2 + $0xc0] sm:$0xff]
    %v162 = vld [vmem:[#allocation2 + $0xc8] sm:$0xff]
    %v163 = vld [vmem:[#allocation2 + $0xd0] sm:$0xff]
    %v164 = vld [vmem:[#allocation2 + $0xd8] sm:$0xff]
    %v165 = vld [vmem:[#allocation2 + $0xe0] sm:$0xff]
    %v166 = vld [vmem:[#allocation2 + $0xe8] sm:$0xff]
    %v167 = vld [vmem:[#allocation2 + $0xf0] sm:$0xff]
    %v168 = vld [vmem:[#allocation2 + $0xf8] sm:$0xff]
    %v169 = vld [vmem:[#allocation5] sm:$0xff]
    %v170 = vld [vmem:[#allocation5 + $0x8] sm:$0xff]
    %v171 = vld [vmem:[#allocation5 + $0x10] sm:$0xff]
    %v172 = vld [vmem:[#allocation5 + $0x18] sm:$0xff]
    %v173 = vld [vmem:[#allocation5 + $0x20] sm:$0xff]
    %v174 = vld [vmem:[#allocation5 + $0x28] sm:$0xff]
    %v175 = vld [vmem:[#allocation5 + $0x30] sm:$0xff]
    %v176 = vld [vmem:[#allocation5 + $0x38] sm:$0xff]
    %v177 = vld [vmem:[#allocation5 + $0x40] sm:$0xff]
    %v178 = vld [vmem:[#allocation5 + $0x48] sm:$0xff]
    %v179 = vld [vmem:[#allocation5 + $0x50] sm:$0xff]
    %v180 = vld [vmem:[#allocation5 + $0x58] sm:$0xff]
    %v181 = vld [vmem:[#allocation5 + $0x60] sm:$0xff]
    %v182 = vld [vmem:[#allocation5 + $0x68] sm:$0xff]
    %v183 = vld [vmem:[#allocation5 + $0x70] sm:$0xff]
    %v184 = vld [vmem:[#allocation5 + $0x78] sm:$0xff]
    %v185 = vld [vmem:[#allocation5 + $0x80] sm:$0xff]
    %v186 = vld [vmem:[#allocation5 + $0x88] sm:$0xff]
    %v187 = vld [vmem:[#allocation5 + $0x90] sm:$0xff]
    %v188 = vld [vmem:[#allocation5 + $0x98] sm:$0xff]
    %v189 = vld [vmem:[#allocation5 + $0xa0] sm:$0xff]
    %v190 = vld [vmem:[#allocation5 + $0xa8] sm:$0xff]
    %v191 = vld [vmem:[#allocation5 + $0xb0] sm:$0xff]
    %v192 = vld [vmem:[#allocation5 + $0xb8] sm:$0xff]
    %v193 = vld [vmem:[#allocation5 + $0xc0] sm:$0xff]
    %v194 = vld [vmem:[#allocation5 + $0xc8] sm:$0xff]
    %v195 = vld [vmem:[#allocation5 + $0xd0] sm:$0xff]
    %v196 = vld [vmem:[#allocation5 + $0xd8] sm:$0xff]
    %v197 = vld [vmem:[#allocation5 + $0xe0] sm:$0xff]
    %v198 = vld [vmem:[#allocation5 + $0xe8] sm:$0xff]
    %v199 = vld [vmem:[#allocation5 + $0xf0] sm:$0xff]
    %v200 = vld [vmem:[#allocation5 + $0xf8] sm:$0xff]
    %v201 = vld [vmem:[%s2] sm:$0x3]
    %v203 = vlaneseq
    %v204 = vshrl.u32 %v203, 7
    %v205 = vsub.s32 0, %v204
    %v206 = vrot.slane %v201, %v205
    %v207 = vlaneseq
    %v208 = vshrl.u32 %v207, 7
    %v209 = vsub.s32 1, %v208
    %v210 = vrot.slane %v201, %v209
    %213 = vmatprep.subr.mxu0 %v200
    %214 = vmatpush1.msra.mxu0 %v199
    %215 = vmatprep.subr.mxu0 %v198
    %216 = vmatpush1.msra.mxu0 %v197
    %217 = vmatprep.subr.mxu0 %v196
    %218 = vmatpush1.msra.mxu0 %v195
    %219 = vmatprep.subr.mxu0 %v194
    %220 = vmatpush1.msra.mxu0 %v193
    %221 = vmatprep.subr.mxu0 %v192
    %222 = vmatpush1.msra.mxu0 %v191
    %223 = vmatprep.subr.mxu0 %v190
    %224 = vmatpush1.msra.mxu0 %v189
    %225 = vmatprep.subr.mxu0 %v188
    %226 = vmatpush1.msra.mxu0 %v187
    %227 = vmatprep.subr.mxu0 %v186
    %228 = vmatpush1.msra.mxu0 %v185
    %229 = vmatprep.subr.mxu0 %v184
    %230 = vmatpush1.msra.mxu0 %v183
    %231 = vmatprep.subr.mxu0 %v182
    %232 = vmatpush1.msra.mxu0 %v181
    %233 = vmatprep.subr.mxu0 %v180
    %234 = vmatpush1.msra.mxu0 %v179
    %235 = vmatprep.subr.mxu0 %v178
    %236 = vmatpush1.msra.mxu0 %v177
    %237 = vmatprep.subr.mxu0 %v176
    %238 = vmatpush1.msra.mxu0 %v175
    %239 = vmatprep.subr.mxu0 %v174
    %240 = vmatpush1.msra.mxu0 %v173
    %241 = vmatprep.subr.mxu0 %v172
    %242 = vmatpush1.msra.mxu0 %v171
    %243 = vmatprep.subr.mxu0 %v170
    %244 = vmatpush1.msra.mxu0 %v169
    %245 = vmatprep.subr.mxu0 0.0
    %246 = vmatpush2.msra.mxu0 0.0
    %247 = vmatprep.subr.mxu0 0.0
    %248 = vmatpush2.msra.mxu0 0.0
    %249 = vmatprep.subr.mxu0 0.0
    %250 = vmatpush2.msra.mxu0 0.0
    %251 = vmatprep.subr.mxu0 0.0
    %252 = vmatpush2.msra.mxu0 0.0
    %253 = vmatprep.subr.mxu0 0.0
    %254 = vmatpush2.msra.mxu0 0.0
    %255 = vmatprep.subr.mxu0 0.0
    %256 = vmatpush2.msra.mxu0 0.0
    %257 = vmatprep.subr.mxu0 0.0
    %258 = vmatpush2.msra.mxu0 0.0
    %259 = vmatprep.subr.mxu0 0.0
    %260 = vmatpush2.msra.mxu0 0.0
    %261 = vmatprep.subr.mxu0 0.0
    %262 = vmatpush2.msra.mxu0 0.0
    %263 = vmatprep.subr.mxu0 0.0
    %264 = vmatpush2.msra.mxu0 0.0
    %265 = vmatprep.subr.mxu0 0.0
    %266 = vmatpush2.msra.mxu0 0.0
    %267 = vmatprep.subr.mxu0 0.0
    %268 = vmatpush2.msra.mxu0 0.0
    %269 = vmatprep.subr.mxu0 0.0
    %270 = vmatpush2.msra.mxu0 0.0
    %271 = vmatprep.subr.mxu0 0.0
    %272 = vmatpush2.msra.mxu0 0.0
    %273 = vmatprep.subr.mxu0 0.0
    %274 = vmatpush2.msra.mxu0 0.0
    %275 = vmatprep.subr.mxu0 0.0
    %276 = vmatpush2.msra.mxu0 0.0
    %277 = vmatprep.mubr.f32.mxu0 0.0
    %278 = vmatmul.mubr.f32.gmra.mxu0 %v137
    %v279 = vpop.f32.mrf.mxu0
    %v280 = vadd.f32 %v206, %v279
    %v281 = vpop.f32.mrf.mxu0
    %v282 = vadd.f32 %v210, %v281
    %283 = vmatprep.mubr.f32.mxu0 0.0
    %284 = vmatmul.mubr.f32.gmra.mxu0 %v138
    %v285 = vpop.f32.mrf.mxu0
    %v286 = vadd.f32 %v206, %v285
    %v287 = vpop.f32.mrf.mxu0
    %v288 = vadd.f32 %v210, %v287
    %289 = vmatprep.mubr.f32.mxu0 0.0
    %290 = vmatmul.mubr.f32.gmra.mxu0 %v139
    %v291 = vpop.f32.mrf.mxu0
    %v292 = vadd.f32 %v206, %v291
    %v293 = vpop.f32.mrf.mxu0
    %v294 = vadd.f32 %v210, %v293
    %295 = vmatprep.mubr.f32.mxu0 0.0
    %296 = vmatmul.mubr.f32.gmra.mxu0 %v140
    %v297 = vpop.f32.mrf.mxu0
    %v298 = vadd.f32 %v206, %v297
    %v299 = vpop.f32.mrf.mxu0
    %v300 = vadd.f32 %v210, %v299
    %301 = vmatprep.mubr.f32.mxu0 0.0
    %302 = vmatmul.mubr.f32.gmra.mxu0 %v141
    %v303 = vpop.f32.mrf.mxu0
    %v304 = vadd.f32 %v206, %v303
    %v305 = vpop.f32.mrf.mxu0
    %v306 = vadd.f32 %v210, %v305
    %307 = vmatprep.mubr.f32.mxu0 0.0
    %308 = vmatmul.mubr.f32.gmra.mxu0 %v142
    %v309 = vpop.f32.mrf.mxu0
    %v310 = vadd.f32 %v206, %v309
    %v311 = vpop.f32.mrf.mxu0
    %v312 = vadd.f32 %v210, %v311
    %313 = vmatprep.mubr.f32.mxu0 0.0
    %314 = vmatmul.mubr.f32.gmra.mxu0 %v143
    %v315 = vpop.f32.mrf.mxu0
    %v316 = vadd.f32 %v206, %v315
    %v317 = vpop.f32.mrf.mxu0
    %v318 = vadd.f32 %v210, %v317
    %319 = vmatprep.mubr.f32.mxu0 0.0
    %320 = vmatmul.mubr.f32.gmra.mxu0 %v144
    %v321 = vpop.f32.mrf.mxu0
    %v322 = vadd.f32 %v206, %v321
    %v323 = vpop.f32.mrf.mxu0
    %v324 = vadd.f32 %v210, %v323
    %325 = vmatprep.mubr.f32.mxu0 0.0
    %326 = vmatmul.mubr.f32.gmra.mxu0 %v145
    %v327 = vpop.f32.mrf.mxu0
    %v328 = vadd.f32 %v206, %v327
    %v329 = vpop.f32.mrf.mxu0
    %v330 = vadd.f32 %v210, %v329
    %331 = vmatprep.mubr.f32.mxu0 0.0
    %332 = vmatmul.mubr.f32.gmra.mxu0 %v146
    %v333 = vpop.f32.mrf.mxu0
    %v334 = vadd.f32 %v206, %v333
    %v335 = vpop.f32.mrf.mxu0
    %v336 = vadd.f32 %v210, %v335
    %337 = vmatprep.mubr.f32.mxu0 0.0
    %338 = vmatmul.mubr.f32.gmra.mxu0 %v147
    %v339 = vpop.f32.mrf.mxu0
    %v340 = vadd.f32 %v206, %v339
    %v341 = vpop.f32.mrf.mxu0
    %v342 = vadd.f32 %v210, %v341
    %343 = vmatprep.mubr.f32.mxu0 0.0
    %344 = vmatmul.mubr.f32.gmra.mxu0 %v148
    %v345 = vpop.f32.mrf.mxu0
    %v346 = vadd.f32 %v206, %v345
    %v347 = vpop.f32.mrf.mxu0
    %v348 = vadd.f32 %v210, %v347
    %349 = vmatprep.mubr.f32.mxu0 0.0
    %350 = vmatmul.mubr.f32.gmra.mxu0 %v149
    %v351 = vpop.f32.mrf.mxu0
    %v352 = vadd.f32 %v206, %v351
    %v353 = vpop.f32.mrf.mxu0
    %v354 = vadd.f32 %v210, %v353
    %355 = vmatprep.mubr.f32.mxu0 0.0
    %356 = vmatmul.mubr.f32.gmra.mxu0 %v150
    %v357 = vpop.f32.mrf.mxu0
    %v358 = vadd.f32 %v206, %v357
    %v359 = vpop.f32.mrf.mxu0
    %v360 = vadd.f32 %v210, %v359
    %361 = vmatprep.mubr.f32.mxu0 0.0
    %362 = vmatmul.mubr.f32.gmra.mxu0 %v151
    %v363 = vpop.f32.mrf.mxu0
    %v364 = vadd.f32 %v206, %v363
    %v365 = vpop.f32.mrf.mxu0
    %v366 = vadd.f32 %v210, %v365
    %367 = vmatprep.mubr.f32.mxu0 0.0
    %368 = vmatmul.mubr.f32.gmra.mxu0 %v152
    %v369 = vpop.f32.mrf.mxu0
    %v370 = vadd.f32 %v206, %v369
    %v371 = vpop.f32.mrf.mxu0
    %v372 = vadd.f32 %v210, %v371
    %373 = vmatprep.mubr.f32.mxu0 0.0
    %374 = vmatmul.mubr.f32.gmra.mxu0 %v153
    %v375 = vpop.f32.mrf.mxu0
    %v376 = vadd.f32 %v206, %v375
    %v377 = vpop.f32.mrf.mxu0
    %v378 = vadd.f32 %v210, %v377
    %379 = vmatprep.mubr.f32.mxu0 0.0
    %380 = vmatmul.mubr.f32.gmra.mxu0 %v154
    %v381 = vpop.f32.mrf.mxu0
    %v382 = vadd.f32 %v206, %v381
    %v383 = vpop.f32.mrf.mxu0
    %v384 = vadd.f32 %v210, %v383
    %385 = vmatprep.mubr.f32.mxu0 0.0
    %386 = vmatmul.mubr.f32.gmra.mxu0 %v155
    %v387 = vpop.f32.mrf.mxu0
    %v388 = vadd.f32 %v206, %v387
    %v389 = vpop.f32.mrf.mxu0
    %v390 = vadd.f32 %v210, %v389
    %391 = vmatprep.mubr.f32.mxu0 0.0
    %392 = vmatmul.mubr.f32.gmra.mxu0 %v156
    %v393 = vpop.f32.mrf.mxu0
    %v394 = vadd.f32 %v206, %v393
    %v395 = vpop.f32.mrf.mxu0
    %v396 = vadd.f32 %v210, %v395
    %397 = vmatprep.mubr.f32.mxu0 0.0
    %398 = vmatmul.mubr.f32.gmra.mxu0 %v157
    %v399 = vpop.f32.mrf.mxu0
    %v400 = vadd.f32 %v206, %v399
    %v401 = vpop.f32.mrf.mxu0
    %v402 = vadd.f32 %v210, %v401
    %403 = vmatprep.mubr.f32.mxu0 0.0
    %404 = vmatmul.mubr.f32.gmra.mxu0 %v158
    %v405 = vpop.f32.mrf.mxu0
    %v406 = vadd.f32 %v206, %v405
    %v407 = vpop.f32.mrf.mxu0
    %v408 = vadd.f32 %v210, %v407
    %409 = vmatprep.mubr.f32.mxu0 0.0
    %410 = vmatmul.mubr.f32.gmra.mxu0 %v159
    %v411 = vpop.f32.mrf.mxu0
    %v412 = vadd.f32 %v206, %v411
    %v413 = vpop.f32.mrf.mxu0
    %v414 = vadd.f32 %v210, %v413
    %415 = vmatprep.mubr.f32.mxu0 0.0
    %416 = vmatmul.mubr.f32.gmra.mxu0 %v160
    %v417 = vpop.f32.mrf.mxu0
    %v418 = vadd.f32 %v206, %v417
    %v419 = vpop.f32.mrf.mxu0
    %v420 = vadd.f32 %v210, %v419
    %421 = vmatprep.mubr.f32.mxu0 0.0
    %422 = vmatmul.mubr.f32.gmra.mxu0 %v161
    %v423 = vpop.f32.mrf.mxu0
    %v424 = vadd.f32 %v206, %v423
    %v425 = vpop.f32.mrf.mxu0
    %v426 = vadd.f32 %v210, %v425
    %427 = vmatprep.mubr.f32.mxu0 0.0
    %428 = vmatmul.mubr.f32.gmra.mxu0 %v162
    %v429 = vpop.f32.mrf.mxu0
    %v430 = vadd.f32 %v206, %v429
    %v431 = vpop.f32.mrf.mxu0
    %v432 = vadd.f32 %v210, %v431
    %433 = vmatprep.mubr.f32.mxu0 0.0
    %434 = vmatmul.mubr.f32.gmra.mxu0 %v163
    %v435 = vpop.f32.mrf.mxu0
    %v436 = vadd.f32 %v206, %v435
    %v437 = vpop.f32.mrf.mxu0
    %v438 = vadd.f32 %v210, %v437
    %439 = vmatprep.mubr.f32.mxu0 0.0
    %440 = vmatmul.mubr.f32.gmra.mxu0 %v164
    %v441 = vpop.f32.mrf.mxu0
    %v442 = vadd.f32 %v206, %v441
    %v443 = vpop.f32.mrf.mxu0
    %v444 = vadd.f32 %v210, %v443
    %445 = vmatprep.mubr.f32.mxu0 0.0
    %446 = vmatmul.mubr.f32.gmra.mxu0 %v165
    %v447 = vpop.f32.mrf.mxu0
    %v448 = vadd.f32 %v206, %v447
    %v449 = vpop.f32.mrf.mxu0
    %v450 = vadd.f32 %v210, %v449
    %451 = vmatprep.mubr.f32.mxu0 0.0
    %452 = vmatmul.mubr.f32.gmra.mxu0 %v166
    %v453 = vpop.f32.mrf.mxu0
    %v454 = vadd.f32 %v206, %v453
    %v455 = vpop.f32.mrf.mxu0
    %v456 = vadd.f32 %v210, %v455
    %457 = vmatprep.mubr.f32.mxu0 0.0
    %458 = vmatmul.mubr.f32.gmra.mxu0 %v167
    %v459 = vpop.f32.mrf.mxu0
    %v460 = vadd.f32 %v206, %v459
    %v461 = vpop.f32.mrf.mxu0
    %v462 = vadd.f32 %v210, %v461
    %463 = vmatprep.mubr.f32.mxu0 0.0
    %464 = vmatmul.mubr.f32.gmra.mxu0 %v168
    %v465 = vpop.f32.mrf.mxu0
    %v466 = vadd.f32 %v206, %v465
    %v467 = vpop.f32.mrf.mxu0
    %v468 = vadd.f32 %v210, %v467
    %469 = vdwg.mxu0
    %v470 = vmax.f32 %v280, 0.0
    %v471 = vmax.f32 %v282, 0.0
    %v472 = vmax.f32 %v286, 0.0
    %v473 = vmax.f32 %v288, 0.0
    %v474 = vmax.f32 %v292, 0.0
    %v475 = vmax.f32 %v294, 0.0
    %v476 = vmax.f32 %v298, 0.0
    %v477 = vmax.f32 %v300, 0.0
    %v478 = vmax.f32 %v304, 0.0
    %v479 = vmax.f32 %v306, 0.0
    %v480 = vmax.f32 %v310, 0.0
    %v481 = vmax.f32 %v312, 0.0
    %v482 = vmax.f32 %v316, 0.0
    %v483 = vmax.f32 %v318, 0.0
    %v484 = vmax.f32 %v322, 0.0
    %v485 = vmax.f32 %v324, 0.0
    %v486 = vmax.f32 %v328, 0.0
    %v487 = vmax.f32 %v330, 0.0
    %v488 = vmax.f32 %v334, 0.0
    %v489 = vmax.f32 %v336, 0.0
    %v490 = vmax.f32 %v340, 0.0
    %v491 = vmax.f32 %v342, 0.0
    %v492 = vmax.f32 %v346, 0.0
    %v493 = vmax.f32 %v348, 0.0
    %v494 = vmax.f32 %v352, 0.0
    %v495 = vmax.f32 %v354, 0.0
    %v496 = vmax.f32 %v358, 0.0
    %v497 = vmax.f32 %v360, 0.0
    %v498 = vmax.f32 %v364, 0.0
    %v499 = vmax.f32 %v366, 0.0
    %v500 = vmax.f32 %v370, 0.0
    %v501 = vmax.f32 %v372, 0.0
    %v502 = vmax.f32 %v376, 0.0
    %v503 = vmax.f32 %v378, 0.0
    %v504 = vmax.f32 %v382, 0.0
    %v505 = vmax.f32 %v384, 0.0
    %v506 = vmax.f32 %v388, 0.0
    %v507 = vmax.f32 %v390, 0.0
    %v508 = vmax.f32 %v394, 0.0
    %v509 = vmax.f32 %v396, 0.0
    %v510 = vmax.f32 %v400, 0.0
    %v511 = vmax.f32 %v402, 0.0
    %v512 = vmax.f32 %v406, 0.0
    %v513 = vmax.f32 %v408, 0.0
    %v514 = vmax.f32 %v412, 0.0
    %v515 = vmax.f32 %v414, 0.0
    %v516 = vmax.f32 %v418, 0.0
    %v517 = vmax.f32 %v420, 0.0
    %v518 = vmax.f32 %v424, 0.0
    %v519 = vmax.f32 %v426, 0.0
    %v520 = vmax.f32 %v430, 0.0
    %v521 = vmax.f32 %v432, 0.0
    %v522 = vmax.f32 %v436, 0.0
    %v523 = vmax.f32 %v438, 0.0
    %v524 = vmax.f32 %v442, 0.0
    %v525 = vmax.f32 %v444, 0.0
    %v526 = vmax.f32 %v448, 0.0
    %v527 = vmax.f32 %v450, 0.0
    %v528 = vmax.f32 %v454, 0.0
    %v529 = vmax.f32 %v456, 0.0
    %v530 = vmax.f32 %v460, 0.0
    %v531 = vmax.f32 %v462, 0.0
    %v532 = vmax.f32 %v466, 0.0
    %v533 = vmax.f32 %v468, 0.0
    %v534 = vld [vmem:[#allocation7] sm:$0xff]
    %v535 = vld [vmem:[#allocation7 + $0x8] sm:$0xff]
    %v536 = vld [vmem:[#allocation7 + $0x10] sm:$0xff]
    %v537 = vld [vmem:[#allocation7 + $0x18] sm:$0xff]
    %v538 = vld [vmem:[#allocation7 + $0x20] sm:$0xff]
    %v539 = vld [vmem:[#allocation7 + $0x28] sm:$0xff]
    %v540 = vld [vmem:[#allocation7 + $0x30] sm:$0xff]
    %v541 = vld [vmem:[#allocation7 + $0x38] sm:$0xff]
    %v542 = vld [vmem:[#allocation7 + $0x40] sm:$0xff]
    %v543 = vld [vmem:[#allocation7 + $0x48] sm:$0xff]
    %v544 = vld [vmem:[#allocation7 + $0x50] sm:$0xff]
    %v545 = vld [vmem:[#allocation7 + $0x58] sm:$0xff]
    %v546 = vld [vmem:[#allocation7 + $0x60] sm:$0xff]
    %v547 = vld [vmem:[#allocation7 + $0x68] sm:$0xff]
    %v548 = vld [vmem:[#allocation7 + $0x70] sm:$0xff]
    %v549 = vld [vmem:[#allocation7 + $0x78] sm:$0xff]
    %v550 = vld [vmem:[#allocation7 + $0x80] sm:$0xff]
    %v551 = vld [vmem:[#allocation7 + $0x88] sm:$0xff]
    %v552 = vld [vmem:[#allocation7 + $0x90] sm:$0xff]
    %v553 = vld [vmem:[#allocation7 + $0x98] sm:$0xff]
    %v554 = vld [vmem:[#allocation7 + $0xa0] sm:$0xff]
    %v555 = vld [vmem:[#allocation7 + $0xa8] sm:$0xff]
    %v556 = vld [vmem:[#allocation7 + $0xb0] sm:$0xff]
    %v557 = vld [vmem:[#allocation7 + $0xb8] sm:$0xff]
    %v558 = vld [vmem:[#allocation7 + $0xc0] sm:$0xff]
    %v559 = vld [vmem:[#allocation7 + $0xc8] sm:$0xff]
    %v560 = vld [vmem:[#allocation7 + $0xd0] sm:$0xff]
    %v561 = vld [vmem:[#allocation7 + $0xd8] sm:$0xff]
    %v562 = vld [vmem:[#allocation7 + $0xe0] sm:$0xff]
    %v563 = vld [vmem:[#allocation7 + $0xe8] sm:$0xff]
    %v564 = vld [vmem:[#allocation7 + $0xf0] sm:$0xff]
    %v565 = vld [vmem:[#allocation7 + $0xf8] sm:$0xff]
    %v566 = vld [vmem:[%s4] sm:$0x1]
    %v568 = vlaneseq
    %v569 = vshrl.u32 %v568, 7
    %v570 = vsub.s32 0, %v569
    %v571 = vrot.slane %v566, %v570
    %573 = vmatprep.subr.mxu0 0.0
    %574 = vmatpush1.msra.mxu0 %v549
    %575 = vmatprep.subr.mxu0 0.0
    %576 = vmatpush1.msra.mxu0 %v548
    %577 = vmatprep.subr.mxu0 0.0
    %578 = vmatpush1.msra.mxu0 %v547
    %579 = vmatprep.subr.mxu0 0.0
    %580 = vmatpush1.msra.mxu0 %v546
    %581 = vmatprep.subr.mxu0 0.0
    %582 = vmatpush1.msra.mxu0 %v545
    %583 = vmatprep.subr.mxu0 0.0
    %584 = vmatpush1.msra.mxu0 %v544
    %585 = vmatprep.subr.mxu0 0.0
    %586 = vmatpush1.msra.mxu0 %v543
    %587 = vmatprep.subr.mxu0 0.0
    %588 = vmatpush1.msra.mxu0 %v542
    %589 = vmatprep.subr.mxu0 0.0
    %590 = vmatpush1.msra.mxu0 %v541
    %591 = vmatprep.subr.mxu0 0.0
    %592 = vmatpush1.msra.mxu0 %v540
    %593 = vmatprep.subr.mxu0 0.0
    %594 = vmatpush1.msra.mxu0 %v539
    %595 = vmatprep.subr.mxu0 0.0
    %596 = vmatpush1.msra.mxu0 %v538
    %597 = vmatprep.subr.mxu0 0.0
    %598 = vmatpush1.msra.mxu0 %v537
    %599 = vmatprep.subr.mxu0 0.0
    %600 = vmatpush1.msra.mxu0 %v536
    %601 = vmatprep.subr.mxu0 0.0
    %602 = vmatpush1.msra.mxu0 %v535
    %603 = vmatprep.subr.mxu0 0.0
    %604 = vmatpush1.msra.mxu0 %v534
    %605 = vmatprep.subr.mxu0 0.0
    %606 = vmatpush2.msra.mxu0 %v565
    %607 = vmatprep.subr.mxu0 0.0
    %608 = vmatpush2.msra.mxu0 %v564
    %609 = vmatprep.subr.mxu0 0.0
    %610 = vmatpush2.msra.mxu0 %v563
    %611 = vmatprep.subr.mxu0 0.0
    %612 = vmatpush2.msra.mxu0 %v562
    %613 = vmatprep.subr.mxu0 0.0
    %614 = vmatpush2.msra.mxu0 %v561
    %615 = vmatprep.subr.mxu0 0.0
    %616 = vmatpush2.msra.mxu0 %v560
    %617 = vmatprep.subr.mxu0 0.0
    %618 = vmatpush2.msra.mxu0 %v559
    %619 = vmatprep.subr.mxu0 0.0
    %620 = vmatpush2.msra.mxu0 %v558
    %621 = vmatprep.subr.mxu0 0.0
    %622 = vmatpush2.msra.mxu0 %v557
    %623 = vmatprep.subr.mxu0 0.0
    %624 = vmatpush2.msra.mxu0 %v556
    %625 = vmatprep.subr.mxu0 0.0
    %626 = vmatpush2.msra.mxu0 %v555
    %627 = vmatprep.subr.mxu0 0.0
    %628 = vmatpush2.msra.mxu0 %v554
    %629 = vmatprep.subr.mxu0 0.0
    %630 = vmatpush2.msra.mxu0 %v553
    %631 = vmatprep.subr.mxu0 0.0
    %632 = vmatpush2.msra.mxu0 %v552
    %633 = vmatprep.subr.mxu0 0.0
    %634 = vmatpush2.msra.mxu0 %v551
    %635 = vmatprep.subr.mxu0 0.0
    %636 = vmatpush2.msra.mxu0 %v550
    %637 = vmatprep.mubr.f32.mxu0 %v471
    %638 = vmatmul.mubr.f32.gmra.mxu0 %v470
    %v639 = vpop.f32.mrf.mxu0
    %v640 = vadd.f32 %v571, %v639
    %v641 = vpop.f32.mrf.mxu0
    %642 = vmatprep.mubr.f32.mxu0 %v473
    %643 = vmatmul.mubr.f32.gmra.mxu0 %v472
    %v644 = vpop.f32.mrf.mxu0
    %v645 = vadd.f32 %v571, %v644
    %v646 = vpop.f32.mrf.mxu0
    %647 = vmatprep.mubr.f32.mxu0 %v475
    %648 = vmatmul.mubr.f32.gmra.mxu0 %v474
    %v649 = vpop.f32.mrf.mxu0
    %v650 = vadd.f32 %v571, %v649
    %v651 = vpop.f32.mrf.mxu0
    %652 = vmatprep.mubr.f32.mxu0 %v477
    %653 = vmatmul.mubr.f32.gmra.mxu0 %v476
    %v654 = vpop.f32.mrf.mxu0
    %v655 = vadd.f32 %v571, %v654
    %v656 = vpop.f32.mrf.mxu0
    %657 = vmatprep.mubr.f32.mxu0 %v479
    %658 = vmatmul.mubr.f32.gmra.mxu0 %v478
    %v659 = vpop.f32.mrf.mxu0
    %v660 = vadd.f32 %v571, %v659
    %v661 = vpop.f32.mrf.mxu0
    %662 = vmatprep.mubr.f32.mxu0 %v481
    %663 = vmatmul.mubr.f32.gmra.mxu0 %v480
    %v664 = vpop.f32.mrf.mxu0
    %v665 = vadd.f32 %v571, %v664
    %v666 = vpop.f32.mrf.mxu0
    %667 = vmatprep.mubr.f32.mxu0 %v483
    %668 = vmatmul.mubr.f32.gmra.mxu0 %v482
    %v669 = vpop.f32.mrf.mxu0
    %v670 = vadd.f32 %v571, %v669
    %v671 = vpop.f32.mrf.mxu0
    %672 = vmatprep.mubr.f32.mxu0 %v485
    %673 = vmatmul.mubr.f32.gmra.mxu0 %v484
    %v674 = vpop.f32.mrf.mxu0
    %v675 = vadd.f32 %v571, %v674
    %v676 = vpop.f32.mrf.mxu0
    %677 = vmatprep.mubr.f32.mxu0 %v487
    %678 = vmatmul.mubr.f32.gmra.mxu0 %v486
    %v679 = vpop.f32.mrf.mxu0
    %v680 = vadd.f32 %v571, %v679
    %v681 = vpop.f32.mrf.mxu0
    %682 = vmatprep.mubr.f32.mxu0 %v489
    %683 = vmatmul.mubr.f32.gmra.mxu0 %v488
    %v684 = vpop.f32.mrf.mxu0
    %v685 = vadd.f32 %v571, %v684
    %v686 = vpop.f32.mrf.mxu0
    %687 = vmatprep.mubr.f32.mxu0 %v491
    %688 = vmatmul.mubr.f32.gmra.mxu0 %v490
    %v689 = vpop.f32.mrf.mxu0
    %v690 = vadd.f32 %v571, %v689
    %v691 = vpop.f32.mrf.mxu0
    %692 = vmatprep.mubr.f32.mxu0 %v493
    %693 = vmatmul.mubr.f32.gmra.mxu0 %v492
    %v694 = vpop.f32.mrf.mxu0
    %v695 = vadd.f32 %v571, %v694
    %v696 = vpop.f32.mrf.mxu0
    %697 = vmatprep.mubr.f32.mxu0 %v495
    %698 = vmatmul.mubr.f32.gmra.mxu0 %v494
    %v699 = vpop.f32.mrf.mxu0
    %v700 = vadd.f32 %v571, %v699
    %v701 = vpop.f32.mrf.mxu0
    %702 = vmatprep.mubr.f32.mxu0 %v497
    %703 = vmatmul.mubr.f32.gmra.mxu0 %v496
    %v704 = vpop.f32.mrf.mxu0
    %v705 = vadd.f32 %v571, %v704
    %v706 = vpop.f32.mrf.mxu0
    %707 = vmatprep.mubr.f32.mxu0 %v499
    %708 = vmatmul.mubr.f32.gmra.mxu0 %v498
    %v709 = vpop.f32.mrf.mxu0
    %v710 = vadd.f32 %v571, %v709
    %v711 = vpop.f32.mrf.mxu0
    %712 = vmatprep.mubr.f32.mxu0 %v501
    %713 = vmatmul.mubr.f32.gmra.mxu0 %v500
    %v714 = vpop.f32.mrf.mxu0
    %v715 = vadd.f32 %v571, %v714
    %v716 = vpop.f32.mrf.mxu0
    %717 = vmatprep.mubr.f32.mxu0 %v503
    %718 = vmatmul.mubr.f32.gmra.mxu0 %v502
    %v719 = vpop.f32.mrf.mxu0
    %v720 = vadd.f32 %v571, %v719
    %v721 = vpop.f32.mrf.mxu0
    %722 = vmatprep.mubr.f32.mxu0 %v505
    %723 = vmatmul.mubr.f32.gmra.mxu0 %v504
    %v724 = vpop.f32.mrf.mxu0
    %v725 = vadd.f32 %v571, %v724
    %v726 = vpop.f32.mrf.mxu0
    %727 = vmatprep.mubr.f32.mxu0 %v507
    %728 = vmatmul.mubr.f32.gmra.mxu0 %v506
    %v729 = vpop.f32.mrf.mxu0
    %v730 = vadd.f32 %v571, %v729
    %v731 = vpop.f32.mrf.mxu0
    %732 = vmatprep.mubr.f32.mxu0 %v509
    %733 = vmatmul.mubr.f32.gmra.mxu0 %v508
    %v734 = vpop.f32.mrf.mxu0
    %v735 = vadd.f32 %v571, %v734
    %v736 = vpop.f32.mrf.mxu0
    %737 = vmatprep.mubr.f32.mxu0 %v511
    %738 = vmatmul.mubr.f32.gmra.mxu0 %v510
    %v739 = vpop.f32.mrf.mxu0
    %v740 = vadd.f32 %v571, %v739
    %v741 = vpop.f32.mrf.mxu0
    %742 = vmatprep.mubr.f32.mxu0 %v513
    %743 = vmatmul.mubr.f32.gmra.mxu0 %v512
    %v744 = vpop.f32.mrf.mxu0
    %v745 = vadd.f32 %v571, %v744
    %v746 = vpop.f32.mrf.mxu0
    %747 = vmatprep.mubr.f32.mxu0 %v515
    %748 = vmatmul.mubr.f32.gmra.mxu0 %v514
    %v749 = vpop.f32.mrf.mxu0
    %v750 = vadd.f32 %v571, %v749
    %v751 = vpop.f32.mrf.mxu0
    %752 = vmatprep.mubr.f32.mxu0 %v517
    %753 = vmatmul.mubr.f32.gmra.mxu0 %v516
    %v754 = vpop.f32.mrf.mxu0
    %v755 = vadd.f32 %v571, %v754
    %v756 = vpop.f32.mrf.mxu0
    %757 = vmatprep.mubr.f32.mxu0 %v519
    %758 = vmatmul.mubr.f32.gmra.mxu0 %v518
    %v759 = vpop.f32.mrf.mxu0
    %v760 = vadd.f32 %v571, %v759
    %v761 = vpop.f32.mrf.mxu0
    %762 = vmatprep.mubr.f32.mxu0 %v521
    %763 = vmatmul.mubr.f32.gmra.mxu0 %v520
    %v764 = vpop.f32.mrf.mxu0
    %v765 = vadd.f32 %v571, %v764
    %v766 = vpop.f32.mrf.mxu0
    %767 = vmatprep.mubr.f32.mxu0 %v523
    %768 = vmatmul.mubr.f32.gmra.mxu0 %v522
    %v769 = vpop.f32.mrf.mxu0
    %v770 = vadd.f32 %v571, %v769
    %v771 = vpop.f32.mrf.mxu0
    %772 = vmatprep.mubr.f32.mxu0 %v525
    %773 = vmatmul.mubr.f32.gmra.mxu0 %v524
    %v774 = vpop.f32.mrf.mxu0
    %v775 = vadd.f32 %v571, %v774
    %v776 = vpop.f32.mrf.mxu0
    %777 = vmatprep.mubr.f32.mxu0 %v527
    %778 = vmatmul.mubr.f32.gmra.mxu0 %v526
    %v779 = vpop.f32.mrf.mxu0
    %v780 = vadd.f32 %v571, %v779
    %v781 = vpop.f32.mrf.mxu0
    %782 = vmatprep.mubr.f32.mxu0 %v529
    %783 = vmatmul.mubr.f32.gmra.mxu0 %v528
    %v784 = vpop.f32.mrf.mxu0
    %v785 = vadd.f32 %v571, %v784
    %v786 = vpop.f32.mrf.mxu0
    %787 = vmatprep.mubr.f32.mxu0 %v531
    %788 = vmatmul.mubr.f32.gmra.mxu0 %v530
    %v789 = vpop.f32.mrf.mxu0
    %v790 = vadd.f32 %v571, %v789
    %v791 = vpop.f32.mrf.mxu0
    %792 = vmatprep.mubr.f32.mxu0 %v533
    %793 = vmatmul.mubr.f32.gmra.mxu0 %v532
    %v794 = vpop.f32.mrf.mxu0
    %v795 = vadd.f32 %v571, %v794
    %v796 = vpop.f32.mrf.mxu0
    %797 = vdwg.mxu0
    %v798 = vmax.f32 %v640, 0.0
    %v799 = vmax.f32 %v645, 0.0
    %v800 = vmax.f32 %v650, 0.0
    %v801 = vmax.f32 %v655, 0.0
    %v802 = vmax.f32 %v660, 0.0
    %v803 = vmax.f32 %v665, 0.0
    %v804 = vmax.f32 %v670, 0.0
    %v805 = vmax.f32 %v675, 0.0
    %v806 = vmax.f32 %v680, 0.0
    %v807 = vmax.f32 %v685, 0.0
    %v808 = vmax.f32 %v690, 0.0
    %v809 = vmax.f32 %v695, 0.0
    %v810 = vmax.f32 %v700, 0.0
    %v811 = vmax.f32 %v705, 0.0
    %v812 = vmax.f32 %v710, 0.0
    %v813 = vmax.f32 %v715, 0.0
    %v814 = vmax.f32 %v720, 0.0
    %v815 = vmax.f32 %v725, 0.0
    %v816 = vmax.f32 %v730, 0.0
    %v817 = vmax.f32 %v735, 0.0
    %v818 = vmax.f32 %v740, 0.0
    %v819 = vmax.f32 %v745, 0.0
    %v820 = vmax.f32 %v750, 0.0
    %v821 = vmax.f32 %v755, 0.0
    %v822 = vmax.f32 %v760, 0.0
    %v823 = vmax.f32 %v765, 0.0
    %v824 = vmax.f32 %v770, 0.0
    %v825 = vmax.f32 %v775, 0.0
    %v826 = vmax.f32 %v780, 0.0
    %v827 = vmax.f32 %v785, 0.0
    %v828 = vmax.f32 %v790, 0.0
    %v829 = vmax.f32 %v795, 0.0
    %v830 = vld [vmem:[#allocation8] sm:$0xff]
    %v831 = vld [vmem:[#allocation8 + $0x8] sm:$0xff]
    %v832 = vld [vmem:[#allocation8 + $0x10] sm:$0xff]
    %v833 = vld [vmem:[#allocation8 + $0x18] sm:$0xff]
    %v834 = vld [vmem:[#allocation8 + $0x20] sm:$0xff]
    %v835 = vld [vmem:[#allocation8 + $0x28] sm:$0xff]
    %v836 = vld [vmem:[#allocation8 + $0x30] sm:$0xff]
    %v837 = vld [vmem:[#allocation8 + $0x38] sm:$0xff]
    %v838 = vld [vmem:[#allocation8 + $0x40] sm:$0xff]
    %v839 = vld [vmem:[#allocation8 + $0x48] sm:$0xff]
    %v840 = vld [vmem:[#allocation8 + $0x50] sm:$0xff]
    %v841 = vld [vmem:[#allocation8 + $0x58] sm:$0xff]
    %v842 = vld [vmem:[#allocation8 + $0x60] sm:$0xff]
    %v843 = vld [vmem:[#allocation8 + $0x68] sm:$0xff]
    %v844 = vld [vmem:[#allocation8 + $0x70] sm:$0xff]
    %v845 = vld [vmem:[#allocation8 + $0x78] sm:$0xff]
    %v846 = vld [vmem:[#allocation8 + $0x80] sm:$0xff]
    %v847 = vld [vmem:[#allocation8 + $0x88] sm:$0xff]
    %v848 = vld [vmem:[#allocation8 + $0x90] sm:$0xff]
    %v849 = vld [vmem:[#allocation8 + $0x98] sm:$0xff]
    %v850 = vld [vmem:[#allocation8 + $0xa0] sm:$0xff]
    %v851 = vld [vmem:[#allocation8 + $0xa8] sm:$0xff]
    %v852 = vld [vmem:[#allocation8 + $0xb0] sm:$0xff]
    %v853 = vld [vmem:[#allocation8 + $0xb8] sm:$0xff]
    %v854 = vld [vmem:[#allocation8 + $0xc0] sm:$0xff]
    %v855 = vld [vmem:[#allocation8 + $0xc8] sm:$0xff]
    %v856 = vld [vmem:[#allocation8 + $0xd0] sm:$0xff]
    %v857 = vld [vmem:[#allocation8 + $0xd8] sm:$0xff]
    %v858 = vld [vmem:[#allocation8 + $0xe0] sm:$0xff]
    %v859 = vld [vmem:[#allocation8 + $0xe8] sm:$0xff]
    %v860 = vld [vmem:[#allocation8 + $0xf0] sm:$0xff]
    %v861 = vld [vmem:[#allocation8 + $0xf8] sm:$0xff]
    %v862 = vld [vmem:[%s6] sm:$0x3]
    %v864 = vlaneseq
    %v865 = vshrl.u32 %v864, 7
    %v866 = vsub.s32 0, %v865
    %v867 = vrot.slane %v862, %v866
    %v868 = vlaneseq
    %v869 = vshrl.u32 %v868, 7
    %v870 = vsub.s32 1, %v869
    %v871 = vrot.slane %v862, %v870
    %874 = vmatprep.subr.mxu0 %v861
    %875 = vmatpush1.msra.mxu0 %v860
    %876 = vmatprep.subr.mxu0 %v859
    %877 = vmatpush1.msra.mxu0 %v858
    %878 = vmatprep.subr.mxu0 %v857
    %879 = vmatpush1.msra.mxu0 %v856
    %880 = vmatprep.subr.mxu0 %v855
    %881 = vmatpush1.msra.mxu0 %v854
    %882 = vmatprep.subr.mxu0 %v853
    %883 = vmatpush1.msra.mxu0 %v852
    %884 = vmatprep.subr.mxu0 %v851
    %885 = vmatpush1.msra.mxu0 %v850
    %886 = vmatprep.subr.mxu0 %v849
    %887 = vmatpush1.msra.mxu0 %v848
    %888 = vmatprep.subr.mxu0 %v847
    %889 = vmatpush1.msra.mxu0 %v846
    %890 = vmatprep.subr.mxu0 %v845
    %891 = vmatpush1.msra.mxu0 %v844
    %892 = vmatprep.subr.mxu0 %v843
    %893 = vmatpush1.msra.mxu0 %v842
    %894 = vmatprep.subr.mxu0 %v841
    %895 = vmatpush1.msra.mxu0 %v840
    %896 = vmatprep.subr.mxu0 %v839
    %897 = vmatpush1.msra.mxu0 %v838
    %898 = vmatprep.subr.mxu0 %v837
    %899 = vmatpush1.msra.mxu0 %v836
    %900 = vmatprep.subr.mxu0 %v835
    %901 = vmatpush1.msra.mxu0 %v834
    %902 = vmatprep.subr.mxu0 %v833
    %903 = vmatpush1.msra.mxu0 %v832
    %904 = vmatprep.subr.mxu0 %v831
    %905 = vmatpush1.msra.mxu0 %v830
    %906 = vmatprep.subr.mxu0 0.0
    %907 = vmatpush2.msra.mxu0 0.0
    %908 = vmatprep.subr.mxu0 0.0
    %909 = vmatpush2.msra.mxu0 0.0
    %910 = vmatprep.subr.mxu0 0.0
    %911 = vmatpush2.msra.mxu0 0.0
    %912 = vmatprep.subr.mxu0 0.0
    %913 = vmatpush2.msra.mxu0 0.0
    %914 = vmatprep.subr.mxu0 0.0
    %915 = vmatpush2.msra.mxu0 0.0
    %916 = vmatprep.subr.mxu0 0.0
    %917 = vmatpush2.msra.mxu0 0.0
    %918 = vmatprep.subr.mxu0 0.0
    %919 = vmatpush2.msra.mxu0 0.0
    %920 = vmatprep.subr.mxu0 0.0
    %921 = vmatpush2.msra.mxu0 0.0
    %922 = vmatprep.subr.mxu0 0.0
    %923 = vmatpush2.msra.mxu0 0.0
    %924 = vmatprep.subr.mxu0 0.0
    %925 = vmatpush2.msra.mxu0 0.0
    %926 = vmatprep.subr.mxu0 0.0
    %927 = vmatpush2.msra.mxu0 0.0
    %928 = vmatprep.subr.mxu0 0.0
    %929 = vmatpush2.msra.mxu0 0.0
    %930 = vmatprep.subr.mxu0 0.0
    %931 = vmatpush2.msra.mxu0 0.0
    %932 = vmatprep.subr.mxu0 0.0
    %933 = vmatpush2.msra.mxu0 0.0
    %934 = vmatprep.subr.mxu0 0.0
    %935 = vmatpush2.msra.mxu0 0.0
    %936 = vmatprep.subr.mxu0 0.0
    %937 = vmatpush2.msra.mxu0 0.0
    %938 = vmatprep.mubr.f32.mxu0 0.0
    %939 = vmatmul.mubr.f32.gmra.mxu0 %v798
    %v940 = vpop.f32.mrf.mxu0
    %v941 = vadd.f32 %v867, %v940
    %v942 = vpop.f32.mrf.mxu0
    %v943 = vadd.f32 %v871, %v942
    %944 = vmatprep.mubr.f32.mxu0 0.0
    %945 = vmatmul.mubr.f32.gmra.mxu0 %v799
    %v946 = vpop.f32.mrf.mxu0
    %v947 = vadd.f32 %v867, %v946
    %v948 = vpop.f32.mrf.mxu0
    %v949 = vadd.f32 %v871, %v948
    %950 = vmatprep.mubr.f32.mxu0 0.0
    %951 = vmatmul.mubr.f32.gmra.mxu0 %v800
    %v952 = vpop.f32.mrf.mxu0
    %v953 = vadd.f32 %v867, %v952
    %v954 = vpop.f32.mrf.mxu0
    %v955 = vadd.f32 %v871, %v954
    %956 = vmatprep.mubr.f32.mxu0 0.0
    %957 = vmatmul.mubr.f32.gmra.mxu0 %v801
    %v958 = vpop.f32.mrf.mxu0
    %v959 = vadd.f32 %v867, %v958
    %v960 = vpop.f32.mrf.mxu0
    %v961 = vadd.f32 %v871, %v960
    %962 = vmatprep.mubr.f32.mxu0 0.0
    %963 = vmatmul.mubr.f32.gmra.mxu0 %v802
    %v964 = vpop.f32.mrf.mxu0
    %v965 = vadd.f32 %v867, %v964
    %v966 = vpop.f32.mrf.mxu0
    %v967 = vadd.f32 %v871, %v966
    %968 = vmatprep.mubr.f32.mxu0 0.0
    %969 = vmatmul.mubr.f32.gmra.mxu0 %v803
    %v970 = vpop.f32.mrf.mxu0
    %v971 = vadd.f32 %v867, %v970
    %v972 = vpop.f32.mrf.mxu0
    %v973 = vadd.f32 %v871, %v972
    %974 = vmatprep.mubr.f32.mxu0 0.0
    %975 = vmatmul.mubr.f32.gmra.mxu0 %v804
    %v976 = vpop.f32.mrf.mxu0
    %v977 = vadd.f32 %v867, %v976
    %v978 = vpop.f32.mrf.mxu0
    %v979 = vadd.f32 %v871, %v978
    %980 = vmatprep.mubr.f32.mxu0 0.0
    %981 = vmatmul.mubr.f32.gmra.mxu0 %v805
    %v982 = vpop.f32.mrf.mxu0
    %v983 = vadd.f32 %v867, %v982
    %v984 = vpop.f32.mrf.mxu0
    %v985 = vadd.f32 %v871, %v984
    %986 = vmatprep.mubr.f32.mxu0 0.0
    %987 = vmatmul.mubr.f32.gmra.mxu0 %v806
    %v988 = vpop.f32.mrf.mxu0
    %v989 = vadd.f32 %v867, %v988
    %v990 = vpop.f32.mrf.mxu0
    %v991 = vadd.f32 %v871, %v990
    %992 = vmatprep.mubr.f32.mxu0 0.0
    %993 = vmatmul.mubr.f32.gmra.mxu0 %v807
    %v994 = vpop.f32.mrf.mxu0
    %v995 = vadd.f32 %v867, %v994
    %v996 = vpop.f32.mrf.mxu0
    %v997 = vadd.f32 %v871, %v996
    %998 = vmatprep.mubr.f32.mxu0 0.0
    %999 = vmatmul.mubr.f32.gmra.mxu0 %v808
    %v1000 = vpop.f32.mrf.mxu0
    %v1001 = vadd.f32 %v867, %v1000
    %v1002 = vpop.f32.mrf.mxu0
    %v1003 = vadd.f32 %v871, %v1002
    %1004 = vmatprep.mubr.f32.mxu0 0.0
    %1005 = vmatmul.mubr.f32.gmra.mxu0 %v809
    %v1006 = vpop.f32.mrf.mxu0
    %v1007 = vadd.f32 %v867, %v1006
    %v1008 = vpop.f32.mrf.mxu0
    %v1009 = vadd.f32 %v871, %v1008
    %1010 = vmatprep.mubr.f32.mxu0 0.0
    %1011 = vmatmul.mubr.f32.gmra.mxu0 %v810
    %v1012 = vpop.f32.mrf.mxu0
    %v1013 = vadd.f32 %v867, %v1012
    %v1014 = vpop.f32.mrf.mxu0
    %v1015 = vadd.f32 %v871, %v1014
    %1016 = vmatprep.mubr.f32.mxu0 0.0
    %1017 = vmatmul.mubr.f32.gmra.mxu0 %v811
    %v1018 = vpop.f32.mrf.mxu0
    %v1019 = vadd.f32 %v867, %v1018
    %v1020 = vpop.f32.mrf.mxu0
    %v1021 = vadd.f32 %v871, %v1020
    %1022 = vmatprep.mubr.f32.mxu0 0.0
    %1023 = vmatmul.mubr.f32.gmra.mxu0 %v812
    %v1024 = vpop.f32.mrf.mxu0
    %v1025 = vadd.f32 %v867, %v1024
    %v1026 = vpop.f32.mrf.mxu0
    %v1027 = vadd.f32 %v871, %v1026
    %1028 = vmatprep.mubr.f32.mxu0 0.0
    %1029 = vmatmul.mubr.f32.gmra.mxu0 %v813
    %v1030 = vpop.f32.mrf.mxu0
    %v1031 = vadd.f32 %v867, %v1030
    %v1032 = vpop.f32.mrf.mxu0
    %v1033 = vadd.f32 %v871, %v1032
    %1034 = vmatprep.mubr.f32.mxu0 0.0
    %1035 = vmatmul.mubr.f32.gmra.mxu0 %v814
    %v1036 = vpop.f32.mrf.mxu0
    %v1037 = vadd.f32 %v867, %v1036
    %v1038 = vpop.f32.mrf.mxu0
    %v1039 = vadd.f32 %v871, %v1038
    %1040 = vmatprep.mubr.f32.mxu0 0.0
    %1041 = vmatmul.mubr.f32.gmra.mxu0 %v815
    %v1042 = vpop.f32.mrf.mxu0
    %v1043 = vadd.f32 %v867, %v1042
    %v1044 = vpop.f32.mrf.mxu0
    %v1045 = vadd.f32 %v871, %v1044
    %1046 = vmatprep.mubr.f32.mxu0 0.0
    %1047 = vmatmul.mubr.f32.gmra.mxu0 %v816
    %v1048 = vpop.f32.mrf.mxu0
    %v1049 = vadd.f32 %v867, %v1048
    %v1050 = vpop.f32.mrf.mxu0
    %v1051 = vadd.f32 %v871, %v1050
    %1052 = vmatprep.mubr.f32.mxu0 0.0
    %1053 = vmatmul.mubr.f32.gmra.mxu0 %v817
    %v1054 = vpop.f32.mrf.mxu0
    %v1055 = vadd.f32 %v867, %v1054
    %v1056 = vpop.f32.mrf.mxu0
    %v1057 = vadd.f32 %v871, %v1056
    %1058 = vmatprep.mubr.f32.mxu0 0.0
    %1059 = vmatmul.mubr.f32.gmra.mxu0 %v818
    %v1060 = vpop.f32.mrf.mxu0
    %v1061 = vadd.f32 %v867, %v1060
    %v1062 = vpop.f32.mrf.mxu0
    %v1063 = vadd.f32 %v871, %v1062
    %1064 = vmatprep.mubr.f32.mxu0 0.0
    %1065 = vmatmul.mubr.f32.gmra.mxu0 %v819
    %v1066 = vpop.f32.mrf.mxu0
    %v1067 = vadd.f32 %v867, %v1066
    %v1068 = vpop.f32.mrf.mxu0
    %v1069 = vadd.f32 %v871, %v1068
    %1070 = vmatprep.mubr.f32.mxu0 0.0
    %1071 = vmatmul.mubr.f32.gmra.mxu0 %v820
    %v1072 = vpop.f32.mrf.mxu0
    %v1073 = vadd.f32 %v867, %v1072
    %v1074 = vpop.f32.mrf.mxu0
    %v1075 = vadd.f32 %v871, %v1074
    %1076 = vmatprep.mubr.f32.mxu0 0.0
    %1077 = vmatmul.mubr.f32.gmra.mxu0 %v821
    %v1078 = vpop.f32.mrf.mxu0
    %v1079 = vadd.f32 %v867, %v1078
    %v1080 = vpop.f32.mrf.mxu0
    %v1081 = vadd.f32 %v871, %v1080
    %1082 = vmatprep.mubr.f32.mxu0 0.0
    %1083 = vmatmul.mubr.f32.gmra.mxu0 %v822
    %v1084 = vpop.f32.mrf.mxu0
    %v1085 = vadd.f32 %v867, %v1084
    %v1086 = vpop.f32.mrf.mxu0
    %v1087 = vadd.f32 %v871, %v1086
    %1088 = vmatprep.mubr.f32.mxu0 0.0
    %1089 = vmatmul.mubr.f32.gmra.mxu0 %v823
    %v1090 = vpop.f32.mrf.mxu0
    %v1091 = vadd.f32 %v867, %v1090
    %v1092 = vpop.f32.mrf.mxu0
    %v1093 = vadd.f32 %v871, %v1092
    %1094 = vmatprep.mubr.f32.mxu0 0.0
    %1095 = vmatmul.mubr.f32.gmra.mxu0 %v824
    %v1096 = vpop.f32.mrf.mxu0
    %v1097 = vadd.f32 %v867, %v1096
    %v1098 = vpop.f32.mrf.mxu0
    %v1099 = vadd.f32 %v871, %v1098
    %1100 = vmatprep.mubr.f32.mxu0 0.0
    %1101 = vmatmul.mubr.f32.gmra.mxu0 %v825
    %v1102 = vpop.f32.mrf.mxu0
    %v1103 = vadd.f32 %v867, %v1102
    %v1104 = vpop.f32.mrf.mxu0
    %v1105 = vadd.f32 %v871, %v1104
    %1106 = vmatprep.mubr.f32.mxu0 0.0
    %1107 = vmatmul.mubr.f32.gmra.mxu0 %v826
    %v1108 = vpop.f32.mrf.mxu0
    %v1109 = vadd.f32 %v867, %v1108
    %v1110 = vpop.f32.mrf.mxu0
    %v1111 = vadd.f32 %v871, %v1110
    %1112 = vmatprep.mubr.f32.mxu0 0.0
    %1113 = vmatmul.mubr.f32.gmra.mxu0 %v827
    %v1114 = vpop.f32.mrf.mxu0
    %v1115 = vadd.f32 %v867, %v1114
    %v1116 = vpop.f32.mrf.mxu0
    %v1117 = vadd.f32 %v871, %v1116
    %1118 = vmatprep.mubr.f32.mxu0 0.0
    %1119 = vmatmul.mubr.f32.gmra.mxu0 %v828
    %v1120 = vpop.f32.mrf.mxu0
    %v1121 = vadd.f32 %v867, %v1120
    %v1122 = vpop.f32.mrf.mxu0
    %v1123 = vadd.f32 %v871, %v1122
    %1124 = vmatprep.mubr.f32.mxu0 0.0
    %1125 = vmatmul.mubr.f32.gmra.mxu0 %v829
    %v1126 = vpop.f32.mrf.mxu0
    %v1127 = vadd.f32 %v867, %v1126
    %v1128 = vpop.f32.mrf.mxu0
    %v1129 = vadd.f32 %v871, %v1128
    %1130 = vdwg.mxu0
    %v1131 = vmax.f32 %v941, 0.0
    %v1132 = vmax.f32 %v943, 0.0
    %v1133 = vmax.f32 %v947, 0.0
    %v1134 = vmax.f32 %v949, 0.0
    %v1135 = vmax.f32 %v953, 0.0
    %v1136 = vmax.f32 %v955, 0.0
    %v1137 = vmax.f32 %v959, 0.0
    %v1138 = vmax.f32 %v961, 0.0
    %v1139 = vmax.f32 %v965, 0.0
    %v1140 = vmax.f32 %v967, 0.0
    %v1141 = vmax.f32 %v971, 0.0
    %v1142 = vmax.f32 %v973, 0.0
    %v1143 = vmax.f32 %v977, 0.0
    %v1144 = vmax.f32 %v979, 0.0
    %v1145 = vmax.f32 %v983, 0.0
    %v1146 = vmax.f32 %v985, 0.0
    %v1147 = vmax.f32 %v989, 0.0
    %v1148 = vmax.f32 %v991, 0.0
    %v1149 = vmax.f32 %v995, 0.0
    %v1150 = vmax.f32 %v997, 0.0
    %v1151 = vmax.f32 %v1001, 0.0
    %v1152 = vmax.f32 %v1003, 0.0
    %v1153 = vmax.f32 %v1007, 0.0
    %v1154 = vmax.f32 %v1009, 0.0
    %v1155 = vmax.f32 %v1013, 0.0
    %v1156 = vmax.f32 %v1015, 0.0
    %v1157 = vmax.f32 %v1019, 0.0
    %v1158 = vmax.f32 %v1021, 0.0
    %v1159 = vmax.f32 %v1025, 0.0
    %v1160 = vmax.f32 %v1027, 0.0
    %v1161 = vmax.f32 %v1031, 0.0
    %v1162 = vmax.f32 %v1033, 0.0
    %v1163 = vmax.f32 %v1037, 0.0
    %v1164 = vmax.f32 %v1039, 0.0
    %v1165 = vmax.f32 %v1043, 0.0
    %v1166 = vmax.f32 %v1045, 0.0
    %v1167 = vmax.f32 %v1049, 0.0
    %v1168 = vmax.f32 %v1051, 0.0
    %v1169 = vmax.f32 %v1055, 0.0
    %v1170 = vmax.f32 %v1057, 0.0
    %v1171 = vmax.f32 %v1061, 0.0
    %v1172 = vmax.f32 %v1063, 0.0
    %v1173 = vmax.f32 %v1067, 0.0
    %v1174 = vmax.f32 %v1069, 0.0
    %v1175 = vmax.f32 %v1073, 0.0
    %v1176 = vmax.f32 %v1075, 0.0
    %v1177 = vmax.f32 %v1079, 0.0
    %v1178 = vmax.f32 %v1081, 0.0
    %v1179 = vmax.f32 %v1085, 0.0
    %v1180 = vmax.f32 %v1087, 0.0
    %v1181 = vmax.f32 %v1091, 0.0
    %v1182 = vmax.f32 %v1093, 0.0
    %v1183 = vmax.f32 %v1097, 0.0
    %v1184 = vmax.f32 %v1099, 0.0
    %v1185 = vmax.f32 %v1103, 0.0
    %v1186 = vmax.f32 %v1105, 0.0
    %v1187 = vmax.f32 %v1109, 0.0
    %v1188 = vmax.f32 %v1111, 0.0
    %v1189 = vmax.f32 %v1115, 0.0
    %v1190 = vmax.f32 %v1117, 0.0
    %v1191 = vmax.f32 %v1121, 0.0
    %v1192 = vmax.f32 %v1123, 0.0
    %v1193 = vmax.f32 %v1127, 0.0
    %v1194 = vmax.f32 %v1129, 0.0
    %v1195 = vld [vmem:[#allocation10] sm:$0xff]
    %v1196 = vld [vmem:[#allocation10 + $0x8] sm:$0xff]
    %v1197 = vld [vmem:[#allocation10 + $0x10] sm:$0xff]
    %v1198 = vld [vmem:[#allocation10 + $0x18] sm:$0xff]
    %v1199 = vld [vmem:[#allocation10 + $0x20] sm:$0xff]
    %v1200 = vld [vmem:[#allocation10 + $0x28] sm:$0xff]
    %v1201 = vld [vmem:[#allocation10 + $0x30] sm:$0xff]
    %v1202 = vld [vmem:[#allocation10 + $0x38] sm:$0xff]
    %v1203 = vld [vmem:[#allocation10 + $0x40] sm:$0xff]
    %v1204 = vld [vmem:[#allocation10 + $0x48] sm:$0xff]
    %v1205 = vld [vmem:[#allocation10 + $0x50] sm:$0xff]
    %v1206 = vld [vmem:[#allocation10 + $0x58] sm:$0xff]
    %v1207 = vld [vmem:[#allocation10 + $0x60] sm:$0xff]
    %v1208 = vld [vmem:[#allocation10 + $0x68] sm:$0xff]
    %v1209 = vld [vmem:[#allocation10 + $0x70] sm:$0xff]
    %v1210 = vld [vmem:[#allocation10 + $0x78] sm:$0xff]
    %v1211 = vld [vmem:[%s8] sm:$0x1]
    %v1213 = vlaneseq
    %v1214 = vshrl.u32 %v1213, 7
    %v1215 = vsub.s32 0, %v1214
    %v1216 = vrot.slane %v1211, %v1215
    %1218 = vmatprep.subr.mxu0 0.0
    %1219 = vmatpush1.msra.mxu0 %v1210
    %1220 = vmatprep.subr.mxu0 0.0
    %1221 = vmatpush1.msra.mxu0 %v1209
    %1222 = vmatprep.subr.mxu0 0.0
    %1223 = vmatpush1.msra.mxu0 %v1208
    %1224 = vmatprep.subr.mxu0 0.0
    %1225 = vmatpush1.msra.mxu0 %v1207
    %1226 = vmatprep.subr.mxu0 0.0
    %1227 = vmatpush1.msra.mxu0 %v1206
    %1228 = vmatprep.subr.mxu0 0.0
    %1229 = vmatpush1.msra.mxu0 %v1205
    %1230 = vmatprep.subr.mxu0 0.0
    %1231 = vmatpush1.msra.mxu0 %v1204
    %1232 = vmatprep.subr.mxu0 0.0
    %1233 = vmatpush1.msra.mxu0 %v1203
    %1234 = vmatprep.subr.mxu0 0.0
    %1235 = vmatpush1.msra.mxu0 %v1202
    %1236 = vmatprep.subr.mxu0 0.0
    %1237 = vmatpush1.msra.mxu0 %v1201
    %1238 = vmatprep.subr.mxu0 0.0
    %1239 = vmatpush1.msra.mxu0 %v1200
    %1240 = vmatprep.subr.mxu0 0.0
    %1241 = vmatpush1.msra.mxu0 %v1199
    %1242 = vmatprep.subr.mxu0 0.0
    %1243 = vmatpush1.msra.mxu0 %v1198
    %1244 = vmatprep.subr.mxu0 0.0
    %1245 = vmatpush1.msra.mxu0 %v1197
    %1246 = vmatprep.subr.mxu0 0.0
    %1247 = vmatpush1.msra.mxu0 %v1196
    %1248 = vmatprep.subr.mxu0 0.0
    %1249 = vmatpush1.msra.mxu0 %v1195
    %1250 = vmatprep.subr.mxu0 0.0
    %1251 = vmatpush2.msra.mxu0 0.0
    %1252 = vmatprep.subr.mxu0 0.0
    %1253 = vmatpush2.msra.mxu0 0.0
    %1254 = vmatprep.subr.mxu0 0.0
    %1255 = vmatpush2.msra.mxu0 0.0
    %1256 = vmatprep.subr.mxu0 0.0
    %1257 = vmatpush2.msra.mxu0 0.0
    %1258 = vmatprep.subr.mxu0 0.0
    %1259 = vmatpush2.msra.mxu0 0.0
    %1260 = vmatprep.subr.mxu0 0.0
    %1261 = vmatpush2.msra.mxu0 0.0
    %1262 = vmatprep.subr.mxu0 0.0
    %1263 = vmatpush2.msra.mxu0 0.0
    %1264 = vmatprep.subr.mxu0 0.0
    %1265 = vmatpush2.msra.mxu0 0.0
    %1266 = vmatprep.subr.mxu0 0.0
    %1267 = vmatpush2.msra.mxu0 0.0
    %1268 = vmatprep.subr.mxu0 0.0
    %1269 = vmatpush2.msra.mxu0 0.0
    %1270 = vmatprep.subr.mxu0 0.0
    %1271 = vmatpush2.msra.mxu0 0.0
    %1272 = vmatprep.subr.mxu0 0.0
    %1273 = vmatpush2.msra.mxu0 0.0
    %1274 = vmatprep.subr.mxu0 0.0
    %1275 = vmatpush2.msra.mxu0 0.0
    %1276 = vmatprep.subr.mxu0 0.0
    %1277 = vmatpush2.msra.mxu0 0.0
    %1278 = vmatprep.subr.mxu0 0.0
    %1279 = vmatpush2.msra.mxu0 0.0
    %1280 = vmatprep.subr.mxu0 0.0
    %1281 = vmatpush2.msra.mxu0 0.0
    %1282 = vmatprep.mubr.f32.mxu0 0.0
    %1283 = vmatmul.mubr.f32.gmra.mxu0 %v1131
    %v1284 = vpop.f32.mrf.mxu0
    %v1285 = vadd.f32 %v1216, %v1284
    %v1286 = vpop.f32.mrf.mxu0
    %1287 = vmatprep.mubr.f32.mxu0 0.0
    %1288 = vmatmul.mubr.f32.gmra.mxu0 %v1133
    %v1289 = vpop.f32.mrf.mxu0
    %v1290 = vadd.f32 %v1216, %v1289
    %v1291 = vpop.f32.mrf.mxu0
    %1292 = vmatprep.mubr.f32.mxu0 0.0
    %1293 = vmatmul.mubr.f32.gmra.mxu0 %v1135
    %v1294 = vpop.f32.mrf.mxu0
    %v1295 = vadd.f32 %v1216, %v1294
    %v1296 = vpop.f32.mrf.mxu0
    %1297 = vmatprep.mubr.f32.mxu0 0.0
    %1298 = vmatmul.mubr.f32.gmra.mxu0 %v1137
    %v1299 = vpop.f32.mrf.mxu0
    %v1300 = vadd.f32 %v1216, %v1299
    %v1301 = vpop.f32.mrf.mxu0
    %1302 = vmatprep.mubr.f32.mxu0 0.0
    %1303 = vmatmul.mubr.f32.gmra.mxu0 %v1139
    %v1304 = vpop.f32.mrf.mxu0
    %v1305 = vadd.f32 %v1216, %v1304
    %v1306 = vpop.f32.mrf.mxu0
    %1307 = vmatprep.mubr.f32.mxu0 0.0
    %1308 = vmatmul.mubr.f32.gmra.mxu0 %v1141
    %v1309 = vpop.f32.mrf.mxu0
    %v1310 = vadd.f32 %v1216, %v1309
    %v1311 = vpop.f32.mrf.mxu0
    %1312 = vmatprep.mubr.f32.mxu0 0.0
    %1313 = vmatmul.mubr.f32.gmra.mxu0 %v1143
    %v1314 = vpop.f32.mrf.mxu0
    %v1315 = vadd.f32 %v1216, %v1314
    %v1316 = vpop.f32.mrf.mxu0
    %1317 = vmatprep.mubr.f32.mxu0 0.0
    %1318 = vmatmul.mubr.f32.gmra.mxu0 %v1145
    %v1319 = vpop.f32.mrf.mxu0
    %v1320 = vadd.f32 %v1216, %v1319
    %v1321 = vpop.f32.mrf.mxu0
    %1322 = vmatprep.mubr.f32.mxu0 0.0
    %1323 = vmatmul.mubr.f32.gmra.mxu0 %v1147
    %v1324 = vpop.f32.mrf.mxu0
    %v1325 = vadd.f32 %v1216, %v1324
    %v1326 = vpop.f32.mrf.mxu0
    %1327 = vmatprep.mubr.f32.mxu0 0.0
    %1328 = vmatmul.mubr.f32.gmra.mxu0 %v1149
    %v1329 = vpop.f32.mrf.mxu0
    %v1330 = vadd.f32 %v1216, %v1329
    %v1331 = vpop.f32.mrf.mxu0
    %1332 = vmatprep.mubr.f32.mxu0 0.0
    %1333 = vmatmul.mubr.f32.gmra.mxu0 %v1151
    %v1334 = vpop.f32.mrf.mxu0
    %v1335 = vadd.f32 %v1216, %v1334
    %v1336 = vpop.f32.mrf.mxu0
    %1337 = vmatprep.mubr.f32.mxu0 0.0
    %1338 = vmatmul.mubr.f32.gmra.mxu0 %v1153
    %v1339 = vpop.f32.mrf.mxu0
    %v1340 = vadd.f32 %v1216, %v1339
    %v1341 = vpop.f32.mrf.mxu0
    %1342 = vmatprep.mubr.f32.mxu0 0.0
    %1343 = vmatmul.mubr.f32.gmra.mxu0 %v1155
    %v1344 = vpop.f32.mrf.mxu0
    %v1345 = vadd.f32 %v1216, %v1344
    %v1346 = vpop.f32.mrf.mxu0
    %1347 = vmatprep.mubr.f32.mxu0 0.0
    %1348 = vmatmul.mubr.f32.gmra.mxu0 %v1157
    %v1349 = vpop.f32.mrf.mxu0
    %v1350 = vadd.f32 %v1216, %v1349
    %v1351 = vpop.f32.mrf.mxu0
    %1352 = vmatprep.mubr.f32.mxu0 0.0
    %1353 = vmatmul.mubr.f32.gmra.mxu0 %v1159
    %v1354 = vpop.f32.mrf.mxu0
    %v1355 = vadd.f32 %v1216, %v1354
    %v1356 = vpop.f32.mrf.mxu0
    %1357 = vmatprep.mubr.f32.mxu0 0.0
    %1358 = vmatmul.mubr.f32.gmra.mxu0 %v1161
    %v1359 = vpop.f32.mrf.mxu0
    %v1360 = vadd.f32 %v1216, %v1359
    %v1361 = vpop.f32.mrf.mxu0
    %1362 = vmatprep.mubr.f32.mxu0 0.0
    %1363 = vmatmul.mubr.f32.gmra.mxu0 %v1163
    %v1364 = vpop.f32.mrf.mxu0
    %v1365 = vadd.f32 %v1216, %v1364
    %v1366 = vpop.f32.mrf.mxu0
    %1367 = vmatprep.mubr.f32.mxu0 0.0
    %1368 = vmatmul.mubr.f32.gmra.mxu0 %v1165
    %v1369 = vpop.f32.mrf.mxu0
    %v1370 = vadd.f32 %v1216, %v1369
    %v1371 = vpop.f32.mrf.mxu0
    %1372 = vmatprep.mubr.f32.mxu0 0.0
    %1373 = vmatmul.mubr.f32.gmra.mxu0 %v1167
    %v1374 = vpop.f32.mrf.mxu0
    %v1375 = vadd.f32 %v1216, %v1374
    %v1376 = vpop.f32.mrf.mxu0
    %1377 = vmatprep.mubr.f32.mxu0 0.0
    %1378 = vmatmul.mubr.f32.gmra.mxu0 %v1169
    %v1379 = vpop.f32.mrf.mxu0
    %v1380 = vadd.f32 %v1216, %v1379
    %v1381 = vpop.f32.mrf.mxu0
    %1382 = vmatprep.mubr.f32.mxu0 0.0
    %1383 = vmatmul.mubr.f32.gmra.mxu0 %v1171
    %v1384 = vpop.f32.mrf.mxu0
    %v1385 = vadd.f32 %v1216, %v1384
    %v1386 = vpop.f32.mrf.mxu0
    %1387 = vmatprep.mubr.f32.mxu0 0.0
    %1388 = vmatmul.mubr.f32.gmra.mxu0 %v1173
    %v1389 = vpop.f32.mrf.mxu0
    %v1390 = vadd.f32 %v1216, %v1389
    %v1391 = vpop.f32.mrf.mxu0
    %1392 = vmatprep.mubr.f32.mxu0 0.0
    %1393 = vmatmul.mubr.f32.gmra.mxu0 %v1175
    %v1394 = vpop.f32.mrf.mxu0
    %v1395 = vadd.f32 %v1216, %v1394
    %v1396 = vpop.f32.mrf.mxu0
    %1397 = vmatprep.mubr.f32.mxu0 0.0
    %1398 = vmatmul.mubr.f32.gmra.mxu0 %v1177
    %v1399 = vpop.f32.mrf.mxu0
    %v1400 = vadd.f32 %v1216, %v1399
    %v1401 = vpop.f32.mrf.mxu0
    %1402 = vmatprep.mubr.f32.mxu0 0.0
    %1403 = vmatmul.mubr.f32.gmra.mxu0 %v1179
    %v1404 = vpop.f32.mrf.mxu0
    %v1405 = vadd.f32 %v1216, %v1404
    %v1406 = vpop.f32.mrf.mxu0
    %1407 = vmatprep.mubr.f32.mxu0 0.0
    %1408 = vmatmul.mubr.f32.gmra.mxu0 %v1181
    %v1409 = vpop.f32.mrf.mxu0
    %v1410 = vadd.f32 %v1216, %v1409
    %v1411 = vpop.f32.mrf.mxu0
    %1412 = vmatprep.mubr.f32.mxu0 0.0
    %1413 = vmatmul.mubr.f32.gmra.mxu0 %v1183
    %v1414 = vpop.f32.mrf.mxu0
    %v1415 = vadd.f32 %v1216, %v1414
    %v1416 = vpop.f32.mrf.mxu0
    %1417 = vmatprep.mubr.f32.mxu0 0.0
    %1418 = vmatmul.mubr.f32.gmra.mxu0 %v1185
    %v1419 = vpop.f32.mrf.mxu0
    %v1420 = vadd.f32 %v1216, %v1419
    %v1421 = vpop.f32.mrf.mxu0
    %1422 = vmatprep.mubr.f32.mxu0 0.0
    %1423 = vmatmul.mubr.f32.gmra.mxu0 %v1187
    %v1424 = vpop.f32.mrf.mxu0
    %v1425 = vadd.f32 %v1216, %v1424
    %v1426 = vpop.f32.mrf.mxu0
    %1427 = vmatprep.mubr.f32.mxu0 0.0
    %1428 = vmatmul.mubr.f32.gmra.mxu0 %v1189
    %v1429 = vpop.f32.mrf.mxu0
    %v1430 = vadd.f32 %v1216, %v1429
    %v1431 = vpop.f32.mrf.mxu0
    %1432 = vmatprep.mubr.f32.mxu0 0.0
    %1433 = vmatmul.mubr.f32.gmra.mxu0 %v1191
    %v1434 = vpop.f32.mrf.mxu0
    %v1435 = vadd.f32 %v1216, %v1434
    %v1436 = vpop.f32.mrf.mxu0
    %1437 = vmatprep.mubr.f32.mxu0 0.0
    %1438 = vmatmul.mubr.f32.gmra.mxu0 %v1193
    %v1439 = vpop.f32.mrf.mxu0
    %v1440 = vadd.f32 %v1216, %v1439
    %v1441 = vpop.f32.mrf.mxu0
    %1442 = vdwg.mxu0
    %v1443 = vmax.f32 %v1285, 0.0
    %v1444 = vmax.f32 %v1290, 0.0
    %v1445 = vmax.f32 %v1295, 0.0
    %v1446 = vmax.f32 %v1300, 0.0
    %v1447 = vmax.f32 %v1305, 0.0
    %v1448 = vmax.f32 %v1310, 0.0
    %v1449 = vmax.f32 %v1315, 0.0
    %v1450 = vmax.f32 %v1320, 0.0
    %v1451 = vmax.f32 %v1325, 0.0
    %v1452 = vmax.f32 %v1330, 0.0
    %v1453 = vmax.f32 %v1335, 0.0
    %v1454 = vmax.f32 %v1340, 0.0
    %v1455 = vmax.f32 %v1345, 0.0
    %v1456 = vmax.f32 %v1350, 0.0
    %v1457 = vmax.f32 %v1355, 0.0
    %v1458 = vmax.f32 %v1360, 0.0
    %v1459 = vmax.f32 %v1365, 0.0
    %v1460 = vmax.f32 %v1370, 0.0
    %v1461 = vmax.f32 %v1375, 0.0
    %v1462 = vmax.f32 %v1380, 0.0
    %v1463 = vmax.f32 %v1385, 0.0
    %v1464 = vmax.f32 %v1390, 0.0
    %v1465 = vmax.f32 %v1395, 0.0
    %v1466 = vmax.f32 %v1400, 0.0
    %v1467 = vmax.f32 %v1405, 0.0
    %v1468 = vmax.f32 %v1410, 0.0
    %v1469 = vmax.f32 %v1415, 0.0
    %v1470 = vmax.f32 %v1420, 0.0
    %v1471 = vmax.f32 %v1425, 0.0
    %v1472 = vmax.f32 %v1430, 0.0
    %v1473 = vmax.f32 %v1435, 0.0
    %v1474 = vmax.f32 %v1440, 0.0
    %v1475 = vld [vmem:[#allocation11] sm:$0xff]
    %v1476 = vld [vmem:[#allocation11 + $0x8] sm:$0xff]
    %v1477 = vld [vmem:[#allocation11 + $0x10] sm:$0xff]
    %v1478 = vld [vmem:[#allocation11 + $0x18] sm:$0xff]
    %v1479 = vld [vmem:[#allocation11 + $0x20] sm:$0xff]
    %v1480 = vld [vmem:[#allocation11 + $0x28] sm:$0xff]
    %v1481 = vld [vmem:[#allocation11 + $0x30] sm:$0xff]
    %v1482 = vld [vmem:[#allocation11 + $0x38] sm:$0xff]
    %v1483 = vld [vmem:[#allocation11 + $0x40] sm:$0xff]
    %v1484 = vld [vmem:[#allocation11 + $0x48] sm:$0xff]
    %v1485 = vld [vmem:[#allocation11 + $0x50] sm:$0xff]
    %v1486 = vld [vmem:[#allocation11 + $0x58] sm:$0xff]
    %v1487 = vld [vmem:[#allocation11 + $0x60] sm:$0xff]
    %v1488 = vld [vmem:[#allocation11 + $0x68] sm:$0xff]
    %v1489 = vld [vmem:[#allocation11 + $0x70] sm:$0xff]
    %v1490 = vld [vmem:[#allocation11 + $0x78] sm:$0xff]
    %v1491 = vld [vmem:[#allocation11 + $0x80] sm:$0xff]
    %v1492 = vld [vmem:[#allocation11 + $0x88] sm:$0xff]
    %v1493 = vld [vmem:[#allocation11 + $0x90] sm:$0xff]
    %v1494 = vld [vmem:[#allocation11 + $0x98] sm:$0xff]
    %v1495 = vld [vmem:[#allocation11 + $0xa0] sm:$0xff]
    %v1496 = vld [vmem:[#allocation11 + $0xa8] sm:$0xff]
    %v1497 = vld [vmem:[#allocation11 + $0xb0] sm:$0xff]
    %v1498 = vld [vmem:[#allocation11 + $0xb8] sm:$0xff]
    %v1499 = vld [vmem:[#allocation11 + $0xc0] sm:$0xff]
    %v1500 = vld [vmem:[#allocation11 + $0xc8] sm:$0xff]
    %v1501 = vld [vmem:[#allocation11 + $0xd0] sm:$0xff]
    %v1502 = vld [vmem:[#allocation11 + $0xd8] sm:$0xff]
    %v1503 = vld [vmem:[#allocation11 + $0xe0] sm:$0xff]
    %v1504 = vld [vmem:[#allocation11 + $0xe8] sm:$0xff]
    %v1505 = vld [vmem:[#allocation11 + $0xf0] sm:$0xff]
    %v1506 = vld [vmem:[#allocation11 + $0xf8] sm:$0xff]
    %v1507 = vld [vmem:[#allocation11 + $0x100] sm:$0xff]
    %v1508 = vld [vmem:[#allocation11 + $0x108] sm:$0xff]
    %v1509 = vld [vmem:[#allocation11 + $0x110] sm:$0xff]
    %v1510 = vld [vmem:[#allocation11 + $0x118] sm:$0xff]
    %v1511 = vld [vmem:[#allocation11 + $0x120] sm:$0xff]
    %v1512 = vld [vmem:[#allocation11 + $0x128] sm:$0xff]
    %v1513 = vld [vmem:[#allocation11 + $0x130] sm:$0xff]
    %v1514 = vld [vmem:[#allocation11 + $0x138] sm:$0xff]
    %v1515 = vld [vmem:[#allocation11 + $0x140] sm:$0xff]
    %v1516 = vld [vmem:[#allocation11 + $0x148] sm:$0xff]
    %v1517 = vld [vmem:[#allocation11 + $0x150] sm:$0xff]
    %v1518 = vld [vmem:[#allocation11 + $0x158] sm:$0xff]
    %v1519 = vld [vmem:[#allocation11 + $0x160] sm:$0xff]
    %v1520 = vld [vmem:[#allocation11 + $0x168] sm:$0xff]
    %v1521 = vld [vmem:[#allocation11 + $0x170] sm:$0xff]
    %v1522 = vld [vmem:[#allocation11 + $0x178] sm:$0xff]
    %1523 = vmatprep.subr.mxu0 %v1521
    %1524 = vmatpush1.msra.mxu0 %v1520
    %1525 = vmatprep.subr.mxu0 %v1518
    %1526 = vmatpush1.msra.mxu0 %v1517
    %1527 = vmatprep.subr.mxu0 %v1515
    %1528 = vmatpush1.msra.mxu0 %v1514
    %1529 = vmatprep.subr.mxu0 %v1512
    %1530 = vmatpush1.msra.mxu0 %v1511
    %1531 = vmatprep.subr.mxu0 %v1509
    %1532 = vmatpush1.msra.mxu0 %v1508
    %1533 = vmatprep.subr.mxu0 %v1506
    %1534 = vmatpush1.msra.mxu0 %v1505
    %1535 = vmatprep.subr.mxu0 %v1503
    %1536 = vmatpush1.msra.mxu0 %v1502
    %1537 = vmatprep.subr.mxu0 %v1500
    %1538 = vmatpush1.msra.mxu0 %v1499
    %1539 = vmatprep.subr.mxu0 %v1497
    %1540 = vmatpush1.msra.mxu0 %v1496
    %1541 = vmatprep.subr.mxu0 %v1494
    %1542 = vmatpush1.msra.mxu0 %v1493
    %1543 = vmatprep.subr.mxu0 %v1491
    %1544 = vmatpush1.msra.mxu0 %v1490
    %1545 = vmatprep.subr.mxu0 %v1488
    %1546 = vmatpush1.msra.mxu0 %v1487
    %1547 = vmatprep.subr.mxu0 %v1485
    %1548 = vmatpush1.msra.mxu0 %v1484
    %1549 = vmatprep.subr.mxu0 %v1482
    %1550 = vmatpush1.msra.mxu0 %v1481
    %1551 = vmatprep.subr.mxu0 %v1479
    %1552 = vmatpush1.msra.mxu0 %v1478
    %1553 = vmatprep.subr.mxu0 %v1476
    %1554 = vmatpush1.msra.mxu0 %v1475
    %1555 = vmatprep.subr.mxu0 0.0
    %1556 = vmatpush2.msra.mxu0 0.0
    %1557 = vmatprep.subr.mxu0 0.0
    %1558 = vmatpush2.msra.mxu0 0.0
    %1559 = vmatprep.subr.mxu0 0.0
    %1560 = vmatpush2.msra.mxu0 0.0
    %1561 = vmatprep.subr.mxu0 0.0
    %1562 = vmatpush2.msra.mxu0 0.0
    %1563 = vmatprep.subr.mxu0 0.0
    %1564 = vmatpush2.msra.mxu0 0.0
    %1565 = vmatprep.subr.mxu0 0.0
    %1566 = vmatpush2.msra.mxu0 0.0
    %1567 = vmatprep.subr.mxu0 0.0
    %1568 = vmatpush2.msra.mxu0 0.0
    %1569 = vmatprep.subr.mxu0 0.0
    %1570 = vmatpush2.msra.mxu0 0.0
    %1571 = vmatprep.subr.mxu0 0.0
    %1572 = vmatpush2.msra.mxu0 0.0
    %1573 = vmatprep.subr.mxu0 0.0
    %1574 = vmatpush2.msra.mxu0 0.0
    %1575 = vmatprep.subr.mxu0 0.0
    %1576 = vmatpush2.msra.mxu0 0.0
    %1577 = vmatprep.subr.mxu0 0.0
    %1578 = vmatpush2.msra.mxu0 0.0
    %1579 = vmatprep.subr.mxu0 0.0
    %1580 = vmatpush2.msra.mxu0 0.0
    %1581 = vmatprep.subr.mxu0 0.0
    %1582 = vmatpush2.msra.mxu0 0.0
    %1583 = vmatprep.subr.mxu0 0.0
    %1584 = vmatpush2.msra.mxu0 0.0
    %1585 = vmatprep.subr.mxu0 0.0
    %1586 = vmatpush2.msra.mxu0 0.0
    %1587 = vmatprep.mubr.f32.mxu0 0.0
    %1588 = vmatmul.mubr.f32.gmra.mxu0 %v1132
    %v1589 = vpop.f32.mrf.mxu0
    %v1590 = vadd.f32 0.0, %v1589
    %v1591 = vpop.f32.mrf.mxu0
    %v1592 = vadd.f32 0.0, %v1591
    %1593 = vmatprep.mubr.f32.mxu0 0.0
    %1594 = vmatmul.mubr.f32.gmra.mxu0 %v1134
    %v1595 = vpop.f32.mrf.mxu0
    %v1596 = vadd.f32 0.0, %v1595
    %v1597 = vpop.f32.mrf.mxu0
    %v1598 = vadd.f32 0.0, %v1597
    %1599 = vmatprep.mubr.f32.mxu0 0.0
    %1600 = vmatmul.mubr.f32.gmra.mxu0 %v1136
    %v1601 = vpop.f32.mrf.mxu0
    %v1602 = vadd.f32 0.0, %v1601
    %v1603 = vpop.f32.mrf.mxu0
    %v1604 = vadd.f32 0.0, %v1603
    %1605 = vmatprep.mubr.f32.mxu0 0.0
    %1606 = vmatmul.mubr.f32.gmra.mxu0 %v1138
    %v1607 = vpop.f32.mrf.mxu0
    %v1608 = vadd.f32 0.0, %v1607
    %v1609 = vpop.f32.mrf.mxu0
    %v1610 = vadd.f32 0.0, %v1609
    %1611 = vmatprep.mubr.f32.mxu0 0.0
    %1612 = vmatmul.mubr.f32.gmra.mxu0 %v1140
    %v1613 = vpop.f32.mrf.mxu0
    %v1614 = vadd.f32 0.0, %v1613
    %v1615 = vpop.f32.mrf.mxu0
    %v1616 = vadd.f32 0.0, %v1615
    %1617 = vmatprep.mubr.f32.mxu0 0.0
    %1618 = vmatmul.mubr.f32.gmra.mxu0 %v1142
    %v1619 = vpop.f32.mrf.mxu0
    %v1620 = vadd.f32 0.0, %v1619
    %v1621 = vpop.f32.mrf.mxu0
    %v1622 = vadd.f32 0.0, %v1621
    %1623 = vmatprep.mubr.f32.mxu0 0.0
    %1624 = vmatmul.mubr.f32.gmra.mxu0 %v1144
    %v1625 = vpop.f32.mrf.mxu0
    %v1626 = vadd.f32 0.0, %v1625
    %v1627 = vpop.f32.mrf.mxu0
    %v1628 = vadd.f32 0.0, %v1627
    %1629 = vmatprep.mubr.f32.mxu0 0.0
    %1630 = vmatmul.mubr.f32.gmra.mxu0 %v1146
    %v1631 = vpop.f32.mrf.mxu0
    %v1632 = vadd.f32 0.0, %v1631
    %v1633 = vpop.f32.mrf.mxu0
    %v1634 = vadd.f32 0.0, %v1633
    %1635 = vmatprep.mubr.f32.mxu0 0.0
    %1636 = vmatmul.mubr.f32.gmra.mxu0 %v1148
    %v1637 = vpop.f32.mrf.mxu0
    %v1638 = vadd.f32 0.0, %v1637
    %v1639 = vpop.f32.mrf.mxu0
    %v1640 = vadd.f32 0.0, %v1639
    %1641 = vmatprep.mubr.f32.mxu0 0.0
    %1642 = vmatmul.mubr.f32.gmra.mxu0 %v1150
    %v1643 = vpop.f32.mrf.mxu0
    %v1644 = vadd.f32 0.0, %v1643
    %v1645 = vpop.f32.mrf.mxu0
    %v1646 = vadd.f32 0.0, %v1645
    %1647 = vmatprep.mubr.f32.mxu0 0.0
    %1648 = vmatmul.mubr.f32.gmra.mxu0 %v1152
    %v1649 = vpop.f32.mrf.mxu0
    %v1650 = vadd.f32 0.0, %v1649
    %v1651 = vpop.f32.mrf.mxu0
    %v1652 = vadd.f32 0.0, %v1651
    %1653 = vmatprep.mubr.f32.mxu0 0.0
    %1654 = vmatmul.mubr.f32.gmra.mxu0 %v1154
    %v1655 = vpop.f32.mrf.mxu0
    %v1656 = vadd.f32 0.0, %v1655
    %v1657 = vpop.f32.mrf.mxu0
    %v1658 = vadd.f32 0.0, %v1657
    %1659 = vmatprep.mubr.f32.mxu0 0.0
    %1660 = vmatmul.mubr.f32.gmra.mxu0 %v1156
    %v1661 = vpop.f32.mrf.mxu0
    %v1662 = vadd.f32 0.0, %v1661
    %v1663 = vpop.f32.mrf.mxu0
    %v1664 = vadd.f32 0.0, %v1663
    %1665 = vmatprep.mubr.f32.mxu0 0.0
    %1666 = vmatmul.mubr.f32.gmra.mxu0 %v1158
    %v1667 = vpop.f32.mrf.mxu0
    %v1668 = vadd.f32 0.0, %v1667
    %v1669 = vpop.f32.mrf.mxu0
    %v1670 = vadd.f32 0.0, %v1669
    %1671 = vmatprep.mubr.f32.mxu0 0.0
    %1672 = vmatmul.mubr.f32.gmra.mxu0 %v1160
    %v1673 = vpop.f32.mrf.mxu0
    %v1674 = vadd.f32 0.0, %v1673
    %v1675 = vpop.f32.mrf.mxu0
    %v1676 = vadd.f32 0.0, %v1675
    %1677 = vmatprep.mubr.f32.mxu0 0.0
    %1678 = vmatmul.mubr.f32.gmra.mxu0 %v1162
    %v1679 = vpop.f32.mrf.mxu0
    %v1680 = vadd.f32 0.0, %v1679
    %v1681 = vpop.f32.mrf.mxu0
    %v1682 = vadd.f32 0.0, %v1681
    %1683 = vmatprep.mubr.f32.mxu0 0.0
    %1684 = vmatmul.mubr.f32.gmra.mxu0 %v1164
    %v1685 = vpop.f32.mrf.mxu0
    %v1686 = vadd.f32 0.0, %v1685
    %v1687 = vpop.f32.mrf.mxu0
    %v1688 = vadd.f32 0.0, %v1687
    %1689 = vmatprep.mubr.f32.mxu0 0.0
    %1690 = vmatmul.mubr.f32.gmra.mxu0 %v1166
    %v1691 = vpop.f32.mrf.mxu0
    %v1692 = vadd.f32 0.0, %v1691
    %v1693 = vpop.f32.mrf.mxu0
    %v1694 = vadd.f32 0.0, %v1693
    %1695 = vmatprep.mubr.f32.mxu0 0.0
    %1696 = vmatmul.mubr.f32.gmra.mxu0 %v1168
    %v1697 = vpop.f32.mrf.mxu0
    %v1698 = vadd.f32 0.0, %v1697
    %v1699 = vpop.f32.mrf.mxu0
    %v1700 = vadd.f32 0.0, %v1699
    %1701 = vmatprep.mubr.f32.mxu0 0.0
    %1702 = vmatmul.mubr.f32.gmra.mxu0 %v1170
    %v1703 = vpop.f32.mrf.mxu0
    %v1704 = vadd.f32 0.0, %v1703
    %v1705 = vpop.f32.mrf.mxu0
    %v1706 = vadd.f32 0.0, %v1705
    %1707 = vmatprep.mubr.f32.mxu0 0.0
    %1708 = vmatmul.mubr.f32.gmra.mxu0 %v1172
    %v1709 = vpop.f32.mrf.mxu0
    %v1710 = vadd.f32 0.0, %v1709
    %v1711 = vpop.f32.mrf.mxu0
    %v1712 = vadd.f32 0.0, %v1711
    %1713 = vmatprep.mubr.f32.mxu0 0.0
    %1714 = vmatmul.mubr.f32.gmra.mxu0 %v1174
    %v1715 = vpop.f32.mrf.mxu0
    %v1716 = vadd.f32 0.0, %v1715
    %v1717 = vpop.f32.mrf.mxu0
    %v1718 = vadd.f32 0.0, %v1717
    %1719 = vmatprep.mubr.f32.mxu0 0.0
    %1720 = vmatmul.mubr.f32.gmra.mxu0 %v1176
    %v1721 = vpop.f32.mrf.mxu0
    %v1722 = vadd.f32 0.0, %v1721
    %v1723 = vpop.f32.mrf.mxu0
    %v1724 = vadd.f32 0.0, %v1723
    %1725 = vmatprep.mubr.f32.mxu0 0.0
    %1726 = vmatmul.mubr.f32.gmra.mxu0 %v1178
    %v1727 = vpop.f32.mrf.mxu0
    %v1728 = vadd.f32 0.0, %v1727
    %v1729 = vpop.f32.mrf.mxu0
    %v1730 = vadd.f32 0.0, %v1729
    %1731 = vmatprep.mubr.f32.mxu0 0.0
    %1732 = vmatmul.mubr.f32.gmra.mxu0 %v1180
    %v1733 = vpop.f32.mrf.mxu0
    %v1734 = vadd.f32 0.0, %v1733
    %v1735 = vpop.f32.mrf.mxu0
    %v1736 = vadd.f32 0.0, %v1735
    %1737 = vmatprep.mubr.f32.mxu0 0.0
    %1738 = vmatmul.mubr.f32.gmra.mxu0 %v1182
    %v1739 = vpop.f32.mrf.mxu0
    %v1740 = vadd.f32 0.0, %v1739
    %v1741 = vpop.f32.mrf.mxu0
    %v1742 = vadd.f32 0.0, %v1741
    %1743 = vmatprep.mubr.f32.mxu0 0.0
    %1744 = vmatmul.mubr.f32.gmra.mxu0 %v1184
    %v1745 = vpop.f32.mrf.mxu0
    %v1746 = vadd.f32 0.0, %v1745
    %v1747 = vpop.f32.mrf.mxu0
    %v1748 = vadd.f32 0.0, %v1747
    %1749 = vmatprep.mubr.f32.mxu0 0.0
    %1750 = vmatmul.mubr.f32.gmra.mxu0 %v1186
    %v1751 = vpop.f32.mrf.mxu0
    %v1752 = vadd.f32 0.0, %v1751
    %v1753 = vpop.f32.mrf.mxu0
    %v1754 = vadd.f32 0.0, %v1753
    %1755 = vmatprep.mubr.f32.mxu0 0.0
    %1756 = vmatmul.mubr.f32.gmra.mxu0 %v1188
    %v1757 = vpop.f32.mrf.mxu0
    %v1758 = vadd.f32 0.0, %v1757
    %v1759 = vpop.f32.mrf.mxu0
    %v1760 = vadd.f32 0.0, %v1759
    %1761 = vmatprep.mubr.f32.mxu0 0.0
    %1762 = vmatmul.mubr.f32.gmra.mxu0 %v1190
    %v1763 = vpop.f32.mrf.mxu0
    %v1764 = vadd.f32 0.0, %v1763
    %v1765 = vpop.f32.mrf.mxu0
    %v1766 = vadd.f32 0.0, %v1765
    %1767 = vmatprep.mubr.f32.mxu0 0.0
    %1768 = vmatmul.mubr.f32.gmra.mxu0 %v1192
    %v1769 = vpop.f32.mrf.mxu0
    %v1770 = vadd.f32 0.0, %v1769
    %v1771 = vpop.f32.mrf.mxu0
    %v1772 = vadd.f32 0.0, %v1771
    %1773 = vmatprep.mubr.f32.mxu0 0.0
    %1774 = vmatmul.mubr.f32.gmra.mxu0 %v1194
    %v1775 = vpop.f32.mrf.mxu0
    %v1776 = vadd.f32 0.0, %v1775
    %v1777 = vpop.f32.mrf.mxu0
    %v1778 = vadd.f32 0.0, %v1777
    %1779 = vdwg.mxu0
    %1780 = vmatprep.subr.mxu0 0.0
    %1781 = vmatpush1.msra.mxu0 %v1522
    %1782 = vmatprep.subr.mxu0 0.0
    %1783 = vmatpush1.msra.mxu0 %v1519
    %1784 = vmatprep.subr.mxu0 0.0
    %1785 = vmatpush1.msra.mxu0 %v1516
    %1786 = vmatprep.subr.mxu0 0.0
    %1787 = vmatpush1.msra.mxu0 %v1513
    %1788 = vmatprep.subr.mxu0 0.0
    %1789 = vmatpush1.msra.mxu0 %v1510
    %1790 = vmatprep.subr.mxu0 0.0
    %1791 = vmatpush1.msra.mxu0 %v1507
    %1792 = vmatprep.subr.mxu0 0.0
    %1793 = vmatpush1.msra.mxu0 %v1504
    %1794 = vmatprep.subr.mxu0 0.0
    %1795 = vmatpush1.msra.mxu0 %v1501
    %1796 = vmatprep.subr.mxu0 0.0
    %1797 = vmatpush1.msra.mxu0 %v1498
    %1798 = vmatprep.subr.mxu0 0.0
    %1799 = vmatpush1.msra.mxu0 %v1495
    %1800 = vmatprep.subr.mxu0 0.0
    %1801 = vmatpush1.msra.mxu0 %v1492
    %1802 = vmatprep.subr.mxu0 0.0
    %1803 = vmatpush1.msra.mxu0 %v1489
    %1804 = vmatprep.subr.mxu0 0.0
    %1805 = vmatpush1.msra.mxu0 %v1486
    %1806 = vmatprep.subr.mxu0 0.0
    %1807 = vmatpush1.msra.mxu0 %v1483
    %1808 = vmatprep.subr.mxu0 0.0
    %1809 = vmatpush1.msra.mxu0 %v1480
    %1810 = vmatprep.subr.mxu0 0.0
    %1811 = vmatpush1.msra.mxu0 %v1477
    %1812 = vmatprep.subr.mxu0 0.0
    %1813 = vmatpush2.msra.mxu0 0.0
    %1814 = vmatprep.subr.mxu0 0.0
    %1815 = vmatpush2.msra.mxu0 0.0
    %1816 = vmatprep.subr.mxu0 0.0
    %1817 = vmatpush2.msra.mxu0 0.0
    %1818 = vmatprep.subr.mxu0 0.0
    %1819 = vmatpush2.msra.mxu0 0.0
    %1820 = vmatprep.subr.mxu0 0.0
    %1821 = vmatpush2.msra.mxu0 0.0
    %1822 = vmatprep.subr.mxu0 0.0
    %1823 = vmatpush2.msra.mxu0 0.0
    %1824 = vmatprep.subr.mxu0 0.0
    %1825 = vmatpush2.msra.mxu0 0.0
    %1826 = vmatprep.subr.mxu0 0.0
    %1827 = vmatpush2.msra.mxu0 0.0
    %1828 = vmatprep.subr.mxu0 0.0
    %1829 = vmatpush2.msra.mxu0 0.0
    %1830 = vmatprep.subr.mxu0 0.0
    %1831 = vmatpush2.msra.mxu0 0.0
    %1832 = vmatprep.subr.mxu0 0.0
    %1833 = vmatpush2.msra.mxu0 0.0
    %1834 = vmatprep.subr.mxu0 0.0
    %1835 = vmatpush2.msra.mxu0 0.0
    %1836 = vmatprep.subr.mxu0 0.0
    %1837 = vmatpush2.msra.mxu0 0.0
    %1838 = vmatprep.subr.mxu0 0.0
    %1839 = vmatpush2.msra.mxu0 0.0
    %1840 = vmatprep.subr.mxu0 0.0
    %1841 = vmatpush2.msra.mxu0 0.0
    %1842 = vmatprep.subr.mxu0 0.0
    %1843 = vmatpush2.msra.mxu0 0.0
    %1844 = vmatprep.mubr.f32.mxu0 0.0
    %1845 = vmatmul.mubr.f32.gmra.mxu0 %v1132
    %v1846 = vpop.f32.mrf.mxu0
    %v1847 = vadd.f32 0.0, %v1846
    %v1848 = vpop.f32.mrf.mxu0
    %1849 = vmatprep.mubr.f32.mxu0 0.0
    %1850 = vmatmul.mubr.f32.gmra.mxu0 %v1134
    %v1851 = vpop.f32.mrf.mxu0
    %v1852 = vadd.f32 0.0, %v1851
    %v1853 = vpop.f32.mrf.mxu0
    %1854 = vmatprep.mubr.f32.mxu0 0.0
    %1855 = vmatmul.mubr.f32.gmra.mxu0 %v1136
    %v1856 = vpop.f32.mrf.mxu0
    %v1857 = vadd.f32 0.0, %v1856
    %v1858 = vpop.f32.mrf.mxu0
    %1859 = vmatprep.mubr.f32.mxu0 0.0
    %1860 = vmatmul.mubr.f32.gmra.mxu0 %v1138
    %v1861 = vpop.f32.mrf.mxu0
    %v1862 = vadd.f32 0.0, %v1861
    %v1863 = vpop.f32.mrf.mxu0
    %1864 = vmatprep.mubr.f32.mxu0 0.0
    %1865 = vmatmul.mubr.f32.gmra.mxu0 %v1140
    %v1866 = vpop.f32.mrf.mxu0
    %v1867 = vadd.f32 0.0, %v1866
    %v1868 = vpop.f32.mrf.mxu0
    %1869 = vmatprep.mubr.f32.mxu0 0.0
    %1870 = vmatmul.mubr.f32.gmra.mxu0 %v1142
    %v1871 = vpop.f32.mrf.mxu0
    %v1872 = vadd.f32 0.0, %v1871
    %v1873 = vpop.f32.mrf.mxu0
    %1874 = vmatprep.mubr.f32.mxu0 0.0
    %1875 = vmatmul.mubr.f32.gmra.mxu0 %v1144
    %v1876 = vpop.f32.mrf.mxu0
    %v1877 = vadd.f32 0.0, %v1876
    %v1878 = vpop.f32.mrf.mxu0
    %1879 = vmatprep.mubr.f32.mxu0 0.0
    %1880 = vmatmul.mubr.f32.gmra.mxu0 %v1146
    %v1881 = vpop.f32.mrf.mxu0
    %v1882 = vadd.f32 0.0, %v1881
    %v1883 = vpop.f32.mrf.mxu0
    %1884 = vmatprep.mubr.f32.mxu0 0.0
    %1885 = vmatmul.mubr.f32.gmra.mxu0 %v1148
    %v1886 = vpop.f32.mrf.mxu0
    %v1887 = vadd.f32 0.0, %v1886
    %v1888 = vpop.f32.mrf.mxu0
    %1889 = vmatprep.mubr.f32.mxu0 0.0
    %1890 = vmatmul.mubr.f32.gmra.mxu0 %v1150
    %v1891 = vpop.f32.mrf.mxu0
    %v1892 = vadd.f32 0.0, %v1891
    %v1893 = vpop.f32.mrf.mxu0
    %1894 = vmatprep.mubr.f32.mxu0 0.0
    %1895 = vmatmul.mubr.f32.gmra.mxu0 %v1152
    %v1896 = vpop.f32.mrf.mxu0
    %v1897 = vadd.f32 0.0, %v1896
    %v1898 = vpop.f32.mrf.mxu0
    %1899 = vmatprep.mubr.f32.mxu0 0.0
    %1900 = vmatmul.mubr.f32.gmra.mxu0 %v1154
    %v1901 = vpop.f32.mrf.mxu0
    %v1902 = vadd.f32 0.0, %v1901
    %v1903 = vpop.f32.mrf.mxu0
    %1904 = vmatprep.mubr.f32.mxu0 0.0
    %1905 = vmatmul.mubr.f32.gmra.mxu0 %v1156
    %v1906 = vpop.f32.mrf.mxu0
    %v1907 = vadd.f32 0.0, %v1906
    %v1908 = vpop.f32.mrf.mxu0
    %1909 = vmatprep.mubr.f32.mxu0 0.0
    %1910 = vmatmul.mubr.f32.gmra.mxu0 %v1158
    %v1911 = vpop.f32.mrf.mxu0
    %v1912 = vadd.f32 0.0, %v1911
    %v1913 = vpop.f32.mrf.mxu0
    %1914 = vmatprep.mubr.f32.mxu0 0.0
    %1915 = vmatmul.mubr.f32.gmra.mxu0 %v1160
    %v1916 = vpop.f32.mrf.mxu0
    %v1917 = vadd.f32 0.0, %v1916
    %v1918 = vpop.f32.mrf.mxu0
    %1919 = vmatprep.mubr.f32.mxu0 0.0
    %1920 = vmatmul.mubr.f32.gmra.mxu0 %v1162
    %v1921 = vpop.f32.mrf.mxu0
    %v1922 = vadd.f32 0.0, %v1921
    %v1923 = vpop.f32.mrf.mxu0
    %1924 = vmatprep.mubr.f32.mxu0 0.0
    %1925 = vmatmul.mubr.f32.gmra.mxu0 %v1164
    %v1926 = vpop.f32.mrf.mxu0
    %v1927 = vadd.f32 0.0, %v1926
    %v1928 = vpop.f32.mrf.mxu0
    %1929 = vmatprep.mubr.f32.mxu0 0.0
    %1930 = vmatmul.mubr.f32.gmra.mxu0 %v1166
    %v1931 = vpop.f32.mrf.mxu0
    %v1932 = vadd.f32 0.0, %v1931
    %v1933 = vpop.f32.mrf.mxu0
    %1934 = vmatprep.mubr.f32.mxu0 0.0
    %1935 = vmatmul.mubr.f32.gmra.mxu0 %v1168
    %v1936 = vpop.f32.mrf.mxu0
    %v1937 = vadd.f32 0.0, %v1936
    %v1938 = vpop.f32.mrf.mxu0
    %1939 = vmatprep.mubr.f32.mxu0 0.0
    %1940 = vmatmul.mubr.f32.gmra.mxu0 %v1170
    %v1941 = vpop.f32.mrf.mxu0
    %v1942 = vadd.f32 0.0, %v1941
    %v1943 = vpop.f32.mrf.mxu0
    %1944 = vmatprep.mubr.f32.mxu0 0.0
    %1945 = vmatmul.mubr.f32.gmra.mxu0 %v1172
    %v1946 = vpop.f32.mrf.mxu0
    %v1947 = vadd.f32 0.0, %v1946
    %v1948 = vpop.f32.mrf.mxu0
    %1949 = vmatprep.mubr.f32.mxu0 0.0
    %1950 = vmatmul.mubr.f32.gmra.mxu0 %v1174
    %v1951 = vpop.f32.mrf.mxu0
    %v1952 = vadd.f32 0.0, %v1951
    %v1953 = vpop.f32.mrf.mxu0
    %1954 = vmatprep.mubr.f32.mxu0 0.0
    %1955 = vmatmul.mubr.f32.gmra.mxu0 %v1176
    %v1956 = vpop.f32.mrf.mxu0
    %v1957 = vadd.f32 0.0, %v1956
    %v1958 = vpop.f32.mrf.mxu0
    %1959 = vmatprep.mubr.f32.mxu0 0.0
    %1960 = vmatmul.mubr.f32.gmra.mxu0 %v1178
    %v1961 = vpop.f32.mrf.mxu0
    %v1962 = vadd.f32 0.0, %v1961
    %v1963 = vpop.f32.mrf.mxu0
    %1964 = vmatprep.mubr.f32.mxu0 0.0
    %1965 = vmatmul.mubr.f32.gmra.mxu0 %v1180
    %v1966 = vpop.f32.mrf.mxu0
    %v1967 = vadd.f32 0.0, %v1966
    %v1968 = vpop.f32.mrf.mxu0
    %1969 = vmatprep.mubr.f32.mxu0 0.0
    %1970 = vmatmul.mubr.f32.gmra.mxu0 %v1182
    %v1971 = vpop.f32.mrf.mxu0
    %v1972 = vadd.f32 0.0, %v1971
    %v1973 = vpop.f32.mrf.mxu0
    %1974 = vmatprep.mubr.f32.mxu0 0.0
    %1975 = vmatmul.mubr.f32.gmra.mxu0 %v1184
    %v1976 = vpop.f32.mrf.mxu0
    %v1977 = vadd.f32 0.0, %v1976
    %v1978 = vpop.f32.mrf.mxu0
    %1979 = vmatprep.mubr.f32.mxu0 0.0
    %1980 = vmatmul.mubr.f32.gmra.mxu0 %v1186
    %v1981 = vpop.f32.mrf.mxu0
    %v1982 = vadd.f32 0.0, %v1981
    %v1983 = vpop.f32.mrf.mxu0
    %1984 = vmatprep.mubr.f32.mxu0 0.0
    %1985 = vmatmul.mubr.f32.gmra.mxu0 %v1188
    %v1986 = vpop.f32.mrf.mxu0
    %v1987 = vadd.f32 0.0, %v1986
    %v1988 = vpop.f32.mrf.mxu0
    %1989 = vmatprep.mubr.f32.mxu0 0.0
    %1990 = vmatmul.mubr.f32.gmra.mxu0 %v1190
    %v1991 = vpop.f32.mrf.mxu0
    %v1992 = vadd.f32 0.0, %v1991
    %v1993 = vpop.f32.mrf.mxu0
    %1994 = vmatprep.mubr.f32.mxu0 0.0
    %1995 = vmatmul.mubr.f32.gmra.mxu0 %v1192
    %v1996 = vpop.f32.mrf.mxu0
    %v1997 = vadd.f32 0.0, %v1996
    %v1998 = vpop.f32.mrf.mxu0
    %1999 = vmatprep.mubr.f32.mxu0 0.0
    %2000 = vmatmul.mubr.f32.gmra.mxu0 %v1194
    %v2001 = vpop.f32.mrf.mxu0
    %v2002 = vadd.f32 0.0, %v2001
    %v2003 = vpop.f32.mrf.mxu0
    %2004 = vdwg.mxu0
    %2005 = vmatprep.subr.mxu0 %v1521
    %2006 = vmatpush1.msra.mxu0 %v1520
    %2007 = vmatprep.subr.mxu0 %v1518
    %2008 = vmatpush1.msra.mxu0 %v1517
    %2009 = vmatprep.subr.mxu0 %v1515
    %2010 = vmatpush1.msra.mxu0 %v1514
    %2011 = vmatprep.subr.mxu0 %v1512
    %2012 = vmatpush1.msra.mxu0 %v1511
    %2013 = vmatprep.subr.mxu0 %v1509
    %2014 = vmatpush1.msra.mxu0 %v1508
    %2015 = vmatprep.subr.mxu0 %v1506
    %2016 = vmatpush1.msra.mxu0 %v1505
    %2017 = vmatprep.subr.mxu0 %v1503
    %2018 = vmatpush1.msra.mxu0 %v1502
    %2019 = vmatprep.subr.mxu0 %v1500
    %2020 = vmatpush1.msra.mxu0 %v1499
    %2021 = vmatprep.subr.mxu0 %v1497
    %2022 = vmatpush1.msra.mxu0 %v1496
    %2023 = vmatprep.subr.mxu0 %v1494
    %2024 = vmatpush1.msra.mxu0 %v1493
    %2025 = vmatprep.subr.mxu0 %v1491
    %2026 = vmatpush1.msra.mxu0 %v1490
    %2027 = vmatprep.subr.mxu0 %v1488
    %2028 = vmatpush1.msra.mxu0 %v1487
    %2029 = vmatprep.subr.mxu0 %v1485
    %2030 = vmatpush1.msra.mxu0 %v1484
    %2031 = vmatprep.subr.mxu0 %v1482
    %2032 = vmatpush1.msra.mxu0 %v1481
    %2033 = vmatprep.subr.mxu0 %v1479
    %2034 = vmatpush1.msra.mxu0 %v1478
    %2035 = vmatprep.subr.mxu0 %v1476
    %2036 = vmatpush1.msra.mxu0 %v1475
    %2037 = vmatprep.subr.mxu0 0.0
    %2038 = vmatpush2.msra.mxu0 0.0
    %2039 = vmatprep.subr.mxu0 0.0
    %2040 = vmatpush2.msra.mxu0 0.0
    %2041 = vmatprep.subr.mxu0 0.0
    %2042 = vmatpush2.msra.mxu0 0.0
    %2043 = vmatprep.subr.mxu0 0.0
    %2044 = vmatpush2.msra.mxu0 0.0
    %2045 = vmatprep.subr.mxu0 0.0
    %2046 = vmatpush2.msra.mxu0 0.0
    %2047 = vmatprep.subr.mxu0 0.0
    %2048 = vmatpush2.msra.mxu0 0.0
    %2049 = vmatprep.subr.mxu0 0.0
    %2050 = vmatpush2.msra.mxu0 0.0
    %2051 = vmatprep.subr.mxu0 0.0
    %2052 = vmatpush2.msra.mxu0 0.0
    %2053 = vmatprep.subr.mxu0 0.0
    %2054 = vmatpush2.msra.mxu0 0.0
    %2055 = vmatprep.subr.mxu0 0.0
    %2056 = vmatpush2.msra.mxu0 0.0
    %2057 = vmatprep.subr.mxu0 0.0
    %2058 = vmatpush2.msra.mxu0 0.0
    %2059 = vmatprep.subr.mxu0 0.0
    %2060 = vmatpush2.msra.mxu0 0.0
    %2061 = vmatprep.subr.mxu0 0.0
    %2062 = vmatpush2.msra.mxu0 0.0
    %2063 = vmatprep.subr.mxu0 0.0
    %2064 = vmatpush2.msra.mxu0 0.0
    %2065 = vmatprep.subr.mxu0 0.0
    %2066 = vmatpush2.msra.mxu0 0.0
    %2067 = vmatprep.subr.mxu0 0.0
    %2068 = vmatpush2.msra.mxu0 0.0
    %2069 = vmatprep.mubr.f32.mxu0 0.0
    %2070 = vmatmul.mubr.f32.gmra.mxu0 %v1443
    %v2071 = vpop.f32.mrf.mxu0
    %v2072 = vadd.f32 0.0, %v2071
    %v2073 = vpop.f32.mrf.mxu0
    %v2074 = vadd.f32 0.0, %v2073
    %2075 = vmatprep.mubr.f32.mxu0 0.0
    %2076 = vmatmul.mubr.f32.gmra.mxu0 %v1444
    %v2077 = vpop.f32.mrf.mxu0
    %v2078 = vadd.f32 0.0, %v2077
    %v2079 = vpop.f32.mrf.mxu0
    %v2080 = vadd.f32 0.0, %v2079
    %2081 = vmatprep.mubr.f32.mxu0 0.0
    %2082 = vmatmul.mubr.f32.gmra.mxu0 %v1445
    %v2083 = vpop.f32.mrf.mxu0
    %v2084 = vadd.f32 0.0, %v2083
    %v2085 = vpop.f32.mrf.mxu0
    %v2086 = vadd.f32 0.0, %v2085
    %2087 = vmatprep.mubr.f32.mxu0 0.0
    %2088 = vmatmul.mubr.f32.gmra.mxu0 %v1446
    %v2089 = vpop.f32.mrf.mxu0
    %v2090 = vadd.f32 0.0, %v2089
    %v2091 = vpop.f32.mrf.mxu0
    %v2092 = vadd.f32 0.0, %v2091
    %2093 = vmatprep.mubr.f32.mxu0 0.0
    %2094 = vmatmul.mubr.f32.gmra.mxu0 %v1447
    %v2095 = vpop.f32.mrf.mxu0
    %v2096 = vadd.f32 0.0, %v2095
    %v2097 = vpop.f32.mrf.mxu0
    %v2098 = vadd.f32 0.0, %v2097
    %2099 = vmatprep.mubr.f32.mxu0 0.0
    %2100 = vmatmul.mubr.f32.gmra.mxu0 %v1448
    %v2101 = vpop.f32.mrf.mxu0
    %v2102 = vadd.f32 0.0, %v2101
    %v2103 = vpop.f32.mrf.mxu0
    %v2104 = vadd.f32 0.0, %v2103
    %2105 = vmatprep.mubr.f32.mxu0 0.0
    %2106 = vmatmul.mubr.f32.gmra.mxu0 %v1449
    %v2107 = vpop.f32.mrf.mxu0
    %v2108 = vadd.f32 0.0, %v2107
    %v2109 = vpop.f32.mrf.mxu0
    %v2110 = vadd.f32 0.0, %v2109
    %2111 = vmatprep.mubr.f32.mxu0 0.0
    %2112 = vmatmul.mubr.f32.gmra.mxu0 %v1450
    %v2113 = vpop.f32.mrf.mxu0
    %v2114 = vadd.f32 0.0, %v2113
    %v2115 = vpop.f32.mrf.mxu0
    %v2116 = vadd.f32 0.0, %v2115
    %2117 = vmatprep.mubr.f32.mxu0 0.0
    %2118 = vmatmul.mubr.f32.gmra.mxu0 %v1451
    %v2119 = vpop.f32.mrf.mxu0
    %v2120 = vadd.f32 0.0, %v2119
    %v2121 = vpop.f32.mrf.mxu0
    %v2122 = vadd.f32 0.0, %v2121
    %2123 = vmatprep.mubr.f32.mxu0 0.0
    %2124 = vmatmul.mubr.f32.gmra.mxu0 %v1452
    %v2125 = vpop.f32.mrf.mxu0
    %v2126 = vadd.f32 0.0, %v2125
    %v2127 = vpop.f32.mrf.mxu0
    %v2128 = vadd.f32 0.0, %v2127
    %2129 = vmatprep.mubr.f32.mxu0 0.0
    %2130 = vmatmul.mubr.f32.gmra.mxu0 %v1453
    %v2131 = vpop.f32.mrf.mxu0
    %v2132 = vadd.f32 0.0, %v2131
    %v2133 = vpop.f32.mrf.mxu0
    %v2134 = vadd.f32 0.0, %v2133
    %2135 = vmatprep.mubr.f32.mxu0 0.0
    %2136 = vmatmul.mubr.f32.gmra.mxu0 %v1454
    %v2137 = vpop.f32.mrf.mxu0
    %v2138 = vadd.f32 0.0, %v2137
    %v2139 = vpop.f32.mrf.mxu0
    %v2140 = vadd.f32 0.0, %v2139
    %2141 = vmatprep.mubr.f32.mxu0 0.0
    %2142 = vmatmul.mubr.f32.gmra.mxu0 %v1455
    %v2143 = vpop.f32.mrf.mxu0
    %v2144 = vadd.f32 0.0, %v2143
    %v2145 = vpop.f32.mrf.mxu0
    %v2146 = vadd.f32 0.0, %v2145
    %2147 = vmatprep.mubr.f32.mxu0 0.0
    %2148 = vmatmul.mubr.f32.gmra.mxu0 %v1456
    %v2149 = vpop.f32.mrf.mxu0
    %v2150 = vadd.f32 0.0, %v2149
    %v2151 = vpop.f32.mrf.mxu0
    %v2152 = vadd.f32 0.0, %v2151
    %2153 = vmatprep.mubr.f32.mxu0 0.0
    %2154 = vmatmul.mubr.f32.gmra.mxu0 %v1457
    %v2155 = vpop.f32.mrf.mxu0
    %v2156 = vadd.f32 0.0, %v2155
    %v2157 = vpop.f32.mrf.mxu0
    %v2158 = vadd.f32 0.0, %v2157
    %2159 = vmatprep.mubr.f32.mxu0 0.0
    %2160 = vmatmul.mubr.f32.gmra.mxu0 %v1458
    %v2161 = vpop.f32.mrf.mxu0
    %v2162 = vadd.f32 0.0, %v2161
    %v2163 = vpop.f32.mrf.mxu0
    %v2164 = vadd.f32 0.0, %v2163
    %2165 = vmatprep.mubr.f32.mxu0 0.0
    %2166 = vmatmul.mubr.f32.gmra.mxu0 %v1459
    %v2167 = vpop.f32.mrf.mxu0
    %v2168 = vadd.f32 0.0, %v2167
    %v2169 = vpop.f32.mrf.mxu0
    %v2170 = vadd.f32 0.0, %v2169
    %2171 = vmatprep.mubr.f32.mxu0 0.0
    %2172 = vmatmul.mubr.f32.gmra.mxu0 %v1460
    %v2173 = vpop.f32.mrf.mxu0
    %v2174 = vadd.f32 0.0, %v2173
    %v2175 = vpop.f32.mrf.mxu0
    %v2176 = vadd.f32 0.0, %v2175
    %2177 = vmatprep.mubr.f32.mxu0 0.0
    %2178 = vmatmul.mubr.f32.gmra.mxu0 %v1461
    %v2179 = vpop.f32.mrf.mxu0
    %v2180 = vadd.f32 0.0, %v2179
    %v2181 = vpop.f32.mrf.mxu0
    %v2182 = vadd.f32 0.0, %v2181
    %2183 = vmatprep.mubr.f32.mxu0 0.0
    %2184 = vmatmul.mubr.f32.gmra.mxu0 %v1462
    %v2185 = vpop.f32.mrf.mxu0
    %v2186 = vadd.f32 0.0, %v2185
    %v2187 = vpop.f32.mrf.mxu0
    %v2188 = vadd.f32 0.0, %v2187
    %2189 = vmatprep.mubr.f32.mxu0 0.0
    %2190 = vmatmul.mubr.f32.gmra.mxu0 %v1463
    %v2191 = vpop.f32.mrf.mxu0
    %v2192 = vadd.f32 0.0, %v2191
    %v2193 = vpop.f32.mrf.mxu0
    %v2194 = vadd.f32 0.0, %v2193
    %2195 = vmatprep.mubr.f32.mxu0 0.0
    %2196 = vmatmul.mubr.f32.gmra.mxu0 %v1464
    %v2197 = vpop.f32.mrf.mxu0
    %v2198 = vadd.f32 0.0, %v2197
    %v2199 = vpop.f32.mrf.mxu0
    %v2200 = vadd.f32 0.0, %v2199
    %2201 = vmatprep.mubr.f32.mxu0 0.0
    %2202 = vmatmul.mubr.f32.gmra.mxu0 %v1465
    %v2203 = vpop.f32.mrf.mxu0
    %v2204 = vadd.f32 0.0, %v2203
    %v2205 = vpop.f32.mrf.mxu0
    %v2206 = vadd.f32 0.0, %v2205
    %2207 = vmatprep.mubr.f32.mxu0 0.0
    %2208 = vmatmul.mubr.f32.gmra.mxu0 %v1466
    %v2209 = vpop.f32.mrf.mxu0
    %v2210 = vadd.f32 0.0, %v2209
    %v2211 = vpop.f32.mrf.mxu0
    %v2212 = vadd.f32 0.0, %v2211
    %2213 = vmatprep.mubr.f32.mxu0 0.0
    %2214 = vmatmul.mubr.f32.gmra.mxu0 %v1467
    %v2215 = vpop.f32.mrf.mxu0
    %v2216 = vadd.f32 0.0, %v2215
    %v2217 = vpop.f32.mrf.mxu0
    %v2218 = vadd.f32 0.0, %v2217
    %2219 = vmatprep.mubr.f32.mxu0 0.0
    %2220 = vmatmul.mubr.f32.gmra.mxu0 %v1468
    %v2221 = vpop.f32.mrf.mxu0
    %v2222 = vadd.f32 0.0, %v2221
    %v2223 = vpop.f32.mrf.mxu0
    %v2224 = vadd.f32 0.0, %v2223
    %2225 = vmatprep.mubr.f32.mxu0 0.0
    %2226 = vmatmul.mubr.f32.gmra.mxu0 %v1469
    %v2227 = vpop.f32.mrf.mxu0
    %v2228 = vadd.f32 0.0, %v2227
    %v2229 = vpop.f32.mrf.mxu0
    %v2230 = vadd.f32 0.0, %v2229
    %2231 = vmatprep.mubr.f32.mxu0 0.0
    %2232 = vmatmul.mubr.f32.gmra.mxu0 %v1470
    %v2233 = vpop.f32.mrf.mxu0
    %v2234 = vadd.f32 0.0, %v2233
    %v2235 = vpop.f32.mrf.mxu0
    %v2236 = vadd.f32 0.0, %v2235
    %2237 = vmatprep.mubr.f32.mxu0 0.0
    %2238 = vmatmul.mubr.f32.gmra.mxu0 %v1471
    %v2239 = vpop.f32.mrf.mxu0
    %v2240 = vadd.f32 0.0, %v2239
    %v2241 = vpop.f32.mrf.mxu0
    %v2242 = vadd.f32 0.0, %v2241
    %2243 = vmatprep.mubr.f32.mxu0 0.0
    %2244 = vmatmul.mubr.f32.gmra.mxu0 %v1472
    %v2245 = vpop.f32.mrf.mxu0
    %v2246 = vadd.f32 0.0, %v2245
    %v2247 = vpop.f32.mrf.mxu0
    %v2248 = vadd.f32 0.0, %v2247
    %2249 = vmatprep.mubr.f32.mxu0 0.0
    %2250 = vmatmul.mubr.f32.gmra.mxu0 %v1473
    %v2251 = vpop.f32.mrf.mxu0
    %v2252 = vadd.f32 0.0, %v2251
    %v2253 = vpop.f32.mrf.mxu0
    %v2254 = vadd.f32 0.0, %v2253
    %2255 = vmatprep.mubr.f32.mxu0 0.0
    %2256 = vmatmul.mubr.f32.gmra.mxu0 %v1474
    %v2257 = vpop.f32.mrf.mxu0
    %v2258 = vadd.f32 0.0, %v2257
    %v2259 = vpop.f32.mrf.mxu0
    %v2260 = vadd.f32 0.0, %v2259
    %2261 = vdwg.mxu0
    %2262 = vmatprep.subr.mxu0 0.0
    %2263 = vmatpush1.msra.mxu0 %v1522
    %2264 = vmatprep.subr.mxu0 0.0
    %2265 = vmatpush1.msra.mxu0 %v1519
    %2266 = vmatprep.subr.mxu0 0.0
    %2267 = vmatpush1.msra.mxu0 %v1516
    %2268 = vmatprep.subr.mxu0 0.0
    %2269 = vmatpush1.msra.mxu0 %v1513
    %2270 = vmatprep.subr.mxu0 0.0
    %2271 = vmatpush1.msra.mxu0 %v1510
    %2272 = vmatprep.subr.mxu0 0.0
    %2273 = vmatpush1.msra.mxu0 %v1507
    %2274 = vmatprep.subr.mxu0 0.0
    %2275 = vmatpush1.msra.mxu0 %v1504
    %2276 = vmatprep.subr.mxu0 0.0
    %2277 = vmatpush1.msra.mxu0 %v1501
    %2278 = vmatprep.subr.mxu0 0.0
    %2279 = vmatpush1.msra.mxu0 %v1498
    %2280 = vmatprep.subr.mxu0 0.0
    %2281 = vmatpush1.msra.mxu0 %v1495
    %2282 = vmatprep.subr.mxu0 0.0
    %2283 = vmatpush1.msra.mxu0 %v1492
    %2284 = vmatprep.subr.mxu0 0.0
    %2285 = vmatpush1.msra.mxu0 %v1489
    %2286 = vmatprep.subr.mxu0 0.0
    %2287 = vmatpush1.msra.mxu0 %v1486
    %2288 = vmatprep.subr.mxu0 0.0
    %2289 = vmatpush1.msra.mxu0 %v1483
    %2290 = vmatprep.subr.mxu0 0.0
    %2291 = vmatpush1.msra.mxu0 %v1480
    %2292 = vmatprep.subr.mxu0 0.0
    %2293 = vmatpush1.msra.mxu0 %v1477
    %2294 = vmatprep.subr.mxu0 0.0
    %2295 = vmatpush2.msra.mxu0 0.0
    %2296 = vmatprep.subr.mxu0 0.0
    %2297 = vmatpush2.msra.mxu0 0.0
    %2298 = vmatprep.subr.mxu0 0.0
    %2299 = vmatpush2.msra.mxu0 0.0
    %2300 = vmatprep.subr.mxu0 0.0
    %2301 = vmatpush2.msra.mxu0 0.0
    %2302 = vmatprep.subr.mxu0 0.0
    %2303 = vmatpush2.msra.mxu0 0.0
    %2304 = vmatprep.subr.mxu0 0.0
    %2305 = vmatpush2.msra.mxu0 0.0
    %2306 = vmatprep.subr.mxu0 0.0
    %2307 = vmatpush2.msra.mxu0 0.0
    %2308 = vmatprep.subr.mxu0 0.0
    %2309 = vmatpush2.msra.mxu0 0.0
    %2310 = vmatprep.subr.mxu0 0.0
    %2311 = vmatpush2.msra.mxu0 0.0
    %2312 = vmatprep.subr.mxu0 0.0
    %2313 = vmatpush2.msra.mxu0 0.0
    %2314 = vmatprep.subr.mxu0 0.0
    %2315 = vmatpush2.msra.mxu0 0.0
    %2316 = vmatprep.subr.mxu0 0.0
    %2317 = vmatpush2.msra.mxu0 0.0
    %2318 = vmatprep.subr.mxu0 0.0
    %2319 = vmatpush2.msra.mxu0 0.0
    %2320 = vmatprep.subr.mxu0 0.0
    %2321 = vmatpush2.msra.mxu0 0.0
    %2322 = vmatprep.subr.mxu0 0.0
    %2323 = vmatpush2.msra.mxu0 0.0
    %2324 = vmatprep.subr.mxu0 0.0
    %2325 = vmatpush2.msra.mxu0 0.0
    %2326 = vmatprep.mubr.f32.mxu0 0.0
    %2327 = vmatmul.mubr.f32.gmra.mxu0 %v1443
    %v2328 = vpop.f32.mrf.mxu0
    %v2329 = vadd.f32 0.0, %v2328
    %v2330 = vpop.f32.mrf.mxu0
    %2331 = vmatprep.mubr.f32.mxu0 0.0
    %2332 = vmatmul.mubr.f32.gmra.mxu0 %v1444
    %v2333 = vpop.f32.mrf.mxu0
    %v2334 = vadd.f32 0.0, %v2333
    %v2335 = vpop.f32.mrf.mxu0
    %2336 = vmatprep.mubr.f32.mxu0 0.0
    %2337 = vmatmul.mubr.f32.gmra.mxu0 %v1445
    %v2338 = vpop.f32.mrf.mxu0
    %v2339 = vadd.f32 0.0, %v2338
    %v2340 = vpop.f32.mrf.mxu0
    %2341 = vmatprep.mubr.f32.mxu0 0.0
    %2342 = vmatmul.mubr.f32.gmra.mxu0 %v1446
    %v2343 = vpop.f32.mrf.mxu0
    %v2344 = vadd.f32 0.0, %v2343
    %v2345 = vpop.f32.mrf.mxu0
    %2346 = vmatprep.mubr.f32.mxu0 0.0
    %2347 = vmatmul.mubr.f32.gmra.mxu0 %v1447
    %v2348 = vpop.f32.mrf.mxu0
    %v2349 = vadd.f32 0.0, %v2348
    %v2350 = vpop.f32.mrf.mxu0
    %2351 = vmatprep.mubr.f32.mxu0 0.0
    %2352 = vmatmul.mubr.f32.gmra.mxu0 %v1448
    %v2353 = vpop.f32.mrf.mxu0
    %v2354 = vadd.f32 0.0, %v2353
    %v2355 = vpop.f32.mrf.mxu0
    %2356 = vmatprep.mubr.f32.mxu0 0.0
    %2357 = vmatmul.mubr.f32.gmra.mxu0 %v1449
    %v2358 = vpop.f32.mrf.mxu0
    %v2359 = vadd.f32 0.0, %v2358
    %v2360 = vpop.f32.mrf.mxu0
    %2361 = vmatprep.mubr.f32.mxu0 0.0
    %2362 = vmatmul.mubr.f32.gmra.mxu0 %v1450
    %v2363 = vpop.f32.mrf.mxu0
    %v2364 = vadd.f32 0.0, %v2363
    %v2365 = vpop.f32.mrf.mxu0
    %2366 = vmatprep.mubr.f32.mxu0 0.0
    %2367 = vmatmul.mubr.f32.gmra.mxu0 %v1451
    %v2368 = vpop.f32.mrf.mxu0
    %v2369 = vadd.f32 0.0, %v2368
    %v2370 = vpop.f32.mrf.mxu0
    %2371 = vmatprep.mubr.f32.mxu0 0.0
    %2372 = vmatmul.mubr.f32.gmra.mxu0 %v1452
    %v2373 = vpop.f32.mrf.mxu0
    %v2374 = vadd.f32 0.0, %v2373
    %v2375 = vpop.f32.mrf.mxu0
    %2376 = vmatprep.mubr.f32.mxu0 0.0
    %2377 = vmatmul.mubr.f32.gmra.mxu0 %v1453
    %v2378 = vpop.f32.mrf.mxu0
    %v2379 = vadd.f32 0.0, %v2378
    %v2380 = vpop.f32.mrf.mxu0
    %2381 = vmatprep.mubr.f32.mxu0 0.0
    %2382 = vmatmul.mubr.f32.gmra.mxu0 %v1454
    %v2383 = vpop.f32.mrf.mxu0
    %v2384 = vadd.f32 0.0, %v2383
    %v2385 = vpop.f32.mrf.mxu0
    %2386 = vmatprep.mubr.f32.mxu0 0.0
    %2387 = vmatmul.mubr.f32.gmra.mxu0 %v1455
    %v2388 = vpop.f32.mrf.mxu0
    %v2389 = vadd.f32 0.0, %v2388
    %v2390 = vpop.f32.mrf.mxu0
    %2391 = vmatprep.mubr.f32.mxu0 0.0
    %2392 = vmatmul.mubr.f32.gmra.mxu0 %v1456
    %v2393 = vpop.f32.mrf.mxu0
    %v2394 = vadd.f32 0.0, %v2393
    %v2395 = vpop.f32.mrf.mxu0
    %2396 = vmatprep.mubr.f32.mxu0 0.0
    %2397 = vmatmul.mubr.f32.gmra.mxu0 %v1457
    %v2398 = vpop.f32.mrf.mxu0
    %v2399 = vadd.f32 0.0, %v2398
    %v2400 = vpop.f32.mrf.mxu0
    %2401 = vmatprep.mubr.f32.mxu0 0.0
    %2402 = vmatmul.mubr.f32.gmra.mxu0 %v1458
    %v2403 = vpop.f32.mrf.mxu0
    %v2404 = vadd.f32 0.0, %v2403
    %v2405 = vpop.f32.mrf.mxu0
    %2406 = vmatprep.mubr.f32.mxu0 0.0
    %2407 = vmatmul.mubr.f32.gmra.mxu0 %v1459
    %v2408 = vpop.f32.mrf.mxu0
    %v2409 = vadd.f32 0.0, %v2408
    %v2410 = vpop.f32.mrf.mxu0
    %2411 = vmatprep.mubr.f32.mxu0 0.0
    %2412 = vmatmul.mubr.f32.gmra.mxu0 %v1460
    %v2413 = vpop.f32.mrf.mxu0
    %v2414 = vadd.f32 0.0, %v2413
    %v2415 = vpop.f32.mrf.mxu0
    %2416 = vmatprep.mubr.f32.mxu0 0.0
    %2417 = vmatmul.mubr.f32.gmra.mxu0 %v1461
    %v2418 = vpop.f32.mrf.mxu0
    %v2419 = vadd.f32 0.0, %v2418
    %v2420 = vpop.f32.mrf.mxu0
    %2421 = vmatprep.mubr.f32.mxu0 0.0
    %2422 = vmatmul.mubr.f32.gmra.mxu0 %v1462
    %v2423 = vpop.f32.mrf.mxu0
    %v2424 = vadd.f32 0.0, %v2423
    %v2425 = vpop.f32.mrf.mxu0
    %2426 = vmatprep.mubr.f32.mxu0 0.0
    %2427 = vmatmul.mubr.f32.gmra.mxu0 %v1463
    %v2428 = vpop.f32.mrf.mxu0
    %v2429 = vadd.f32 0.0, %v2428
    %v2430 = vpop.f32.mrf.mxu0
    %2431 = vmatprep.mubr.f32.mxu0 0.0
    %2432 = vmatmul.mubr.f32.gmra.mxu0 %v1464
    %v2433 = vpop.f32.mrf.mxu0
    %v2434 = vadd.f32 0.0, %v2433
    %v2435 = vpop.f32.mrf.mxu0
    %2436 = vmatprep.mubr.f32.mxu0 0.0
    %2437 = vmatmul.mubr.f32.gmra.mxu0 %v1465
    %v2438 = vpop.f32.mrf.mxu0
    %v2439 = vadd.f32 0.0, %v2438
    %v2440 = vpop.f32.mrf.mxu0
    %2441 = vmatprep.mubr.f32.mxu0 0.0
    %2442 = vmatmul.mubr.f32.gmra.mxu0 %v1466
    %v2443 = vpop.f32.mrf.mxu0
    %v2444 = vadd.f32 0.0, %v2443
    %v2445 = vpop.f32.mrf.mxu0
    %2446 = vmatprep.mubr.f32.mxu0 0.0
    %2447 = vmatmul.mubr.f32.gmra.mxu0 %v1467
    %v2448 = vpop.f32.mrf.mxu0
    %v2449 = vadd.f32 0.0, %v2448
    %v2450 = vpop.f32.mrf.mxu0
    %2451 = vmatprep.mubr.f32.mxu0 0.0
    %2452 = vmatmul.mubr.f32.gmra.mxu0 %v1468
    %v2453 = vpop.f32.mrf.mxu0
    %v2454 = vadd.f32 0.0, %v2453
    %v2455 = vpop.f32.mrf.mxu0
    %2456 = vmatprep.mubr.f32.mxu0 0.0
    %2457 = vmatmul.mubr.f32.gmra.mxu0 %v1469
    %v2458 = vpop.f32.mrf.mxu0
    %v2459 = vadd.f32 0.0, %v2458
    %v2460 = vpop.f32.mrf.mxu0
    %2461 = vmatprep.mubr.f32.mxu0 0.0
    %2462 = vmatmul.mubr.f32.gmra.mxu0 %v1470
    %v2463 = vpop.f32.mrf.mxu0
    %v2464 = vadd.f32 0.0, %v2463
    %v2465 = vpop.f32.mrf.mxu0
    %2466 = vmatprep.mubr.f32.mxu0 0.0
    %2467 = vmatmul.mubr.f32.gmra.mxu0 %v1471
    %v2468 = vpop.f32.mrf.mxu0
    %v2469 = vadd.f32 0.0, %v2468
    %v2470 = vpop.f32.mrf.mxu0
    %2471 = vmatprep.mubr.f32.mxu0 0.0
    %2472 = vmatmul.mubr.f32.gmra.mxu0 %v1472
    %v2473 = vpop.f32.mrf.mxu0
    %v2474 = vadd.f32 0.0, %v2473
    %v2475 = vpop.f32.mrf.mxu0
    %2476 = vmatprep.mubr.f32.mxu0 0.0
    %2477 = vmatmul.mubr.f32.gmra.mxu0 %v1473
    %v2478 = vpop.f32.mrf.mxu0
    %v2479 = vadd.f32 0.0, %v2478
    %v2480 = vpop.f32.mrf.mxu0
    %2481 = vmatprep.mubr.f32.mxu0 0.0
    %2482 = vmatmul.mubr.f32.gmra.mxu0 %v1474
    %v2483 = vpop.f32.mrf.mxu0
    %v2484 = vadd.f32 0.0, %v2483
    %v2485 = vpop.f32.mrf.mxu0
    %2486 = vdwg.mxu0
    %v2487 = vmul.f32 %v1590, %v1592
    %v2488 = vmul.f32 %v1596, %v1598
    %v2489 = vmul.f32 %v1602, %v1604
    %v2490 = vmul.f32 %v1608, %v1610
    %v2491 = vmul.f32 %v1614, %v1616
    %v2492 = vmul.f32 %v1620, %v1622
    %v2493 = vmul.f32 %v1626, %v1628
    %v2494 = vmul.f32 %v1632, %v1634
    %v2495 = vmul.f32 %v1638, %v1640
    %v2496 = vmul.f32 %v1644, %v1646
    %v2497 = vmul.f32 %v1650, %v1652
    %v2498 = vmul.f32 %v1656, %v1658
    %v2499 = vmul.f32 %v1662, %v1664
    %v2500 = vmul.f32 %v1668, %v1670
    %v2501 = vmul.f32 %v1674, %v1676
    %v2502 = vmul.f32 %v1680, %v1682
    %v2503 = vmul.f32 %v1686, %v1688
    %v2504 = vmul.f32 %v1692, %v1694
    %v2505 = vmul.f32 %v1698, %v1700
    %v2506 = vmul.f32 %v1704, %v1706
    %v2507 = vmul.f32 %v1710, %v1712
    %v2508 = vmul.f32 %v1716, %v1718
    %v2509 = vmul.f32 %v1722, %v1724
    %v2510 = vmul.f32 %v1728, %v1730
    %v2511 = vmul.f32 %v1734, %v1736
    %v2512 = vmul.f32 %v1740, %v1742
    %v2513 = vmul.f32 %v1746, %v1748
    %v2514 = vmul.f32 %v1752, %v1754
    %v2515 = vmul.f32 %v1758, %v1760
    %v2516 = vmul.f32 %v1764, %v1766
    %v2517 = vmul.f32 %v1770, %v1772
    %v2518 = vmul.f32 %v1776, %v1778
    %2519 = vadd.xlane.f32.xlu0 %v2487
    %v2520 = vpop.xlane.xlu0 %2519
    %2521 = vadd.xlane.f32.xlu0 %v2488
    %v2522 = vpop.xlane.xlu0 %2521
    %2523 = vadd.xlane.f32.xlu0 %v2489
    %v2524 = vpop.xlane.xlu0 %2523
    %2525 = vadd.xlane.f32.xlu0 %v2490
    %v2526 = vpop.xlane.xlu0 %2525
    %2527 = vadd.xlane.f32.xlu0 %v2491
    %v2528 = vpop.xlane.xlu0 %2527
    %2529 = vadd.xlane.f32.xlu0 %v2492
    %v2530 = vpop.xlane.xlu0 %2529
    %2531 = vadd.xlane.f32.xlu0 %v2493
    %v2532 = vpop.xlane.xlu0 %2531
    %2533 = vadd.xlane.f32.xlu0 %v2494
    %v2534 = vpop.xlane.xlu0 %2533
    %2535 = vadd.xlane.f32.xlu0 %v2495
    %v2536 = vpop.xlane.xlu0 %2535
    %2537 = vadd.xlane.f32.xlu0 %v2496
    %v2538 = vpop.xlane.xlu0 %2537
    %2539 = vadd.xlane.f32.xlu0 %v2497
    %v2540 = vpop.xlane.xlu0 %2539
    %2541 = vadd.xlane.f32.xlu0 %v2498
    %v2542 = vpop.xlane.xlu0 %2541
    %2543 = vadd.xlane.f32.xlu0 %v2499
    %v2544 = vpop.xlane.xlu0 %2543
    %2545 = vadd.xlane.f32.xlu0 %v2500
    %v2546 = vpop.xlane.xlu0 %2545
    %2547 = vadd.xlane.f32.xlu0 %v2501
    %v2548 = vpop.xlane.xlu0 %2547
    %2549 = vadd.xlane.f32.xlu0 %v2502
    %v2550 = vpop.xlane.xlu0 %2549
    %2551 = vadd.xlane.f32.xlu0 %v2503
    %v2552 = vpop.xlane.xlu0 %2551
    %2553 = vadd.xlane.f32.xlu0 %v2504
    %v2554 = vpop.xlane.xlu0 %2553
    %2555 = vadd.xlane.f32.xlu0 %v2505
    %v2556 = vpop.xlane.xlu0 %2555
    %2557 = vadd.xlane.f32.xlu0 %v2506
    %v2558 = vpop.xlane.xlu0 %2557
    %2559 = vadd.xlane.f32.xlu0 %v2507
    %v2560 = vpop.xlane.xlu0 %2559
    %2561 = vadd.xlane.f32.xlu0 %v2508
    %v2562 = vpop.xlane.xlu0 %2561
    %2563 = vadd.xlane.f32.xlu0 %v2509
    %v2564 = vpop.xlane.xlu0 %2563
    %2565 = vadd.xlane.f32.xlu0 %v2510
    %v2566 = vpop.xlane.xlu0 %2565
    %2567 = vadd.xlane.f32.xlu0 %v2511
    %v2568 = vpop.xlane.xlu0 %2567
    %2569 = vadd.xlane.f32.xlu0 %v2512
    %v2570 = vpop.xlane.xlu0 %2569
    %2571 = vadd.xlane.f32.xlu0 %v2513
    %v2572 = vpop.xlane.xlu0 %2571
    %2573 = vadd.xlane.f32.xlu0 %v2514
    %v2574 = vpop.xlane.xlu0 %2573
    %2575 = vadd.xlane.f32.xlu0 %v2515
    %v2576 = vpop.xlane.xlu0 %2575
    %2577 = vadd.xlane.f32.xlu0 %v2516
    %v2578 = vpop.xlane.xlu0 %2577
    %2579 = vadd.xlane.f32.xlu0 %v2517
    %v2580 = vpop.xlane.xlu0 %2579
    %2581 = vadd.xlane.f32.xlu0 %v2518
    %v2582 = vpop.xlane.xlu0 %2581
    %v2583 = vmul.f32 %v2520, 0.17677669
    %v2584 = vmul.f32 %v2522, 0.17677669
    %v2585 = vmul.f32 %v2524, 0.17677669
    %v2586 = vmul.f32 %v2526, 0.17677669
    %v2587 = vmul.f32 %v2528, 0.17677669
    %v2588 = vmul.f32 %v2530, 0.17677669
    %v2589 = vmul.f32 %v2532, 0.17677669
    %v2590 = vmul.f32 %v2534, 0.17677669
    %v2591 = vmul.f32 %v2536, 0.17677669
    %v2592 = vmul.f32 %v2538, 0.17677669
    %v2593 = vmul.f32 %v2540, 0.17677669
    %v2594 = vmul.f32 %v2542, 0.17677669
    %v2595 = vmul.f32 %v2544, 0.17677669
    %v2596 = vmul.f32 %v2546, 0.17677669
    %v2597 = vmul.f32 %v2548, 0.17677669
    %v2598 = vmul.f32 %v2550, 0.17677669
    %v2599 = vmul.f32 %v2552, 0.17677669
    %v2600 = vmul.f32 %v2554, 0.17677669
    %v2601 = vmul.f32 %v2556, 0.17677669
    %v2602 = vmul.f32 %v2558, 0.17677669
    %v2603 = vmul.f32 %v2560, 0.17677669
    %v2604 = vmul.f32 %v2562, 0.17677669
    %v2605 = vmul.f32 %v2564, 0.17677669
    %v2606 = vmul.f32 %v2566, 0.17677669
    %v2607 = vmul.f32 %v2568, 0.17677669
    %v2608 = vmul.f32 %v2570, 0.17677669
    %v2609 = vmul.f32 %v2572, 0.17677669
    %v2610 = vmul.f32 %v2574, 0.17677669
    %v2611 = vmul.f32 %v2576, 0.17677669
    %v2612 = vmul.f32 %v2578, 0.17677669
    %v2613 = vmul.f32 %v2580, 0.17677669
    %v2614 = vmul.f32 %v2582, 0.17677669
    %v2615 = vmul.f32 %v2072, %v2074
    %v2616 = vmul.f32 %v2078, %v2080
    %v2617 = vmul.f32 %v2084, %v2086
    %v2618 = vmul.f32 %v2090, %v2092
    %v2619 = vmul.f32 %v2096, %v2098
    %v2620 = vmul.f32 %v2102, %v2104
    %v2621 = vmul.f32 %v2108, %v2110
    %v2622 = vmul.f32 %v2114, %v2116
    %v2623 = vmul.f32 %v2120, %v2122
    %v2624 = vmul.f32 %v2126, %v2128
    %v2625 = vmul.f32 %v2132, %v2134
    %v2626 = vmul.f32 %v2138, %v2140
    %v2627 = vmul.f32 %v2144, %v2146
    %v2628 = vmul.f32 %v2150, %v2152
    %v2629 = vmul.f32 %v2156, %v2158
    %v2630 = vmul.f32 %v2162, %v2164
    %v2631 = vmul.f32 %v2168, %v2170
    %v2632 = vmul.f32 %v2174, %v2176
    %v2633 = vmul.f32 %v2180, %v2182
    %v2634 = vmul.f32 %v2186, %v2188
    %v2635 = vmul.f32 %v2192, %v2194
    %v2636 = vmul.f32 %v2198, %v2200
    %v2637 = vmul.f32 %v2204, %v2206
    %v2638 = vmul.f32 %v2210, %v2212
    %v2639 = vmul.f32 %v2216, %v2218
    %v2640 = vmul.f32 %v2222, %v2224
    %v2641 = vmul.f32 %v2228, %v2230
    %v2642 = vmul.f32 %v2234, %v2236
    %v2643 = vmul.f32 %v2240, %v2242
    %v2644 = vmul.f32 %v2246, %v2248
    %v2645 = vmul.f32 %v2252, %v2254
    %v2646 = vmul.f32 %v2258, %v2260
    %2647 = vadd.xlane.f32.xlu0 %v2615
    %v2648 = vpop.xlane.xlu0 %2647
    %2649 = vadd.xlane.f32.xlu0 %v2616
    %v2650 = vpop.xlane.xlu0 %2649
    %2651 = vadd.xlane.f32.xlu0 %v2617
    %v2652 = vpop.xlane.xlu0 %2651
    %2653 = vadd.xlane.f32.xlu0 %v2618
    %v2654 = vpop.xlane.xlu0 %2653
    %2655 = vadd.xlane.f32.xlu0 %v2619
    %v2656 = vpop.xlane.xlu0 %2655
    %2657 = vadd.xlane.f32.xlu0 %v2620
    %v2658 = vpop.xlane.xlu0 %2657
    %2659 = vadd.xlane.f32.xlu0 %v2621
    %v2660 = vpop.xlane.xlu0 %2659
    %2661 = vadd.xlane.f32.xlu0 %v2622
    %v2662 = vpop.xlane.xlu0 %2661
    %2663 = vadd.xlane.f32.xlu0 %v2623
    %v2664 = vpop.xlane.xlu0 %2663
    %2665 = vadd.xlane.f32.xlu0 %v2624
    %v2666 = vpop.xlane.xlu0 %2665
    %2667 = vadd.xlane.f32.xlu0 %v2625
    %v2668 = vpop.xlane.xlu0 %2667
    %2669 = vadd.xlane.f32.xlu0 %v2626
    %v2670 = vpop.xlane.xlu0 %2669
    %2671 = vadd.xlane.f32.xlu0 %v2627
    %v2672 = vpop.xlane.xlu0 %2671
    %2673 = vadd.xlane.f32.xlu0 %v2628
    %v2674 = vpop.xlane.xlu0 %2673
    %2675 = vadd.xlane.f32.xlu0 %v2629
    %v2676 = vpop.xlane.xlu0 %2675
    %2677 = vadd.xlane.f32.xlu0 %v2630
    %v2678 = vpop.xlane.xlu0 %2677
    %2679 = vadd.xlane.f32.xlu0 %v2631
    %v2680 = vpop.xlane.xlu0 %2679
    %2681 = vadd.xlane.f32.xlu0 %v2632
    %v2682 = vpop.xlane.xlu0 %2681
    %2683 = vadd.xlane.f32.xlu0 %v2633
    %v2684 = vpop.xlane.xlu0 %2683
    %2685 = vadd.xlane.f32.xlu0 %v2634
    %v2686 = vpop.xlane.xlu0 %2685
    %2687 = vadd.xlane.f32.xlu0 %v2635
    %v2688 = vpop.xlane.xlu0 %2687
    %2689 = vadd.xlane.f32.xlu0 %v2636
    %v2690 = vpop.xlane.xlu0 %2689
    %2691 = vadd.xlane.f32.xlu0 %v2637
    %v2692 = vpop.xlane.xlu0 %2691
    %2693 = vadd.xlane.f32.xlu0 %v2638
    %v2694 = vpop.xlane.xlu0 %2693
    %2695 = vadd.xlane.f32.xlu0 %v2639
    %v2696 = vpop.xlane.xlu0 %2695
    %2697 = vadd.xlane.f32.xlu0 %v2640
    %v2698 = vpop.xlane.xlu0 %2697
    %2699 = vadd.xlane.f32.xlu0 %v2641
    %v2700 = vpop.xlane.xlu0 %2699
    %2701 = vadd.xlane.f32.xlu0 %v2642
    %v2702 = vpop.xlane.xlu0 %2701
    %2703 = vadd.xlane.f32.xlu0 %v2643
    %v2704 = vpop.xlane.xlu0 %2703
    %2705 = vadd.xlane.f32.xlu0 %v2644
    %v2706 = vpop.xlane.xlu0 %2705
    %2707 = vadd.xlane.f32.xlu0 %v2645
    %v2708 = vpop.xlane.xlu0 %2707
    %2709 = vadd.xlane.f32.xlu0 %v2646
    %v2710 = vpop.xlane.xlu0 %2709
    %v2711 = vmul.f32 %v2648, 0.17677669
    %v2712 = vmul.f32 %v2650, 0.17677669
    %v2713 = vmul.f32 %v2652, 0.17677669
    %v2714 = vmul.f32 %v2654, 0.17677669
    %v2715 = vmul.f32 %v2656, 0.17677669
    %v2716 = vmul.f32 %v2658, 0.17677669
    %v2717 = vmul.f32 %v2660, 0.17677669
    %v2718 = vmul.f32 %v2662, 0.17677669
    %v2719 = vmul.f32 %v2664, 0.17677669
    %v2720 = vmul.f32 %v2666, 0.17677669
    %v2721 = vmul.f32 %v2668, 0.17677669
    %v2722 = vmul.f32 %v2670, 0.17677669
    %v2723 = vmul.f32 %v2672, 0.17677669
    %v2724 = vmul.f32 %v2674, 0.17677669
    %v2725 = vmul.f32 %v2676, 0.17677669
    %v2726 = vmul.f32 %v2678, 0.17677669
    %v2727 = vmul.f32 %v2680, 0.17677669
    %v2728 = vmul.f32 %v2682, 0.17677669
    %v2729 = vmul.f32 %v2684, 0.17677669
    %v2730 = vmul.f32 %v2686, 0.17677669
    %v2731 = vmul.f32 %v2688, 0.17677669
    %v2732 = vmul.f32 %v2690, 0.17677669
    %v2733 = vmul.f32 %v2692, 0.17677669
    %v2734 = vmul.f32 %v2694, 0.17677669
    %v2735 = vmul.f32 %v2696, 0.17677669
    %v2736 = vmul.f32 %v2698, 0.17677669
    %v2737 = vmul.f32 %v2700, 0.17677669
    %v2738 = vmul.f32 %v2702, 0.17677669
    %v2739 = vmul.f32 %v2704, 0.17677669
    %v2740 = vmul.f32 %v2706, 0.17677669
    %v2741 = vmul.f32 %v2708, 0.17677669
    %v2742 = vmul.f32 %v2710, 0.17677669
    %v2743 = vmax.f32 %v2583, %v2711
    %v2744 = vmax.f32 %v2584, %v2712
    %v2745 = vmax.f32 %v2585, %v2713
    %v2746 = vmax.f32 %v2586, %v2714
    %v2747 = vmax.f32 %v2587, %v2715
    %v2748 = vmax.f32 %v2588, %v2716
    %v2749 = vmax.f32 %v2589, %v2717
    %v2750 = vmax.f32 %v2590, %v2718
    %v2751 = vmax.f32 %v2591, %v2719
    %v2752 = vmax.f32 %v2592, %v2720
    %v2753 = vmax.f32 %v2593, %v2721
    %v2754 = vmax.f32 %v2594, %v2722
    %v2755 = vmax.f32 %v2595, %v2723
    %v2756 = vmax.f32 %v2596, %v2724
    %v2757 = vmax.f32 %v2597, %v2725
    %v2758 = vmax.f32 %v2598, %v2726
    %v2759 = vmax.f32 %v2599, %v2727
    %v2760 = vmax.f32 %v2600, %v2728
    %v2761 = vmax.f32 %v2601, %v2729
    %v2762 = vmax.f32 %v2602, %v2730
    %v2763 = vmax.f32 %v2603, %v2731
    %v2764 = vmax.f32 %v2604, %v2732
    %v2765 = vmax.f32 %v2605, %v2733
    %v2766 = vmax.f32 %v2606, %v2734
    %v2767 = vmax.f32 %v2607, %v2735
    %v2768 = vmax.f32 %v2608, %v2736
    %v2769 = vmax.f32 %v2609, %v2737
    %v2770 = vmax.f32 %v2610, %v2738
    %v2771 = vmax.f32 %v2611, %v2739
    %v2772 = vmax.f32 %v2612, %v2740
    %v2773 = vmax.f32 %v2613, %v2741
    %v2774 = vmax.f32 %v2614, %v2742
    %v2775 = vsub.f32 %v2583, %v2743
    %v2776 = vsub.f32 %v2584, %v2744
    %v2777 = vsub.f32 %v2585, %v2745
    %v2778 = vsub.f32 %v2586, %v2746
    %v2779 = vsub.f32 %v2587, %v2747
    %v2780 = vsub.f32 %v2588, %v2748
    %v2781 = vsub.f32 %v2589, %v2749
    %v2782 = vsub.f32 %v2590, %v2750
    %v2783 = vsub.f32 %v2591, %v2751
    %v2784 = vsub.f32 %v2592, %v2752
    %v2785 = vsub.f32 %v2593, %v2753
    %v2786 = vsub.f32 %v2594, %v2754
    %v2787 = vsub.f32 %v2595, %v2755
    %v2788 = vsub.f32 %v2596, %v2756
    %v2789 = vsub.f32 %v2597, %v2757
    %v2790 = vsub.f32 %v2598, %v2758
    %v2791 = vsub.f32 %v2599, %v2759
    %v2792 = vsub.f32 %v2600, %v2760
    %v2793 = vsub.f32 %v2601, %v2761
    %v2794 = vsub.f32 %v2602, %v2762
    %v2795 = vsub.f32 %v2603, %v2763
    %v2796 = vsub.f32 %v2604, %v2764
    %v2797 = vsub.f32 %v2605, %v2765
    %v2798 = vsub.f32 %v2606, %v2766
    %v2799 = vsub.f32 %v2607, %v2767
    %v2800 = vsub.f32 %v2608, %v2768
    %v2801 = vsub.f32 %v2609, %v2769
    %v2802 = vsub.f32 %v2610, %v2770
    %v2803 = vsub.f32 %v2611, %v2771
    %v2804 = vsub.f32 %v2612, %v2772
    %v2805 = vsub.f32 %v2613, %v2773
    %v2806 = vsub.f32 %v2614, %v2774
    %v2807 = vmul.f32 %v2775, 1.442695
    %v2808 = vpow.pop %v2807
    %v2809 = vmul.f32 %v2776, 1.442695
    %v2810 = vpow.pop %v2809
    %v2811 = vmul.f32 %v2777, 1.442695
    %v2812 = vpow.pop %v2811
    %v2813 = vmul.f32 %v2778, 1.442695
    %v2814 = vpow.pop %v2813
    %v2815 = vmul.f32 %v2779, 1.442695
    %v2816 = vpow.pop %v2815
    %v2817 = vmul.f32 %v2780, 1.442695
    %v2818 = vpow.pop %v2817
    %v2819 = vmul.f32 %v2781, 1.442695
    %v2820 = vpow.pop %v2819
    %v2821 = vmul.f32 %v2782, 1.442695
    %v2822 = vpow.pop %v2821
    %v2823 = vmul.f32 %v2783, 1.442695
    %v2824 = vpow.pop %v2823
    %v2825 = vmul.f32 %v2784, 1.442695
    %v2826 = vpow.pop %v2825
    %v2827 = vmul.f32 %v2785, 1.442695
    %v2828 = vpow.pop %v2827
    %v2829 = vmul.f32 %v2786, 1.442695
    %v2830 = vpow.pop %v2829
    %v2831 = vmul.f32 %v2787, 1.442695
    %v2832 = vpow.pop %v2831
    %v2833 = vmul.f32 %v2788, 1.442695
    %v2834 = vpow.pop %v2833
    %v2835 = vmul.f32 %v2789, 1.442695
    %v2836 = vpow.pop %v2835
    %v2837 = vmul.f32 %v2790, 1.442695
    %v2838 = vpow.pop %v2837
    %v2839 = vmul.f32 %v2791, 1.442695
    %v2840 = vpow.pop %v2839
    %v2841 = vmul.f32 %v2792, 1.442695
    %v2842 = vpow.pop %v2841
    %v2843 = vmul.f32 %v2793, 1.442695
    %v2844 = vpow.pop %v2843
    %v2845 = vmul.f32 %v2794, 1.442695
    %v2846 = vpow.pop %v2845
    %v2847 = vmul.f32 %v2795, 1.442695
    %v2848 = vpow.pop %v2847
    %v2849 = vmul.f32 %v2796, 1.442695
    %v2850 = vpow.pop %v2849
    %v2851 = vmul.f32 %v2797, 1.442695
    %v2852 = vpow.pop %v2851
    %v2853 = vmul.f32 %v2798, 1.442695
    %v2854 = vpow.pop %v2853
    %v2855 = vmul.f32 %v2799, 1.442695
    %v2856 = vpow.pop %v2855
    %v2857 = vmul.f32 %v2800, 1.442695
    %v2858 = vpow.pop %v2857
    %v2859 = vmul.f32 %v2801, 1.442695
    %v2860 = vpow.pop %v2859
    %v2861 = vmul.f32 %v2802, 1.442695
    %v2862 = vpow.pop %v2861
    %v2863 = vmul.f32 %v2803, 1.442695
    %v2864 = vpow.pop %v2863
    %v2865 = vmul.f32 %v2804, 1.442695
    %v2866 = vpow.pop %v2865
    %v2867 = vmul.f32 %v2805, 1.442695
    %v2868 = vpow.pop %v2867
    %v2869 = vmul.f32 %v2806, 1.442695
    %v2870 = vpow.pop %v2869
    %v2871 = vsub.f32 %v2711, %v2743
    %v2872 = vsub.f32 %v2712, %v2744
    %v2873 = vsub.f32 %v2713, %v2745
    %v2874 = vsub.f32 %v2714, %v2746
    %v2875 = vsub.f32 %v2715, %v2747
    %v2876 = vsub.f32 %v2716, %v2748
    %v2877 = vsub.f32 %v2717, %v2749
    %v2878 = vsub.f32 %v2718, %v2750
    %v2879 = vsub.f32 %v2719, %v2751
    %v2880 = vsub.f32 %v2720, %v2752
    %v2881 = vsub.f32 %v2721, %v2753
    %v2882 = vsub.f32 %v2722, %v2754
    %v2883 = vsub.f32 %v2723, %v2755
    %v2884 = vsub.f32 %v2724, %v2756
    %v2885 = vsub.f32 %v2725, %v2757
    %v2886 = vsub.f32 %v2726, %v2758
    %v2887 = vsub.f32 %v2727, %v2759
    %v2888 = vsub.f32 %v2728, %v2760
    %v2889 = vsub.f32 %v2729, %v2761
    %v2890 = vsub.f32 %v2730, %v2762
    %v2891 = vsub.f32 %v2731, %v2763
    %v2892 = vsub.f32 %v2732, %v2764
    %v2893 = vsub.f32 %v2733, %v2765
    %v2894 = vsub.f32 %v2734, %v2766
    %v2895 = vsub.f32 %v2735, %v2767
    %v2896 = vsub.f32 %v2736, %v2768
    %v2897 = vsub.f32 %v2737, %v2769
    %v2898 = vsub.f32 %v2738, %v2770
    %v2899 = vsub.f32 %v2739, %v2771
    %v2900 = vsub.f32 %v2740, %v2772
    %v2901 = vsub.f32 %v2741, %v2773
    %v2902 = vsub.f32 %v2742, %v2774
    %v2903 = vmul.f32 %v2871, 1.442695
    %v2904 = vpow.pop %v2903
    %v2905 = vmul.f32 %v2872, 1.442695
    %v2906 = vpow.pop %v2905
    %v2907 = vmul.f32 %v2873, 1.442695
    %v2908 = vpow.pop %v2907
    %v2909 = vmul.f32 %v2874, 1.442695
    %v2910 = vpow.pop %v2909
    %v2911 = vmul.f32 %v2875, 1.442695
    %v2912 = vpow.pop %v2911
    %v2913 = vmul.f32 %v2876, 1.442695
    %v2914 = vpow.pop %v2913
    %v2915 = vmul.f32 %v2877, 1.442695
    %v2916 = vpow.pop %v2915
    %v2917 = vmul.f32 %v2878, 1.442695
    %v2918 = vpow.pop %v2917
    %v2919 = vmul.f32 %v2879, 1.442695
    %v2920 = vpow.pop %v2919
    %v2921 = vmul.f32 %v2880, 1.442695
    %v2922 = vpow.pop %v2921
    %v2923 = vmul.f32 %v2881, 1.442695
    %v2924 = vpow.pop %v2923
    %v2925 = vmul.f32 %v2882, 1.442695
    %v2926 = vpow.pop %v2925
    %v2927 = vmul.f32 %v2883, 1.442695
    %v2928 = vpow.pop %v2927
    %v2929 = vmul.f32 %v2884, 1.442695
    %v2930 = vpow.pop %v2929
    %v2931 = vmul.f32 %v2885, 1.442695
    %v2932 = vpow.pop %v2931
    %v2933 = vmul.f32 %v2886, 1.442695
    %v2934 = vpow.pop %v2933
    %v2935 = vmul.f32 %v2887, 1.442695
    %v2936 = vpow.pop %v2935
    %v2937 = vmul.f32 %v2888, 1.442695
    %v2938 = vpow.pop %v2937
    %v2939 = vmul.f32 %v2889, 1.442695
    %v2940 = vpow.pop %v2939
    %v2941 = vmul.f32 %v2890, 1.442695
    %v2942 = vpow.pop %v2941
    %v2943 = vmul.f32 %v2891, 1.442695
    %v2944 = vpow.pop %v2943
    %v2945 = vmul.f32 %v2892, 1.442695
    %v2946 = vpow.pop %v2945
    %v2947 = vmul.f32 %v2893, 1.442695
    %v2948 = vpow.pop %v2947
    %v2949 = vmul.f32 %v2894, 1.442695
    %v2950 = vpow.pop %v2949
    %v2951 = vmul.f32 %v2895, 1.442695
    %v2952 = vpow.pop %v2951
    %v2953 = vmul.f32 %v2896, 1.442695
    %v2954 = vpow.pop %v2953
    %v2955 = vmul.f32 %v2897, 1.442695
    %v2956 = vpow.pop %v2955
    %v2957 = vmul.f32 %v2898, 1.442695
    %v2958 = vpow.pop %v2957
    %v2959 = vmul.f32 %v2899, 1.442695
    %v2960 = vpow.pop %v2959
    %v2961 = vmul.f32 %v2900, 1.442695
    %v2962 = vpow.pop %v2961
    %v2963 = vmul.f32 %v2901, 1.442695
    %v2964 = vpow.pop %v2963
    %v2965 = vmul.f32 %v2902, 1.442695
    %v2966 = vpow.pop %v2965
    %v2967 = vadd.f32 %v2808, %v2904
    %v2968 = vadd.f32 %v2810, %v2906
    %v2969 = vadd.f32 %v2812, %v2908
    %v2970 = vadd.f32 %v2814, %v2910
    %v2971 = vadd.f32 %v2816, %v2912
    %v2972 = vadd.f32 %v2818, %v2914
    %v2973 = vadd.f32 %v2820, %v2916
    %v2974 = vadd.f32 %v2822, %v2918
    %v2975 = vadd.f32 %v2824, %v2920
    %v2976 = vadd.f32 %v2826, %v2922
    %v2977 = vadd.f32 %v2828, %v2924
    %v2978 = vadd.f32 %v2830, %v2926
    %v2979 = vadd.f32 %v2832, %v2928
    %v2980 = vadd.f32 %v2834, %v2930
    %v2981 = vadd.f32 %v2836, %v2932
    %v2982 = vadd.f32 %v2838, %v2934
    %v2983 = vadd.f32 %v2840, %v2936
    %v2984 = vadd.f32 %v2842, %v2938
    %v2985 = vadd.f32 %v2844, %v2940
    %v2986 = vadd.f32 %v2846, %v2942
    %v2987 = vadd.f32 %v2848, %v2944
    %v2988 = vadd.f32 %v2850, %v2946
    %v2989 = vadd.f32 %v2852, %v2948
    %v2990 = vadd.f32 %v2854, %v2950
    %v2991 = vadd.f32 %v2856, %v2952
    %v2992 = vadd.f32 %v2858, %v2954
    %v2993 = vadd.f32 %v2860, %v2956
    %v2994 = vadd.f32 %v2862, %v2958
    %v2995 = vadd.f32 %v2864, %v2960
    %v2996 = vadd.f32 %v2866, %v2962
    %v2997 = vadd.f32 %v2868, %v2964
    %v2998 = vadd.f32 %v2870, %v2966
    %v2999 = vrcp.pop %v2967
    %v3000 = vmul.f32 1.0, %v2999
    %v3001 = vrcp.pop %v2968
    %v3002 = vmul.f32 1.0, %v3001
    %v3003 = vrcp.pop %v2969
    %v3004 = vmul.f32 1.0, %v3003
    %v3005 = vrcp.pop %v2970
    %v3006 = vmul.f32 1.0, %v3005
    %v3007 = vrcp.pop %v2971
    %v3008 = vmul.f32 1.0, %v3007
    %v3009 = vrcp.pop %v2972
    %v3010 = vmul.f32 1.0, %v3009
    %v3011 = vrcp.pop %v2973
    %v3012 = vmul.f32 1.0, %v3011
    %v3013 = vrcp.pop %v2974
    %v3014 = vmul.f32 1.0, %v3013
    %v3015 = vrcp.pop %v2975
    %v3016 = vmul.f32 1.0, %v3015
    %v3017 = vrcp.pop %v2976
    %v3018 = vmul.f32 1.0, %v3017
    %v3019 = vrcp.pop %v2977
    %v3020 = vmul.f32 1.0, %v3019
    %v3021 = vrcp.pop %v2978
    %v3022 = vmul.f32 1.0, %v3021
    %v3023 = vrcp.pop %v2979
    %v3024 = vmul.f32 1.0, %v3023
    %v3025 = vrcp.pop %v2980
    %v3026 = vmul.f32 1.0, %v3025
    %v3027 = vrcp.pop %v2981
    %v3028 = vmul.f32 1.0, %v3027
    %v3029 = vrcp.pop %v2982
    %v3030 = vmul.f32 1.0, %v3029
    %v3031 = vrcp.pop %v2983
    %v3032 = vmul.f32 1.0, %v3031
    %v3033 = vrcp.pop %v2984
    %v3034 = vmul.f32 1.0, %v3033
    %v3035 = vrcp.pop %v2985
    %v3036 = vmul.f32 1.0, %v3035
    %v3037 = vrcp.pop %v2986
    %v3038 = vmul.f32 1.0, %v3037
    %v3039 = vrcp.pop %v2987
    %v3040 = vmul.f32 1.0, %v3039
    %v3041 = vrcp.pop %v2988
    %v3042 = vmul.f32 1.0, %v3041
    %v3043 = vrcp.pop %v2989
    %v3044 = vmul.f32 1.0, %v3043
    %v3045 = vrcp.pop %v2990
    %v3046 = vmul.f32 1.0, %v3045
    %v3047 = vrcp.pop %v2991
    %v3048 = vmul.f32 1.0, %v3047
    %v3049 = vrcp.pop %v2992
    %v3050 = vmul.f32 1.0, %v3049
    %v3051 = vrcp.pop %v2993
    %v3052 = vmul.f32 1.0, %v3051
    %v3053 = vrcp.pop %v2994
    %v3054 = vmul.f32 1.0, %v3053
    %v3055 = vrcp.pop %v2995
    %v3056 = vmul.f32 1.0, %v3055
    %v3057 = vrcp.pop %v2996
    %v3058 = vmul.f32 1.0, %v3057
    %v3059 = vrcp.pop %v2997
    %v3060 = vmul.f32 1.0, %v3059
    %v3061 = vrcp.pop %v2998
    %v3062 = vmul.f32 1.0, %v3061
    %v3063 = vmul.f32 %v2808, %v3000
    %v3064 = vmul.f32 %v2810, %v3002
    %v3065 = vmul.f32 %v2812, %v3004
    %v3066 = vmul.f32 %v2814, %v3006
    %v3067 = vmul.f32 %v2816, %v3008
    %v3068 = vmul.f32 %v2818, %v3010
    %v3069 = vmul.f32 %v2820, %v3012
    %v3070 = vmul.f32 %v2822, %v3014
    %v3071 = vmul.f32 %v2824, %v3016
    %v3072 = vmul.f32 %v2826, %v3018
    %v3073 = vmul.f32 %v2828, %v3020
    %v3074 = vmul.f32 %v2830, %v3022
    %v3075 = vmul.f32 %v2832, %v3024
    %v3076 = vmul.f32 %v2834, %v3026
    %v3077 = vmul.f32 %v2836, %v3028
    %v3078 = vmul.f32 %v2838, %v3030
    %v3079 = vmul.f32 %v2840, %v3032
    %v3080 = vmul.f32 %v2842, %v3034
    %v3081 = vmul.f32 %v2844, %v3036
    %v3082 = vmul.f32 %v2846, %v3038
    %v3083 = vmul.f32 %v2848, %v3040
    %v3084 = vmul.f32 %v2850, %v3042
    %v3085 = vmul.f32 %v2852, %v3044
    %v3086 = vmul.f32 %v2854, %v3046
    %v3087 = vmul.f32 %v2856, %v3048
    %v3088 = vmul.f32 %v2858, %v3050
    %v3089 = vmul.f32 %v2860, %v3052
    %v3090 = vmul.f32 %v2862, %v3054
    %v3091 = vmul.f32 %v2864, %v3056
    %v3092 = vmul.f32 %v2866, %v3058
    %v3093 = vmul.f32 %v2868, %v3060
    %v3094 = vmul.f32 %v2870, %v3062
    %v3095 = vmul.f32 %v3063, %v1847
    %v3096 = vmul.f32 %v3064, %v1852
    %v3097 = vmul.f32 %v3065, %v1857
    %v3098 = vmul.f32 %v3066, %v1862
    %v3099 = vmul.f32 %v3067, %v1867
    %v3100 = vmul.f32 %v3068, %v1872
    %v3101 = vmul.f32 %v3069, %v1877
    %v3102 = vmul.f32 %v3070, %v1882
    %v3103 = vmul.f32 %v3071, %v1887
    %v3104 = vmul.f32 %v3072, %v1892
    %v3105 = vmul.f32 %v3073, %v1897
    %v3106 = vmul.f32 %v3074, %v1902
    %v3107 = vmul.f32 %v3075, %v1907
    %v3108 = vmul.f32 %v3076, %v1912
    %v3109 = vmul.f32 %v3077, %v1917
    %v3110 = vmul.f32 %v3078, %v1922
    %v3111 = vmul.f32 %v3079, %v1927
    %v3112 = vmul.f32 %v3080, %v1932
    %v3113 = vmul.f32 %v3081, %v1937
    %v3114 = vmul.f32 %v3082, %v1942
    %v3115 = vmul.f32 %v3083, %v1947
    %v3116 = vmul.f32 %v3084, %v1952
    %v3117 = vmul.f32 %v3085, %v1957
    %v3118 = vmul.f32 %v3086, %v1962
    %v3119 = vmul.f32 %v3087, %v1967
    %v3120 = vmul.f32 %v3088, %v1972
    %v3121 = vmul.f32 %v3089, %v1977
    %v3122 = vmul.f32 %v3090, %v1982
    %v3123 = vmul.f32 %v3091, %v1987
    %v3124 = vmul.f32 %v3092, %v1992
    %v3125 = vmul.f32 %v3093, %v1997
    %v3126 = vmul.f32 %v3094, %v2002
    %v3127 = vmul.f32 %v2904, %v3000
    %v3128 = vmul.f32 %v2906, %v3002
    %v3129 = vmul.f32 %v2908, %v3004
    %v3130 = vmul.f32 %v2910, %v3006
    %v3131 = vmul.f32 %v2912, %v3008
    %v3132 = vmul.f32 %v2914, %v3010
    %v3133 = vmul.f32 %v2916, %v3012
    %v3134 = vmul.f32 %v2918, %v3014
    %v3135 = vmul.f32 %v2920, %v3016
    %v3136 = vmul.f32 %v2922, %v3018
    %v3137 = vmul.f32 %v2924, %v3020
    %v3138 = vmul.f32 %v2926, %v3022
    %v3139 = vmul.f32 %v2928, %v3024
    %v3140 = vmul.f32 %v2930, %v3026
    %v3141 = vmul.f32 %v2932, %v3028
    %v3142 = vmul.f32 %v2934, %v3030
    %v3143 = vmul.f32 %v2936, %v3032
    %v3144 = vmul.f32 %v2938, %v3034
    %v3145 = vmul.f32 %v2940, %v3036
    %v3146 = vmul.f32 %v2942, %v3038
    %v3147 = vmul.f32 %v2944, %v3040
    %v3148 = vmul.f32 %v2946, %v3042
    %v3149 = vmul.f32 %v2948, %v3044
    %v3150 = vmul.f32 %v2950, %v3046
    %v3151 = vmul.f32 %v2952, %v3048
    %v3152 = vmul.f32 %v2954, %v3050
    %v3153 = vmul.f32 %v2956, %v3052
    %v3154 = vmul.f32 %v2958, %v3054
    %v3155 = vmul.f32 %v2960, %v3056
    %v3156 = vmul.f32 %v2962, %v3058
    %v3157 = vmul.f32 %v2964, %v3060
    %v3158 = vmul.f32 %v2966, %v3062
    %v3159 = vmul.f32 %v3127, %v2329
    %v3160 = vmul.f32 %v3128, %v2334
    %v3161 = vmul.f32 %v3129, %v2339
    %v3162 = vmul.f32 %v3130, %v2344
    %v3163 = vmul.f32 %v3131, %v2349
    %v3164 = vmul.f32 %v3132, %v2354
    %v3165 = vmul.f32 %v3133, %v2359
    %v3166 = vmul.f32 %v3134, %v2364
    %v3167 = vmul.f32 %v3135, %v2369
    %v3168 = vmul.f32 %v3136, %v2374
    %v3169 = vmul.f32 %v3137, %v2379
    %v3170 = vmul.f32 %v3138, %v2384
    %v3171 = vmul.f32 %v3139, %v2389
    %v3172 = vmul.f32 %v3140, %v2394
    %v3173 = vmul.f32 %v3141, %v2399
    %v3174 = vmul.f32 %v3142, %v2404
    %v3175 = vmul.f32 %v3143, %v2409
    %v3176 = vmul.f32 %v3144, %v2414
    %v3177 = vmul.f32 %v3145, %v2419
    %v3178 = vmul.f32 %v3146, %v2424
    %v3179 = vmul.f32 %v3147, %v2429
    %v3180 = vmul.f32 %v3148, %v2434
    %v3181 = vmul.f32 %v3149, %v2439
    %v3182 = vmul.f32 %v3150, %v2444
    %v3183 = vmul.f32 %v3151, %v2449
    %v3184 = vmul.f32 %v3152, %v2454
    %v3185 = vmul.f32 %v3153, %v2459
    %v3186 = vmul.f32 %v3154, %v2464
    %v3187 = vmul.f32 %v3155, %v2469
    %v3188 = vmul.f32 %v3156, %v2474
    %v3189 = vmul.f32 %v3157, %v2479
    %v3190 = vmul.f32 %v3158, %v2484
    %v3191 = vadd.f32 %v3095, %v3159
    %v3192 = vadd.f32 %v3096, %v3160
    %v3193 = vadd.f32 %v3097, %v3161
    %v3194 = vadd.f32 %v3098, %v3162
    %v3195 = vadd.f32 %v3099, %v3163
    %v3196 = vadd.f32 %v3100, %v3164
    %v3197 = vadd.f32 %v3101, %v3165
    %v3198 = vadd.f32 %v3102, %v3166
    %v3199 = vadd.f32 %v3103, %v3167
    %v3200 = vadd.f32 %v3104, %v3168
    %v3201 = vadd.f32 %v3105, %v3169
    %v3202 = vadd.f32 %v3106, %v3170
    %v3203 = vadd.f32 %v3107, %v3171
    %v3204 = vadd.f32 %v3108, %v3172
    %v3205 = vadd.f32 %v3109, %v3173
    %v3206 = vadd.f32 %v3110, %v3174
    %v3207 = vadd.f32 %v3111, %v3175
    %v3208 = vadd.f32 %v3112, %v3176
    %v3209 = vadd.f32 %v3113, %v3177
    %v3210 = vadd.f32 %v3114, %v3178
    %v3211 = vadd.f32 %v3115, %v3179
    %v3212 = vadd.f32 %v3116, %v3180
    %v3213 = vadd.f32 %v3117, %v3181
    %v3214 = vadd.f32 %v3118, %v3182
    %v3215 = vadd.f32 %v3119, %v3183
    %v3216 = vadd.f32 %v3120, %v3184
    %v3217 = vadd.f32 %v3121, %v3185
    %v3218 = vadd.f32 %v3122, %v3186
    %v3219 = vadd.f32 %v3123, %v3187
    %v3220 = vadd.f32 %v3124, %v3188
    %v3221 = vadd.f32 %v3125, %v3189
    %v3222 = vadd.f32 %v3126, %v3190
    %v3223 = vld [vmem:[#allocation13] sm:$0xff]
    %v3224 = vld [vmem:[#allocation13 + $0x8] sm:$0xff]
    %v3225 = vld [vmem:[#allocation13 + $0x10] sm:$0xff]
    %v3226 = vld [vmem:[#allocation13 + $0x18] sm:$0xff]
    %v3227 = vld [vmem:[#allocation13 + $0x20] sm:$0xff]
    %v3228 = vld [vmem:[#allocation13 + $0x28] sm:$0xff]
    %v3229 = vld [vmem:[#allocation13 + $0x30] sm:$0xff]
    %v3230 = vld [vmem:[#allocation13 + $0x38] sm:$0xff]
    %v3231 = vld [vmem:[#allocation13 + $0x40] sm:$0xff]
    %v3232 = vld [vmem:[#allocation13 + $0x48] sm:$0xff]
    %v3233 = vld [vmem:[#allocation13 + $0x50] sm:$0xff]
    %v3234 = vld [vmem:[#allocation13 + $0x58] sm:$0xff]
    %v3235 = vld [vmem:[#allocation13 + $0x60] sm:$0xff]
    %v3236 = vld [vmem:[#allocation13 + $0x68] sm:$0xff]
    %v3237 = vld [vmem:[#allocation13 + $0x70] sm:$0xff]
    %v3238 = vld [vmem:[#allocation13 + $0x78] sm:$0xff]
    %v3239 = vld [vmem:[#allocation13 + $0x80] sm:$0xff]
    %v3240 = vld [vmem:[#allocation13 + $0x88] sm:$0xff]
    %v3241 = vld [vmem:[#allocation13 + $0x90] sm:$0xff]
    %v3242 = vld [vmem:[#allocation13 + $0x98] sm:$0xff]
    %v3243 = vld [vmem:[#allocation13 + $0xa0] sm:$0xff]
    %v3244 = vld [vmem:[#allocation13 + $0xa8] sm:$0xff]
    %v3245 = vld [vmem:[#allocation13 + $0xb0] sm:$0xff]
    %v3246 = vld [vmem:[#allocation13 + $0xb8] sm:$0xff]
    %v3247 = vld [vmem:[#allocation13 + $0xc0] sm:$0xff]
    %v3248 = vld [vmem:[#allocation13 + $0xc8] sm:$0xff]
    %v3249 = vld [vmem:[#allocation13 + $0xd0] sm:$0xff]
    %v3250 = vld [vmem:[#allocation13 + $0xd8] sm:$0xff]
    %v3251 = vld [vmem:[#allocation13 + $0xe0] sm:$0xff]
    %v3252 = vld [vmem:[#allocation13 + $0xe8] sm:$0xff]
    %v3253 = vld [vmem:[#allocation13 + $0xf0] sm:$0xff]
    %v3254 = vld [vmem:[#allocation13 + $0xf8] sm:$0xff]
    %v3255 = vld [vmem:[%s11] sm:$0x1]
    %v3257 = vlaneseq
    %v3258 = vshrl.u32 %v3257, 7
    %v3259 = vsub.s32 0, %v3258
    %v3260 = vrot.slane %v3255, %v3259
    %3262 = vmatprep.subr.mxu0 0.0
    %3263 = vmatpush1.msra.mxu0 %v3238
    %3264 = vmatprep.subr.mxu0 0.0
    %3265 = vmatpush1.msra.mxu0 %v3237
    %3266 = vmatprep.subr.mxu0 0.0
    %3267 = vmatpush1.msra.mxu0 %v3236
    %3268 = vmatprep.subr.mxu0 0.0
    %3269 = vmatpush1.msra.mxu0 %v3235
    %3270 = vmatprep.subr.mxu0 0.0
    %3271 = vmatpush1.msra.mxu0 %v3234
    %3272 = vmatprep.subr.mxu0 0.0
    %3273 = vmatpush1.msra.mxu0 %v3233
    %3274 = vmatprep.subr.mxu0 0.0
    %3275 = vmatpush1.msra.mxu0 %v3232
    %3276 = vmatprep.subr.mxu0 0.0
    %3277 = vmatpush1.msra.mxu0 %v3231
    %3278 = vmatprep.subr.mxu0 0.0
    %3279 = vmatpush1.msra.mxu0 %v3230
    %3280 = vmatprep.subr.mxu0 0.0
    %3281 = vmatpush1.msra.mxu0 %v3229
    %3282 = vmatprep.subr.mxu0 0.0
    %3283 = vmatpush1.msra.mxu0 %v3228
    %3284 = vmatprep.subr.mxu0 0.0
    %3285 = vmatpush1.msra.mxu0 %v3227
    %3286 = vmatprep.subr.mxu0 0.0
    %3287 = vmatpush1.msra.mxu0 %v3226
    %3288 = vmatprep.subr.mxu0 0.0
    %3289 = vmatpush1.msra.mxu0 %v3225
    %3290 = vmatprep.subr.mxu0 0.0
    %3291 = vmatpush1.msra.mxu0 %v3224
    %3292 = vmatprep.subr.mxu0 0.0
    %3293 = vmatpush1.msra.mxu0 %v3223
    %3294 = vmatprep.subr.mxu0 0.0
    %3295 = vmatpush2.msra.mxu0 %v3254
    %3296 = vmatprep.subr.mxu0 0.0
    %3297 = vmatpush2.msra.mxu0 %v3253
    %3298 = vmatprep.subr.mxu0 0.0
    %3299 = vmatpush2.msra.mxu0 %v3252
    %3300 = vmatprep.subr.mxu0 0.0
    %3301 = vmatpush2.msra.mxu0 %v3251
    %3302 = vmatprep.subr.mxu0 0.0
    %3303 = vmatpush2.msra.mxu0 %v3250
    %3304 = vmatprep.subr.mxu0 0.0
    %3305 = vmatpush2.msra.mxu0 %v3249
    %3306 = vmatprep.subr.mxu0 0.0
    %3307 = vmatpush2.msra.mxu0 %v3248
    %3308 = vmatprep.subr.mxu0 0.0
    %3309 = vmatpush2.msra.mxu0 %v3247
    %3310 = vmatprep.subr.mxu0 0.0
    %3311 = vmatpush2.msra.mxu0 %v3246
    %3312 = vmatprep.subr.mxu0 0.0
    %3313 = vmatpush2.msra.mxu0 %v3245
    %3314 = vmatprep.subr.mxu0 0.0
    %3315 = vmatpush2.msra.mxu0 %v3244
    %3316 = vmatprep.subr.mxu0 0.0
    %3317 = vmatpush2.msra.mxu0 %v3243
    %3318 = vmatprep.subr.mxu0 0.0
    %3319 = vmatpush2.msra.mxu0 %v3242
    %3320 = vmatprep.subr.mxu0 0.0
    %3321 = vmatpush2.msra.mxu0 %v3241
    %3322 = vmatprep.subr.mxu0 0.0
    %3323 = vmatpush2.msra.mxu0 %v3240
    %3324 = vmatprep.subr.mxu0 0.0
    %3325 = vmatpush2.msra.mxu0 %v3239
    %3326 = vmatprep.mubr.f32.mxu0 %v3191
    %3327 = vmatmul.mubr.f32.gmra.mxu0 %v1131
    %v3328 = vpop.f32.mrf.mxu0
    %v3329 = vadd.f32 %v3260, %v3328
    %v3330 = vpop.f32.mrf.mxu0
    %3331 = vmatprep.mubr.f32.mxu0 %v3192
    %3332 = vmatmul.mubr.f32.gmra.mxu0 %v1133
    %v3333 = vpop.f32.mrf.mxu0
    %v3334 = vadd.f32 %v3260, %v3333
    %v3335 = vpop.f32.mrf.mxu0
    %3336 = vmatprep.mubr.f32.mxu0 %v3193
    %3337 = vmatmul.mubr.f32.gmra.mxu0 %v1135
    %v3338 = vpop.f32.mrf.mxu0
    %v3339 = vadd.f32 %v3260, %v3338
    %v3340 = vpop.f32.mrf.mxu0
    %3341 = vmatprep.mubr.f32.mxu0 %v3194
    %3342 = vmatmul.mubr.f32.gmra.mxu0 %v1137
    %v3343 = vpop.f32.mrf.mxu0
    %v3344 = vadd.f32 %v3260, %v3343
    %v3345 = vpop.f32.mrf.mxu0
    %3346 = vmatprep.mubr.f32.mxu0 %v3195
    %3347 = vmatmul.mubr.f32.gmra.mxu0 %v1139
    %v3348 = vpop.f32.mrf.mxu0
    %v3349 = vadd.f32 %v3260, %v3348
    %v3350 = vpop.f32.mrf.mxu0
    %3351 = vmatprep.mubr.f32.mxu0 %v3196
    %3352 = vmatmul.mubr.f32.gmra.mxu0 %v1141
    %v3353 = vpop.f32.mrf.mxu0
    %v3354 = vadd.f32 %v3260, %v3353
    %v3355 = vpop.f32.mrf.mxu0
    %3356 = vmatprep.mubr.f32.mxu0 %v3197
    %3357 = vmatmul.mubr.f32.gmra.mxu0 %v1143
    %v3358 = vpop.f32.mrf.mxu0
    %v3359 = vadd.f32 %v3260, %v3358
    %v3360 = vpop.f32.mrf.mxu0
    %3361 = vmatprep.mubr.f32.mxu0 %v3198
    %3362 = vmatmul.mubr.f32.gmra.mxu0 %v1145
    %v3363 = vpop.f32.mrf.mxu0
    %v3364 = vadd.f32 %v3260, %v3363
    %v3365 = vpop.f32.mrf.mxu0
    %3366 = vmatprep.mubr.f32.mxu0 %v3199
    %3367 = vmatmul.mubr.f32.gmra.mxu0 %v1147
    %v3368 = vpop.f32.mrf.mxu0
    %v3369 = vadd.f32 %v3260, %v3368
    %v3370 = vpop.f32.mrf.mxu0
    %3371 = vmatprep.mubr.f32.mxu0 %v3200
    %3372 = vmatmul.mubr.f32.gmra.mxu0 %v1149
    %v3373 = vpop.f32.mrf.mxu0
    %v3374 = vadd.f32 %v3260, %v3373
    %v3375 = vpop.f32.mrf.mxu0
    %3376 = vmatprep.mubr.f32.mxu0 %v3201
    %3377 = vmatmul.mubr.f32.gmra.mxu0 %v1151
    %v3378 = vpop.f32.mrf.mxu0
    %v3379 = vadd.f32 %v3260, %v3378
    %v3380 = vpop.f32.mrf.mxu0
    %3381 = vmatprep.mubr.f32.mxu0 %v3202
    %3382 = vmatmul.mubr.f32.gmra.mxu0 %v1153
    %v3383 = vpop.f32.mrf.mxu0
    %v3384 = vadd.f32 %v3260, %v3383
    %v3385 = vpop.f32.mrf.mxu0
    %3386 = vmatprep.mubr.f32.mxu0 %v3203
    %3387 = vmatmul.mubr.f32.gmra.mxu0 %v1155
    %v3388 = vpop.f32.mrf.mxu0
    %v3389 = vadd.f32 %v3260, %v3388
    %v3390 = vpop.f32.mrf.mxu0
    %3391 = vmatprep.mubr.f32.mxu0 %v3204
    %3392 = vmatmul.mubr.f32.gmra.mxu0 %v1157
    %v3393 = vpop.f32.mrf.mxu0
    %v3394 = vadd.f32 %v3260, %v3393
    %v3395 = vpop.f32.mrf.mxu0
    %3396 = vmatprep.mubr.f32.mxu0 %v3205
    %3397 = vmatmul.mubr.f32.gmra.mxu0 %v1159
    %v3398 = vpop.f32.mrf.mxu0
    %v3399 = vadd.f32 %v3260, %v3398
    %v3400 = vpop.f32.mrf.mxu0
    %3401 = vmatprep.mubr.f32.mxu0 %v3206
    %3402 = vmatmul.mubr.f32.gmra.mxu0 %v1161
    %v3403 = vpop.f32.mrf.mxu0
    %v3404 = vadd.f32 %v3260, %v3403
    %v3405 = vpop.f32.mrf.mxu0
    %3406 = vmatprep.mubr.f32.mxu0 %v3207
    %3407 = vmatmul.mubr.f32.gmra.mxu0 %v1163
    %v3408 = vpop.f32.mrf.mxu0
    %v3409 = vadd.f32 %v3260, %v3408
    %v3410 = vpop.f32.mrf.mxu0
    %3411 = vmatprep.mubr.f32.mxu0 %v3208
    %3412 = vmatmul.mubr.f32.gmra.mxu0 %v1165
    %v3413 = vpop.f32.mrf.mxu0
    %v3414 = vadd.f32 %v3260, %v3413
    %v3415 = vpop.f32.mrf.mxu0
    %3416 = vmatprep.mubr.f32.mxu0 %v3209
    %3417 = vmatmul.mubr.f32.gmra.mxu0 %v1167
    %v3418 = vpop.f32.mrf.mxu0
    %v3419 = vadd.f32 %v3260, %v3418
    %v3420 = vpop.f32.mrf.mxu0
    %3421 = vmatprep.mubr.f32.mxu0 %v3210
    %3422 = vmatmul.mubr.f32.gmra.mxu0 %v1169
    %v3423 = vpop.f32.mrf.mxu0
    %v3424 = vadd.f32 %v3260, %v3423
    %v3425 = vpop.f32.mrf.mxu0
    %3426 = vmatprep.mubr.f32.mxu0 %v3211
    %3427 = vmatmul.mubr.f32.gmra.mxu0 %v1171
    %v3428 = vpop.f32.mrf.mxu0
    %v3429 = vadd.f32 %v3260, %v3428
    %v3430 = vpop.f32.mrf.mxu0
    %3431 = vmatprep.mubr.f32.mxu0 %v3212
    %3432 = vmatmul.mubr.f32.gmra.mxu0 %v1173
    %v3433 = vpop.f32.mrf.mxu0
    %v3434 = vadd.f32 %v3260, %v3433
    %v3435 = vpop.f32.mrf.mxu0
    %3436 = vmatprep.mubr.f32.mxu0 %v3213
    %3437 = vmatmul.mubr.f32.gmra.mxu0 %v1175
    %v3438 = vpop.f32.mrf.mxu0
    %v3439 = vadd.f32 %v3260, %v3438
    %v3440 = vpop.f32.mrf.mxu0
    %3441 = vmatprep.mubr.f32.mxu0 %v3214
    %3442 = vmatmul.mubr.f32.gmra.mxu0 %v1177
    %v3443 = vpop.f32.mrf.mxu0
    %v3444 = vadd.f32 %v3260, %v3443
    %v3445 = vpop.f32.mrf.mxu0
    %3446 = vmatprep.mubr.f32.mxu0 %v3215
    %3447 = vmatmul.mubr.f32.gmra.mxu0 %v1179
    %v3448 = vpop.f32.mrf.mxu0
    %v3449 = vadd.f32 %v3260, %v3448
    %v3450 = vpop.f32.mrf.mxu0
    %3451 = vmatprep.mubr.f32.mxu0 %v3216
    %3452 = vmatmul.mubr.f32.gmra.mxu0 %v1181
    %v3453 = vpop.f32.mrf.mxu0
    %v3454 = vadd.f32 %v3260, %v3453
    %v3455 = vpop.f32.mrf.mxu0
    %3456 = vmatprep.mubr.f32.mxu0 %v3217
    %3457 = vmatmul.mubr.f32.gmra.mxu0 %v1183
    %v3458 = vpop.f32.mrf.mxu0
    %v3459 = vadd.f32 %v3260, %v3458
    %v3460 = vpop.f32.mrf.mxu0
    %3461 = vmatprep.mubr.f32.mxu0 %v3218
    %3462 = vmatmul.mubr.f32.gmra.mxu0 %v1185
    %v3463 = vpop.f32.mrf.mxu0
    %v3464 = vadd.f32 %v3260, %v3463
    %v3465 = vpop.f32.mrf.mxu0
    %3466 = vmatprep.mubr.f32.mxu0 %v3219
    %3467 = vmatmul.mubr.f32.gmra.mxu0 %v1187
    %v3468 = vpop.f32.mrf.mxu0
    %v3469 = vadd.f32 %v3260, %v3468
    %v3470 = vpop.f32.mrf.mxu0
    %3471 = vmatprep.mubr.f32.mxu0 %v3220
    %3472 = vmatmul.mubr.f32.gmra.mxu0 %v1189
    %v3473 = vpop.f32.mrf.mxu0
    %v3474 = vadd.f32 %v3260, %v3473
    %v3475 = vpop.f32.mrf.mxu0
    %3476 = vmatprep.mubr.f32.mxu0 %v3221
    %3477 = vmatmul.mubr.f32.gmra.mxu0 %v1191
    %v3478 = vpop.f32.mrf.mxu0
    %v3479 = vadd.f32 %v3260, %v3478
    %v3480 = vpop.f32.mrf.mxu0
    %3481 = vmatprep.mubr.f32.mxu0 %v3222
    %3482 = vmatmul.mubr.f32.gmra.mxu0 %v1193
    %v3483 = vpop.f32.mrf.mxu0
    %v3484 = vadd.f32 %v3260, %v3483
    %v3485 = vpop.f32.mrf.mxu0
    %3486 = vdwg.mxu0
    %3487 = vxpose.xlu0.b32.start [1/16] %v3329, 128
    %3488 = vxpose.xlu0.b32.cont [2/16] %v3334, 128
    %3489 = vxpose.xlu0.b32.cont [3/16] %v3339, 128
    %3490 = vxpose.xlu0.b32.cont [4/16] %v3344, 128
    %3491 = vxpose.xlu0.b32.cont [5/16] %v3349, 128
    %3492 = vxpose.xlu0.b32.cont [6/16] %v3354, 128
    %3493 = vxpose.xlu0.b32.cont [7/16] %v3359, 128
    %3494 = vxpose.xlu0.b32.cont [8/16] %v3364, 128
    %3495 = vxpose.xlu0.b32.cont [9/16] %v3369, 128
    %3496 = vxpose.xlu0.b32.cont [10/16] %v3374, 128
    %3497 = vxpose.xlu0.b32.cont [11/16] %v3379, 128
    %3498 = vxpose.xlu0.b32.cont [12/16] %v3384, 128
    %3499 = vxpose.xlu0.b32.cont [13/16] %v3389, 128
    %3500 = vxpose.xlu0.b32.cont [14/16] %v3394, 128
    %3501 = vxpose.xlu0.b32.cont [15/16] %v3399, 128
    %3502 = vxpose.xlu0.b32.end [16/16] %v3404, 128
    %v3503 = vpop.trf.xlu0
    %v3504 = vpop.trf.xlu0
    %v3505 = vpop.trf.xlu0
    %v3506 = vpop.trf.xlu0
    %v3507 = vpop.trf.xlu0
    %v3508 = vpop.trf.xlu0
    %v3509 = vpop.trf.xlu0
    %v3510 = vpop.trf.xlu0
    %v3511 = vpop.trf.xlu0
    %v3512 = vpop.trf.xlu0
    %v3513 = vpop.trf.xlu0
    %v3514 = vpop.trf.xlu0
    %v3515 = vpop.trf.xlu0
    %v3516 = vpop.trf.xlu0
    %v3517 = vpop.trf.xlu0
    %v3518 = vpop.trf.xlu0
    %3519 = vxpose.xlu0.b32.start [1/16] %v3409, 128
    %3520 = vxpose.xlu0.b32.cont [2/16] %v3414, 128
    %3521 = vxpose.xlu0.b32.cont [3/16] %v3419, 128
    %3522 = vxpose.xlu0.b32.cont [4/16] %v3424, 128
    %3523 = vxpose.xlu0.b32.cont [5/16] %v3429, 128
    %3524 = vxpose.xlu0.b32.cont [6/16] %v3434, 128
    %3525 = vxpose.xlu0.b32.cont [7/16] %v3439, 128
    %3526 = vxpose.xlu0.b32.cont [8/16] %v3444, 128
    %3527 = vxpose.xlu0.b32.cont [9/16] %v3449, 128
    %3528 = vxpose.xlu0.b32.cont [10/16] %v3454, 128
    %3529 = vxpose.xlu0.b32.cont [11/16] %v3459, 128
    %3530 = vxpose.xlu0.b32.cont [12/16] %v3464, 128
    %3531 = vxpose.xlu0.b32.cont [13/16] %v3469, 128
    %3532 = vxpose.xlu0.b32.cont [14/16] %v3474, 128
    %3533 = vxpose.xlu0.b32.cont [15/16] %v3479, 128
    %3534 = vxpose.xlu0.b32.end [16/16] %v3484, 128
    %v3535 = vpop.trf.xlu0
    %v3536 = vpop.trf.xlu0
    %v3537 = vpop.trf.xlu0
    %v3538 = vpop.trf.xlu0
    %v3539 = vpop.trf.xlu0
    %v3540 = vpop.trf.xlu0
    %v3541 = vpop.trf.xlu0
    %v3542 = vpop.trf.xlu0
    %v3543 = vpop.trf.xlu0
    %v3544 = vpop.trf.xlu0
    %v3545 = vpop.trf.xlu0
    %v3546 = vpop.trf.xlu0
    %v3547 = vpop.trf.xlu0
    %v3548 = vpop.trf.xlu0
    %v3549 = vpop.trf.xlu0
    %v3550 = vpop.trf.xlu0
    %v3551 = vsub.f32 0.0, %v3503
    %v3552 = vsub.f32 0.0, %v3535
    %v3553 = vmul.f32 %v3551, 1.442695
    %v3554 = vpow.pop %v3553
    %v3555 = vmul.f32 %v3552, 1.442695
    %v3556 = vpow.pop %v3555
    %v3557 = vadd.f32 %v3554, 1.0
    %v3558 = vadd.f32 %v3556, 1.0
    %v3559 = vrcp.pop %v3557
    %v3560 = vmul.f32 1.0, %v3559
    %v3561 = vrcp.pop %v3558
    %v3562 = vmul.f32 1.0, %v3561
    %v3565 = vcombine.low %v3560, %v3562
    %v3567 = vunpack.c.l.s4 1983009808
    %v3568 = vunpack.c.0.s8 %v3567
    %v3569 = vlaneseq
    %v3570 = vshrl.u32 %v3569, 7
    %v3571 = vsub.s32 %v3568, %v3570
    %v3572 = vrot.slane %v3565, %v3571
    %3574 = vst [vmem:[#allocation14] sm:$0xf] %v3572
    // Predicated region
    $region78: #{tpu_custom_call.1} parent=1 // pred_check
      _
    $region79: #{tpu_custom_call.1} parent=1 // pred_check_branch
      %3576 = sbr.rel (0) target = $region81
    $region80: #{tpu_custom_call.1} parent=1 // pred_region
      %s3578 = ssub.s32 64, 64
      %3579 = vsyncadd [#allocation4], %s3578
      %s3581 = sshll.u32 [#allocation14], 4
      %s3582 = int_to_ptr.vmem [resolvable:$true] %s3581
      %3584 = dma.vmem_to_hbm [thread:$0]  %s3582, 64, %s12, [#allocation4]
    $region81: #{tpu_custom_call.1} parent=1 // pred_fallthru
      _
    // Predicated region
    $region82: #{tpu_custom_call.1} parent=1 // pred_check
      _
    $region83: #{tpu_custom_call.1} parent=1 // pred_check_branch
      %3586 = sbr.rel (0) target = $region85
    $region84: #{tpu_custom_call.1} parent=1 // pred_region
      %3587 = dma.done [#allocation4], 64
    $region85: #{tpu_custom_call.1} parent=1 // pred_fallthru
      _
    %3588 = vsyncpa [#allocation3], 1
    %3589 = vsyncpa [#allocation6], 1
    %3590 = vsyncpa [#allocation9], 1
    %3591 = vsyncpa [#allocation12], 1
    %3592 = vsyncpa [#allocation4], 1

</llo_original>
